<compile_context>
chip_gen: v5e
topology: v5e:2x2
jax: 0.10.0
libtpu: 0.0.40
codegen_flags: <defaults>
</compile_context>

<pallas_src>
import functools

import jax
import jax.numpy as jnp
from jax.experimental import pallas as pl
from jax.experimental.pallas import tpu as pltpu


# ----------------------------------------------------------------------------
# helpers
# ----------------------------------------------------------------------------
_TM_PREFS = (256, 128)
_TN_PREFS = (256, 128)
_TK_PREFS = (512, 256, 128)
_VMEM_LIMIT = 32 * 1024 * 1024

_CPARAMS_3D = pltpu.CompilerParams(
    dimension_semantics=("parallel", "parallel", "arbitrary"),
    vmem_limit_bytes=_VMEM_LIMIT)
_CPARAMS_1D = pltpu.CompilerParams(
    dimension_semantics=("parallel",),
    vmem_limit_bytes=_VMEM_LIMIT)


def _round_up(x, m):
    return ((x + m - 1) // m) * m


def _pick_tile(dim, prefs):
    for p in prefs:
        if dim >= p and dim % p == 0:
            return p
    return dim


def _pad2d(a, rows, cols):
    pr, pc = rows - a.shape[0], cols - a.shape[1]
    if pr == 0 and pc == 0:
        return a
    return jnp.pad(a, ((0, pr), (0, pc)))


def _block_spec(shape, index_map, buffers=None):
    """BlockSpec with optional deeper multi-buffering; falls back gracefully."""
    if buffers is not None:
        try:
            return pl.BlockSpec(shape, index_map, pipeline_mode=pl.Buffered(buffers))
        except Exception:  # older jax without pipeline_mode / Buffered
            pass
    return pl.BlockSpec(shape, index_map)


# ----------------------------------------------------------------------------
# generic tiled matmul kernel:  out = act( (scale * x) @ w + bias )
# ----------------------------------------------------------------------------
def _mm_kernel(*refs, has_bias, has_scale, act):
    idx = 0
    x_ref = refs[idx]; idx += 1
    w_ref = refs[idx]; idx += 1
    b_ref = None
    s_ref = None
    if has_bias:
        b_ref = refs[idx]; idx += 1
    if has_scale:
        s_ref = refs[idx]; idx += 1
    o_ref = refs[idx]; idx += 1
    acc_ref = refs[idx]

    k = pl.program_id(2)
    nk = pl.num_programs(2)

    @pl.when(k == 0)
    def _():
        acc_ref[...] = jnp.zeros_like(acc_ref)

    xb = x_ref[...]
    if has_scale:
        # f32 epilogue-style scale (keeps v5e VPU on its native f32 path).
        xb = (xb.astype(jnp.float32) * s_ref[...]).astype(jnp.bfloat16)
    acc_ref[...] += jnp.dot(xb, w_ref[...], preferred_element_type=jnp.float32)

    @pl.when(k == nk - 1)
    def _():
        y = acc_ref[...]
        if has_bias:
            y = y + b_ref[...]
        if act == "relu":
            y = jnp.maximum(y, 0.0)
        o_ref[...] = y.astype(o_ref.dtype)


def tiled_matmul(x, w, bias=None, row_scale=None, act="none",
                 out_dtype=jnp.float32, lhs_buffers=None):
    """Tiled, double-buffered matmul: act((row_scale*x) @ w + bias)."""
    M, K = x.shape
    K2, N = w.shape
    assert K == K2
    Mp, Kp, Np = _round_up(M, 128), _round_up(K, 128), _round_up(N, 128)

    xb = _pad2d(x.astype(jnp.bfloat16), Mp, Kp)
    wb = _pad2d(w.astype(jnp.bfloat16), Kp, Np)

    tm = _pick_tile(Mp, _TM_PREFS)
    tn = _pick_tile(Np, _TN_PREFS)
    tk = _pick_tile(Kp, _TK_PREFS)
    grid = (Mp // tm, Np // tn, Kp // tk)

    # only ask for deeper buffering when there is actually something to stream
    lhs_buf = lhs_buffers if (lhs_buffers and grid[0] * grid[2] >= lhs_buffers) else None

    in_specs = [
        _block_spec((tm, tk), lambda i, j, k: (i, k), lhs_buf),
        pl.BlockSpec((tk, tn), lambda i, j, k: (k, j)),
    ]
    args = [xb, wb]
    has_bias = bias is not None
    has_scale = row_scale is not None
    if has_bias:
        in_specs.append(pl.BlockSpec((1, tn), lambda i, j, k: (0, j)))
        args.append(_pad2d(bias.astype(jnp.float32).reshape(1, -1), 1, Np))
    if has_scale:
        in_specs.append(pl.BlockSpec((tm, 1), lambda i, j, k: (i, 0)))
        args.append(_pad2d(row_scale.astype(jnp.float32).reshape(-1, 1), Mp, 1))

    out = pl.pallas_call(
        functools.partial(_mm_kernel, has_bias=has_bias,
                          has_scale=has_scale, act=act),
        out_shape=jax.ShapeDtypeStruct((Mp, Np), out_dtype),
        grid=grid,
        in_specs=in_specs,
        out_specs=pl.BlockSpec((tm, tn), lambda i, j, k: (i, j)),
        scratch_shapes=[pltpu.VMEM((tm, tn), jnp.float32)],
        compiler_params=_CPARAMS_3D,
    )(*args)
    return out[:M, :N]


# ----------------------------------------------------------------------------
# GNN layer: adj @ (x @ W)  (+ ReLU)
# ----------------------------------------------------------------------------
def gnn(adj_b, x, w, active=True):
    s = tiled_matmul(x, w, act="none", out_dtype=jnp.bfloat16)
    return tiled_matmul(adj_b, s, act=("relu" if active else "none"),
                        out_dtype=jnp.float32, lhs_buffers=3)


# ----------------------------------------------------------------------------
# fused auto-encoder kernel (weights resident in VMEM, grid over node rows)
# ----------------------------------------------------------------------------
def _ae_kernel(x_ref,
               w1, b1, w2, b2, w3, b3, wz, bz,
               wd1, bd1, wd2, bd2, wd3, bd3, wxb, bxb,
               xbar_ref, h1_ref, h2_ref, h3_ref, z_ref):
    def lin(h, w_ref, b_ref, relu):
        y = jnp.dot(h.astype(jnp.bfloat16), w_ref[...],
                    preferred_element_type=jnp.float32) + b_ref[...]
        return jnp.maximum(y, 0.0) if relu else y

    h1 = lin(x_ref[...], w1, b1, True)
    h2 = lin(h1, w2, b2, True)
    h3 = lin(h2, w3, b3, True)
    z = lin(h3, wz, bz, False)
    d1 = lin(z, wd1, bd1, True)
    d2 = lin(d1, wd2, bd2, True)
    d3 = lin(d2, wd3, bd3, True)
    x_bar = lin(d3, wxb, bxb, False)

    xbar_ref[...] = x_bar
    h1_ref[...] = h1
    h2_ref[...] = h2
    h3_ref[...] = h3
    z_ref[...] = z


def ae_forward(x, layers):
    """layers = [(w, b)] for enc1, enc2, enc3, z, dec1, dec2, dec3, x_bar."""
    N, n_in = x.shape
    Mp = _round_up(N, 128)
    tm = _pick_tile(Mp, _TM_PREFS)

    args = [_pad2d(x.astype(jnp.bfloat16), Mp, n_in)]
    in_specs = [pl.BlockSpec((tm, n_in), lambda i: (i, 0))]
    for w, b in layers:
        din, dout = w.shape
        args.append(w.astype(jnp.bfloat16))
        args.append(b.astype(jnp.float32).reshape(1, -1))
        in_specs.append(pl.BlockSpec((din, dout), lambda i: (0, 0)))
        in_specs.append(pl.BlockSpec((1, dout), lambda i: (0, 0)))

    widths = [w.shape[1] for w, _ in layers]
    out_widths = [n_in, widths[0], widths[1], widths[2], widths[3]]
    out_shapes = tuple(jax.ShapeDtypeStruct((Mp, wd), jnp.float32)
                       for wd in out_widths)
    out_specs = tuple(pl.BlockSpec((tm, wd), lambda i: (i, 0))
                      for wd in out_widths)

    x_bar, h1, h2, h3, z = pl.pallas_call(
        _ae_kernel,
        out_shape=out_shapes,
        grid=(Mp // tm,),
        in_specs=in_specs,
        out_specs=out_specs,
        compiler_params=_CPARAMS_1D,
    )(*args)
    return x_bar[:N], h1[:N], h2[:N], h3[:N], z[:N]


# ----------------------------------------------------------------------------
# Student-t cluster assignment kernel (matmul form of the distance)
# ----------------------------------------------------------------------------
def _q_kernel(z_ref, mut_ref, o_ref, *, v):
    z = z_ref[...]                                     # (tm, n_z) f32
    mut = mut_ref[...]                                 # (n_z, K)  f32
    zz = jnp.sum(z * z, axis=1, keepdims=True)         # (tm, 1)
    mm = jnp.sum(mut * mut, axis=0, keepdims=True)     # (1, K)
    cross = jnp.dot(z, mut, preferred_element_type=jnp.float32)
    dist = jnp.maximum(zz + mm - 2.0 * cross, 0.0)
    q = 1.0 / (1.0 + dist / v)
    if v != 1.0:                                       # pow skipped when v == 1
        q = q ** ((v + 1.0) / 2.0)
    o_ref[...] = q / jnp.sum(q, axis=1, keepdims=True)


def student_t_q(z, mu, v=1.0):
    N, nz = z.shape
    K, nz2 = mu.shape
    assert nz == nz2
    Mp = _round_up(N, 128)
    tm = _pick_tile(Mp, _TM_PREFS)
    zp = _pad2d(z.astype(jnp.float32), Mp, nz)
    mu_t = jnp.transpose(mu.astype(jnp.float32))       # (n_z, K)
    out = pl.pallas_call(
        functools.partial(_q_kernel, v=float(v)),
        out_shape=jax.ShapeDtypeStruct((Mp, K), jnp.float32),
        grid=(Mp // tm,),
        in_specs=[pl.BlockSpec((tm, nz), lambda i: (i, 0)),
                  pl.BlockSpec((nz, K), lambda i: (0, 0))],
        out_specs=pl.BlockSpec((tm, K), lambda i: (i, 0)),
        compiler_params=_CPARAMS_1D,
    )(zp, mu_t)
    return out[:N]


# ----------------------------------------------------------------------------
# plain-JAX glue (tiny / lane-sparse ops; not worth dedicated pallas_calls)
# ----------------------------------------------------------------------------
def l2_normalize(x, eps=1e-12):
    n = jnp.sqrt(jnp.sum(x * x, axis=1, keepdims=True))
    return x / jnp.maximum(n, eps)


def softmax_rows(x):
    x = x - jnp.max(x, axis=1, keepdims=True)
    e = jnp.exp(x)
    return e / jnp.sum(e, axis=1, keepdims=True)


def leaky_softmax_rows(y):
    y = jnp.where(y >= 0.0, y, 0.01 * y)
    return softmax_rows(y)


def pair_weights(h, zg, wb):
    """F.normalize(softmax(leaky_relu(Linear(cat(h, zg))))) without the concat."""
    w, b = wb
    d = h.shape[1]
    y = h @ w[:d] + zg @ w[d:] + b
    return l2_normalize(leaky_softmax_rows(y))


def multi_weights(parts, wb, splits):
    """Same as pair_weights but for the 5-way MLP_L input (no concat)."""
    w, b = wb
    y = b
    off = 0
    for part, width in zip(parts, splits):
        y = y + part @ w[off:off + width]
        off += width
    return l2_normalize(leaky_softmax_rows(y))


def bce(out, tar, weight):
    eps = 1e-12
    l_n = weight * (tar * jnp.log(out + eps) + (1.0 - tar) * jnp.log(1.0 - out + eps))
    return -jnp.sum(l_n) / out.size


# ----------------------------------------------------------------------------
# parameter construction (deterministic, synthetic)
# ----------------------------------------------------------------------------
def init_params(key, dims):
    (n_enc_1, n_enc_2, n_enc_3, n_dec_1, n_dec_2, n_dec_3,
     n_input, n_z, n_clusters) = dims

    def lin(k, din, dout):
        kw, kb = jax.random.split(k)
        scale = 1.0 / jnp.sqrt(jnp.float32(din))
        w = jax.random.uniform(kw, (din, dout), jnp.float32, -scale, scale)
        b = jax.random.uniform(kb, (1, dout), jnp.float32, -scale, scale)
        return w, b

    def gnn_w(k, din, dout):
        scale = jnp.sqrt(6.0 / (din + dout))
        return jax.random.uniform(k, (din, dout), jnp.float32, -scale, scale)

    keys = jax.random.split(key, 20)
    p = {}
    p["enc1"] = lin(keys[0], n_input, n_enc_1)
    p["enc2"] = lin(keys[1], n_enc_1, n_enc_2)
    p["enc3"] = lin(keys[2], n_enc_2, n_enc_3)
    p["zlay"] = lin(keys[3], n_enc_3, n_z)
    p["dec1"] = lin(keys[4], n_z, n_dec_1)
    p["dec2"] = lin(keys[5], n_dec_1, n_dec_2)
    p["dec3"] = lin(keys[6], n_dec_2, n_dec_3)
    p["xbar"] = lin(keys[7], n_dec_3, n_input)
    p["agnn0"] = gnn_w(keys[8], n_input, n_enc_1)
    p["agnn1"] = gnn_w(keys[9], n_enc_1, n_enc_2)
    p["agnn2"] = gnn_w(keys[10], n_enc_2, n_enc_3)
    p["agnn3"] = gnn_w(keys[11], n_enc_3, n_z)
    n_cat = n_enc_1 + n_enc_2 + n_enc_3 + n_z + n_z
    p["agnnz"] = gnn_w(keys[12], n_cat, n_clusters)
    p["mlp_l"] = lin(keys[13], n_cat, 5)
    p["mlp1"] = lin(keys[14], 2 * n_enc_1, 2)
    p["mlp2"] = lin(keys[15], 2 * n_enc_2, 2)
    p["mlp3"] = lin(keys[16], 2 * n_enc_3, 2)
    p["mlp_zq"] = lin(keys[17], 2 * n_clusters, 2)
    std = jnp.sqrt(2.0 / (n_clusters + n_z))
    p["cluster"] = std * jax.random.normal(keys[18], (n_clusters, n_z), jnp.float32)
    return p


# ----------------------------------------------------------------------------
# SDCN forward
# ----------------------------------------------------------------------------
def sdcn_forward(p, x, adj, v=1.0):
    n_enc_1 = p["enc1"][0].shape[1]
    n_enc_2 = p["enc2"][0].shape[1]
    n_enc_3 = p["enc3"][0].shape[1]
    n_z = p["zlay"][0].shape[1]
    n_clusters = p["cluster"].shape[0]

    adj_b = adj.astype(jnp.bfloat16)   # cast the largest operand once

    # --- fused auto-encoder (one kernel) ---
    x_bar, h1, h2, h3, z = ae_forward(
        x, [p["enc1"], p["enc2"], p["enc3"], p["zlay"],
            p["dec1"], p["dec2"], p["dec3"], p["xbar"]])

    # --- GNN branch with attention-like fusion ---
    z1 = gnn(adj_b, x, p["agnn0"], active=True)
    p1 = pair_weights(h1, z1, p["mlp1"])
    z2_in = p1[:, 0:1] * z1 + p1[:, 1:2] * h1
    z2 = gnn(adj_b, z2_in, p["agnn1"], active=True)

    p2 = pair_weights(h2, z2, p["mlp2"])
    z3_in = p2[:, 0:1] * z2 + p2[:, 1:2] * h2
    z3 = gnn(adj_b, z3_in, p["agnn2"], active=True)

    p3 = pair_weights(h3, z3, p["mlp3"])
    z4_in = p3[:, 0:1] * z3 + p3[:, 1:2] * h3
    z4 = gnn(adj_b, z4_in, p["agnn3"], active=True)

    parts = [z1, z2, z3, z4, z]
    splits = [n_enc_1, n_enc_2, n_enc_3, n_z, n_z]
    w_att = multi_weights(parts, p["mlp_l"], splits)

    # agnn_z on the (never materialised) concatenation:
    #   s = sum_c (w_att[:, c] * part_c) @ W_c  ;  net_output = adj @ s
    wz_rows = p["agnnz"]
    s = None
    off = 0
    for c, (part, width) in enumerate(zip(parts, splits)):
        term = tiled_matmul(part, wz_rows[off:off + width],
                            row_scale=w_att[:, c:c + 1], out_dtype=jnp.float32)
        s = term if s is None else s + term
        off += width
    net_output = tiled_matmul(adj_b, s, act="none",
                              out_dtype=jnp.float32, lhs_buffers=3)
    predict = softmax_rows(net_output)

    # --- Student-t cluster assignment ---
    q = student_t_q(z, p["cluster"], v=v)

    # --- fuse predict and q (tiny MLP head, plain JAX, split weights) ---
    wzq, bzq = p["mlp_zq"]
    p_zh = l2_normalize(leaky_softmax_rows(
        predict @ wzq[:n_clusters] + q @ wzq[n_clusters:] + bzq))
    z_f = softmax_rows(p_zh[:, 0:1] * predict + p_zh[:, 1:2] * q)

    clu_assignment = jnp.argmax(z_f, axis=-1)
    clu_onehot = jax.nn.one_hot(clu_assignment, n_clusters, dtype=jnp.float32)
    thres = 0.8
    weight_label = (l2_normalize(z_f) >= thres).astype(jnp.float32)
    pseudo_label_loss = bce(z_f, clu_onehot, weight_label)

    return x_bar, q, predict, z, net_output, pseudo_label_loss, z_f


# ----------------------------------------------------------------------------
# main
# ----------------------------------------------------------------------------
if __name__ == "__main__":
    # small, mostly 128-aligned shapes
    n_nodes = 256
    n_input = 128
    n_enc_1, n_enc_2, n_enc_3 = 128, 128, 256
    n_dec_1, n_dec_2, n_dec_3 = 256, 128, 128
    n_z = 16
    n_clusters = 8

    dims = (n_enc_1, n_enc_2, n_enc_3, n_dec_1, n_dec_2, n_dec_3,
            n_input, n_z, n_clusters)

    key = jax.random.PRNGKey(0)
    k_params, k_x, k_adj = jax.random.split(key, 3)

    params = init_params(k_params, dims)
    x = jax.random.normal(k_x, (n_nodes, n_input), jnp.float32)

    # symmetric, row-normalised adjacency (deterministic)
    a = (jax.random.uniform(k_adj, (n_nodes, n_nodes)) > 0.9).astype(jnp.float32)
    a = jnp.maximum(a, a.T) + jnp.eye(n_nodes, dtype=jnp.float32)
    adj = a / jnp.sum(a, axis=1, keepdims=True)

    outs = sdcn_forward(params, x, adj, v=1.0)
    outs = jax.block_until_ready(outs)

    x_bar, q, predict, z, net_output, loss, z_f = outs
    assert x_bar.shape == (n_nodes, n_input)
    assert q.shape == (n_nodes, n_clusters)
    assert predict.shape == (n_nodes, n_clusters)
    assert z.shape == (n_nodes, n_z)
    assert net_output.shape == (n_nodes, n_clusters)
    assert z_f.shape == (n_nodes, n_clusters)
    assert loss.shape == ()
    assert all(bool(jnp.all(jnp.isfinite(o))) for o in
               (x_bar, q, predict, z, net_output, z_f))

    print("KERNEL_OK")
</pallas_src>

<mosaic_0001>
module attributes {stable_mosaic.version = 11 : i64} {
  func.func @_ae_kernel(%arg0: i32, %arg1: memref<256x128xbf16, #tpu.memory_space<vmem>>, %arg2: memref<128x128xbf16, #tpu.memory_space<vmem>>, %arg3: memref<1x128xf32, #tpu.memory_space<vmem>>, %arg4: memref<128x128xbf16, #tpu.memory_space<vmem>>, %arg5: memref<1x128xf32, #tpu.memory_space<vmem>>, %arg6: memref<128x256xbf16, #tpu.memory_space<vmem>>, %arg7: memref<1x256xf32, #tpu.memory_space<vmem>>, %arg8: memref<256x16xbf16, #tpu.memory_space<vmem>>, %arg9: memref<1x16xf32, #tpu.memory_space<vmem>>, %arg10: memref<16x256xbf16, #tpu.memory_space<vmem>>, %arg11: memref<1x256xf32, #tpu.memory_space<vmem>>, %arg12: memref<256x128xbf16, #tpu.memory_space<vmem>>, %arg13: memref<1x128xf32, #tpu.memory_space<vmem>>, %arg14: memref<128x128xbf16, #tpu.memory_space<vmem>>, %arg15: memref<1x128xf32, #tpu.memory_space<vmem>>, %arg16: memref<128x128xbf16, #tpu.memory_space<vmem>>, %arg17: memref<1x128xf32, #tpu.memory_space<vmem>>, %arg18: memref<256x128xf32, #tpu.memory_space<vmem>>, %arg19: memref<256x128xf32, #tpu.memory_space<vmem>>, %arg20: memref<256x128xf32, #tpu.memory_space<vmem>>, %arg21: memref<256x256xf32, #tpu.memory_space<vmem>>, %arg22: memref<256x16xf32, #tpu.memory_space<vmem>>) attributes {dimension_semantics = [#tpu.dimension_semantics<parallel>], iteration_bounds = array<i64: 1>, scalar_prefetch = 0 : i64, scratch_operands = 0 : i64, tpu.core_type = #tpu.core_type<tc>, window_params = [{transform_indices = @transform_0, window_bounds = array<i64: 256, 128>}, {pipeline_mode = #tpu.pipeline_mode<synchronous>, transform_indices = @transform_1, window_bounds = array<i64: 128, 128>}, {pipeline_mode = #tpu.pipeline_mode<synchronous>, transform_indices = @transform_2, window_bounds = array<i64: 1, 128>}, {pipeline_mode = #tpu.pipeline_mode<synchronous>, transform_indices = @transform_3, window_bounds = array<i64: 128, 128>}, {pipeline_mode = #tpu.pipeline_mode<synchronous>, transform_indices = @transform_4, window_bounds = array<i64: 1, 128>}, {pipeline_mode = #tpu.pipeline_mode<synchronous>, transform_indices = @transform_5, window_bounds = array<i64: 128, 256>}, {pipeline_mode = #tpu.pipeline_mode<synchronous>, transform_indices = @transform_6, window_bounds = array<i64: 1, 256>}, {pipeline_mode = #tpu.pipeline_mode<synchronous>, transform_indices = @transform_7, window_bounds = array<i64: 256, 16>}, {pipeline_mode = #tpu.pipeline_mode<synchronous>, transform_indices = @transform_8, window_bounds = array<i64: 1, 16>}, {pipeline_mode = #tpu.pipeline_mode<synchronous>, transform_indices = @transform_9, window_bounds = array<i64: 16, 256>}, {pipeline_mode = #tpu.pipeline_mode<synchronous>, transform_indices = @transform_10, window_bounds = array<i64: 1, 256>}, {pipeline_mode = #tpu.pipeline_mode<synchronous>, transform_indices = @transform_11, window_bounds = array<i64: 256, 128>}, {pipeline_mode = #tpu.pipeline_mode<synchronous>, transform_indices = @transform_12, window_bounds = array<i64: 1, 128>}, {pipeline_mode = #tpu.pipeline_mode<synchronous>, transform_indices = @transform_13, window_bounds = array<i64: 128, 128>}, {pipeline_mode = #tpu.pipeline_mode<synchronous>, transform_indices = @transform_14, window_bounds = array<i64: 1, 128>}, {pipeline_mode = #tpu.pipeline_mode<synchronous>, transform_indices = @transform_15, window_bounds = array<i64: 128, 128>}, {pipeline_mode = #tpu.pipeline_mode<synchronous>, transform_indices = @transform_16, window_bounds = array<i64: 1, 128>}, {transform_indices = @transform_17, window_bounds = array<i64: 256, 128>}, {transform_indices = @transform_18, window_bounds = array<i64: 256, 128>}, {transform_indices = @transform_19, window_bounds = array<i64: 256, 128>}, {transform_indices = @transform_20, window_bounds = array<i64: 256, 256>}, {transform_indices = @transform_21, window_bounds = array<i64: 256, 16>}]} {
    %c0 = arith.constant 0 : index
    %c0_0 = arith.constant 0 : index
    %0 = vector.load %arg1[%c0, %c0_0] : memref<256x128xbf16, #tpu.memory_space<vmem>>, vector<256x128xbf16>
    %c0_1 = arith.constant 0 : index
    %c0_2 = arith.constant 0 : index
    %1 = vector.load %arg2[%c0_1, %c0_2] : memref<128x128xbf16, #tpu.memory_space<vmem>>, vector<128x128xbf16>
    %cst = arith.constant dense<0.000000e+00> : vector<256x128xf32>
    %2 = tpu.matmul %0, %1, %cst {dimension_numbers = #tpu.dot_dimension_numbers<[1], [0], [0], [1], [0, 0, 1, 1], [], []>} : vector<256x128xbf16>, vector<128x128xbf16>, vector<256x128xf32> -> vector<256x128xf32>
    %c0_3 = arith.constant 0 : index
    %c0_4 = arith.constant 0 : index
    %3 = vector.load %arg3[%c0_3, %c0_4] : memref<1x128xf32, #tpu.memory_space<vmem>>, vector<1x128xf32>
    %4 = vector.broadcast %3 : vector<1x128xf32> to vector<256x128xf32>
    %5 = arith.addf %2, %4 : vector<256x128xf32>
    %cst_5 = arith.constant 0.000000e+00 : f32
    %6 = vector.broadcast %cst_5 : f32 to vector<256x128xf32>
    %7 = arith.maximumf %5, %6 : vector<256x128xf32>
    %8 = arith.truncf %7 : vector<256x128xf32> to vector<256x128xbf16>
    %c0_6 = arith.constant 0 : index
    %c0_7 = arith.constant 0 : index
    %9 = vector.load %arg4[%c0_6, %c0_7] : memref<128x128xbf16, #tpu.memory_space<vmem>>, vector<128x128xbf16>
    %cst_8 = arith.constant dense<0.000000e+00> : vector<256x128xf32>
    %10 = tpu.matmul %8, %9, %cst_8 {dimension_numbers = #tpu.dot_dimension_numbers<[1], [0], [0], [1], [0, 0, 1, 1], [], []>} : vector<256x128xbf16>, vector<128x128xbf16>, vector<256x128xf32> -> vector<256x128xf32>
    %c0_9 = arith.constant 0 : index
    %c0_10 = arith.constant 0 : index
    %11 = vector.load %arg5[%c0_9, %c0_10] : memref<1x128xf32, #tpu.memory_space<vmem>>, vector<1x128xf32>
    %12 = vector.broadcast %11 : vector<1x128xf32> to vector<256x128xf32>
    %13 = arith.addf %10, %12 : vector<256x128xf32>
    %cst_11 = arith.constant 0.000000e+00 : f32
    %14 = vector.broadcast %cst_11 : f32 to vector<256x128xf32>
    %15 = arith.maximumf %13, %14 : vector<256x128xf32>
    %16 = arith.truncf %15 : vector<256x128xf32> to vector<256x128xbf16>
    %c0_12 = arith.constant 0 : index
    %c0_13 = arith.constant 0 : index
    %17 = vector.load %arg6[%c0_12, %c0_13] : memref<128x256xbf16, #tpu.memory_space<vmem>>, vector<128x256xbf16>
    %cst_14 = arith.constant dense<0.000000e+00> : vector<256x256xf32>
    %18 = tpu.matmul %16, %17, %cst_14 {dimension_numbers = #tpu.dot_dimension_numbers<[1], [0], [0], [1], [0, 0, 1, 1], [], []>} : vector<256x128xbf16>, vector<128x256xbf16>, vector<256x256xf32> -> vector<256x256xf32>
    %c0_15 = arith.constant 0 : index
    %c0_16 = arith.constant 0 : index
    %19 = vector.load %arg7[%c0_15, %c0_16] : memref<1x256xf32, #tpu.memory_space<vmem>>, vector<1x256xf32>
    %20 = vector.broadcast %19 : vector<1x256xf32> to vector<256x256xf32>
    %21 = arith.addf %18, %20 : vector<256x256xf32>
    %cst_17 = arith.constant 0.000000e+00 : f32
    %22 = vector.broadcast %cst_17 : f32 to vector<256x256xf32>
    %23 = arith.maximumf %21, %22 : vector<256x256xf32>
    %24 = arith.truncf %23 : vector<256x256xf32> to vector<256x256xbf16>
    %c0_18 = arith.constant 0 : index
    %c0_19 = arith.constant 0 : index
    %25 = vector.load %arg8[%c0_18, %c0_19] : memref<256x16xbf16, #tpu.memory_space<vmem>>, vector<256x16xbf16>
    %cst_20 = arith.constant dense<0.000000e+00> : vector<256x16xf32>
    %26 = tpu.matmul %24, %25, %cst_20 {dimension_numbers = #tpu.dot_dimension_numbers<[1], [0], [0], [1], [0, 0, 1, 1], [], []>} : vector<256x256xbf16>, vector<256x16xbf16>, vector<256x16xf32> -> vector<256x16xf32>
    %c0_21 = arith.constant 0 : index
    %c0_22 = arith.constant 0 : index
    %27 = vector.load %arg9[%c0_21, %c0_22] : memref<1x16xf32, #tpu.memory_space<vmem>>, vector<1x16xf32>
    %28 = vector.broadcast %27 : vector<1x16xf32> to vector<256x16xf32>
    %29 = arith.addf %26, %28 : vector<256x16xf32>
    %30 = arith.truncf %29 : vector<256x16xf32> to vector<256x16xbf16>
    %c0_23 = arith.constant 0 : index
    %c0_24 = arith.constant 0 : index
    %31 = vector.load %arg10[%c0_23, %c0_24] : memref<16x256xbf16, #tpu.memory_space<vmem>>, vector<16x256xbf16>
    %cst_25 = arith.constant dense<0.000000e+00> : vector<256x256xf32>
    %32 = tpu.matmul %30, %31, %cst_25 {dimension_numbers = #tpu.dot_dimension_numbers<[1], [0], [0], [1], [0, 0, 1, 1], [], []>} : vector<256x16xbf16>, vector<16x256xbf16>, vector<256x256xf32> -> vector<256x256xf32>
    %c0_26 = arith.constant 0 : index
    %c0_27 = arith.constant 0 : index
    %33 = vector.load %arg11[%c0_26, %c0_27] : memref<1x256xf32, #tpu.memory_space<vmem>>, vector<1x256xf32>
    %34 = vector.broadcast %33 : vector<1x256xf32> to vector<256x256xf32>
    %35 = arith.addf %32, %34 : vector<256x256xf32>
    %cst_28 = arith.constant 0.000000e+00 : f32
    %36 = vector.broadcast %cst_28 : f32 to vector<256x256xf32>
    %37 = arith.maximumf %35, %36 : vector<256x256xf32>
    %38 = arith.truncf %37 : vector<256x256xf32> to vector<256x256xbf16>
    %c0_29 = arith.constant 0 : index
    %c0_30 = arith.constant 0 : index
    %39 = vector.load %arg12[%c0_29, %c0_30] : memref<256x128xbf16, #tpu.memory_space<vmem>>, vector<256x128xbf16>
    %cst_31 = arith.constant dense<0.000000e+00> : vector<256x128xf32>
    %40 = tpu.matmul %38, %39, %cst_31 {dimension_numbers = #tpu.dot_dimension_numbers<[1], [0], [0], [1], [0, 0, 1, 1], [], []>} : vector<256x256xbf16>, vector<256x128xbf16>, vector<256x128xf32> -> vector<256x128xf32>
    %c0_32 = arith.constant 0 : index
    %c0_33 = arith.constant 0 : index
    %41 = vector.load %arg13[%c0_32, %c0_33] : memref<1x128xf32, #tpu.memory_space<vmem>>, vector<1x128xf32>
    %42 = vector.broadcast %41 : vector<1x128xf32> to vector<256x128xf32>
    %43 = arith.addf %40, %42 : vector<256x128xf32>
    %cst_34 = arith.constant 0.000000e+00 : f32
    %44 = vector.broadcast %cst_34 : f32 to vector<256x128xf32>
    %45 = arith.maximumf %43, %44 : vector<256x128xf32>
    %46 = arith.truncf %45 : vector<256x128xf32> to vector<256x128xbf16>
    %c0_35 = arith.constant 0 : index
    %c0_36 = arith.constant 0 : index
    %47 = vector.load %arg14[%c0_35, %c0_36] : memref<128x128xbf16, #tpu.memory_space<vmem>>, vector<128x128xbf16>
    %cst_37 = arith.constant dense<0.000000e+00> : vector<256x128xf32>
    %48 = tpu.matmul %46, %47, %cst_37 {dimension_numbers = #tpu.dot_dimension_numbers<[1], [0], [0], [1], [0, 0, 1, 1], [], []>} : vector<256x128xbf16>, vector<128x128xbf16>, vector<256x128xf32> -> vector<256x128xf32>
    %c0_38 = arith.constant 0 : index
    %c0_39 = arith.constant 0 : index
    %49 = vector.load %arg15[%c0_38, %c0_39] : memref<1x128xf32, #tpu.memory_space<vmem>>, vector<1x128xf32>
    %50 = vector.broadcast %49 : vector<1x128xf32> to vector<256x128xf32>
    %51 = arith.addf %48, %50 : vector<256x128xf32>
    %cst_40 = arith.constant 0.000000e+00 : f32
    %52 = vector.broadcast %cst_40 : f32 to vector<256x128xf32>
    %53 = arith.maximumf %51, %52 : vector<256x128xf32>
    %54 = arith.truncf %53 : vector<256x128xf32> to vector<256x128xbf16>
    %c0_41 = arith.constant 0 : index
    %c0_42 = arith.constant 0 : index
    %55 = vector.load %arg16[%c0_41, %c0_42] : memref<128x128xbf16, #tpu.memory_space<vmem>>, vector<128x128xbf16>
    %cst_43 = arith.constant dense<0.000000e+00> : vector<256x128xf32>
    %56 = tpu.matmul %54, %55, %cst_43 {dimension_numbers = #tpu.dot_dimension_numbers<[1], [0], [0], [1], [0, 0, 1, 1], [], []>} : vector<256x128xbf16>, vector<128x128xbf16>, vector<256x128xf32> -> vector<256x128xf32>
    %c0_44 = arith.constant 0 : index
    %c0_45 = arith.constant 0 : index
    %57 = vector.load %arg17[%c0_44, %c0_45] : memref<1x128xf32, #tpu.memory_space<vmem>>, vector<1x128xf32>
    %58 = vector.broadcast %57 : vector<1x128xf32> to vector<256x128xf32>
    %59 = arith.addf %56, %58 : vector<256x128xf32>
    %c0_46 = arith.constant 0 : index
    %c0_47 = arith.constant 0 : index
    %60 = vector.load %arg18[%c0_46, %c0_47] : memref<256x128xf32, #tpu.memory_space<vmem>>, vector<256x128xf32>
    tpu.vector_store %arg18[%c0_46, %c0_47], %59 {strides = array<i32>} : memref<256x128xf32, #tpu.memory_space<vmem>>, vector<256x128xf32>,
    %c0_48 = arith.constant 0 : index
    %c0_49 = arith.constant 0 : index
    %61 = vector.load %arg19[%c0_48, %c0_49] : memref<256x128xf32, #tpu.memory_space<vmem>>, vector<256x128xf32>
    tpu.vector_store %arg19[%c0_48, %c0_49], %7 {strides = array<i32>} : memref<256x128xf32, #tpu.memory_space<vmem>>, vector<256x128xf32>,
    %c0_50 = arith.constant 0 : index
    %c0_51 = arith.constant 0 : index
    %62 = vector.load %arg20[%c0_50, %c0_51] : memref<256x128xf32, #tpu.memory_space<vmem>>, vector<256x128xf32>
    tpu.vector_store %arg20[%c0_50, %c0_51], %15 {strides = array<i32>} : memref<256x128xf32, #tpu.memory_space<vmem>>, vector<256x128xf32>,
    %c0_52 = arith.constant 0 : index
    %c0_53 = arith.constant 0 : index
    %63 = vector.load %arg21[%c0_52, %c0_53] : memref<256x256xf32, #tpu.memory_space<vmem>>, vector<256x256xf32>
    tpu.vector_store %arg21[%c0_52, %c0_53], %23 {strides = array<i32>} : memref<256x256xf32, #tpu.memory_space<vmem>>, vector<256x256xf32>,
    %c0_54 = arith.constant 0 : index
    %c0_55 = arith.constant 0 : index
    %64 = vector.load %arg22[%c0_54, %c0_55] : memref<256x16xf32, #tpu.memory_space<vmem>>, vector<256x16xf32>
    tpu.vector_store %arg22[%c0_54, %c0_55], %29 {strides = array<i32>} : memref<256x16xf32, #tpu.memory_space<vmem>>, vector<256x16xf32>,
    return
  }
  func.func @transform_0(%arg0: i32) -> (i32, i32) {
    %c0_i32 = arith.constant 0 : i32
    %c0_i32_0 = arith.constant 0 : i32
    return %arg0, %c0_i32 : i32, i32
  }
  func.func @transform_1(%arg0: i32) -> (i32, i32) {
    %c0_i32 = arith.constant 0 : i32
    %c0_i32_0 = arith.constant 0 : i32
    %c0_i32_1 = arith.constant 0 : i32
    return %c0_i32, %c0_i32_0 : i32, i32
  }
  func.func @transform_2(%arg0: i32) -> (i32, i32) {
    %c0_i32 = arith.constant 0 : i32
    %c0_i32_0 = arith.constant 0 : i32
    %c0_i32_1 = arith.constant 0 : i32
    return %c0_i32, %c0_i32_0 : i32, i32
  }
  func.func @transform_3(%arg0: i32) -> (i32, i32) {
    %c0_i32 = arith.constant 0 : i32
    %c0_i32_0 = arith.constant 0 : i32
    %c0_i32_1 = arith.constant 0 : i32
    return %c0_i32, %c0_i32_0 : i32, i32
  }
  func.func @transform_4(%arg0: i32) -> (i32, i32) {
    %c0_i32 = arith.constant 0 : i32
    %c0_i32_0 = arith.constant 0 : i32
    %c0_i32_1 = arith.constant 0 : i32
    return %c0_i32, %c0_i32_0 : i32, i32
  }
  func.func @transform_5(%arg0: i32) -> (i32, i32) {
    %c0_i32 = arith.constant 0 : i32
    %c0_i32_0 = arith.constant 0 : i32
    %c0_i32_1 = arith.constant 0 : i32
    return %c0_i32, %c0_i32_0 : i32, i32
  }
  func.func @transform_6(%arg0: i32) -> (i32, i32) {
    %c0_i32 = arith.constant 0 : i32
    %c0_i32_0 = arith.constant 0 : i32
    %c0_i32_1 = arith.constant 0 : i32
    return %c0_i32, %c0_i32_0 : i32, i32
  }
  func.func @transform_7(%arg0: i32) -> (i32, i32) {
    %c0_i32 = arith.constant 0 : i32
    %c0_i32_0 = arith.constant 0 : i32
    %c0_i32_1 = arith.constant 0 : i32
    return %c0_i32, %c0_i32_0 : i32, i32
  }
  func.func @transform_8(%arg0: i32) -> (i32, i32) {
    %c0_i32 = arith.constant 0 : i32
    %c0_i32_0 = arith.constant 0 : i32
    %c0_i32_1 = arith.constant 0 : i32
    return %c0_i32, %c0_i32_0 : i32, i32
  }
  func.func @transform_9(%arg0: i32) -> (i32, i32) {
    %c0_i32 = arith.constant 0 : i32
    %c0_i32_0 = arith.constant 0 : i32
    %c0_i32_1 = arith.constant 0 : i32
    return %c0_i32, %c0_i32_0 : i32, i32
  }
  func.func @transform_10(%arg0: i32) -> (i32, i32) {
    %c0_i32 = arith.constant 0 : i32
    %c0_i32_0 = arith.constant 0 : i32
    %c0_i32_1 = arith.constant 0 : i32
    return %c0_i32, %c0_i32_0 : i32, i32
  }
  func.func @transform_11(%arg0: i32) -> (i32, i32) {
    %c0_i32 = arith.constant 0 : i32
    %c0_i32_0 = arith.constant 0 : i32
    %c0_i32_1 = arith.constant 0 : i32
    return %c0_i32, %c0_i32_0 : i32, i32
  }
  func.func @transform_12(%arg0: i32) -> (i32, i32) {
    %c0_i32 = arith.constant 0 : i32
    %c0_i32_0 = arith.constant 0 : i32
    %c0_i32_1 = arith.constant 0 : i32
    return %c0_i32, %c0_i32_0 : i32, i32
  }
  func.func @transform_13(%arg0: i32) -> (i32, i32) {
    %c0_i32 = arith.constant 0 : i32
    %c0_i32_0 = arith.constant 0 : i32
    %c0_i32_1 = arith.constant 0 : i32
    return %c0_i32, %c0_i32_0 : i32, i32
  }
  func.func @transform_14(%arg0: i32) -> (i32, i32) {
    %c0_i32 = arith.constant 0 : i32
    %c0_i32_0 = arith.constant 0 : i32
    %c0_i32_1 = arith.constant 0 : i32
    return %c0_i32, %c0_i32_0 : i32, i32
  }
  func.func @transform_15(%arg0: i32) -> (i32, i32) {
    %c0_i32 = arith.constant 0 : i32
    %c0_i32_0 = arith.constant 0 : i32
    %c0_i32_1 = arith.constant 0 : i32
    return %c0_i32, %c0_i32_0 : i32, i32
  }
  func.func @transform_16(%arg0: i32) -> (i32, i32) {
    %c0_i32 = arith.constant 0 : i32
    %c0_i32_0 = arith.constant 0 : i32
    %c0_i32_1 = arith.constant 0 : i32
    return %c0_i32, %c0_i32_0 : i32, i32
  }
  func.func @transform_17(%arg0: i32) -> (i32, i32) {
    %c0_i32 = arith.constant 0 : i32
    %c0_i32_0 = arith.constant 0 : i32
    return %arg0, %c0_i32 : i32, i32
  }
  func.func @transform_18(%arg0: i32) -> (i32, i32) {
    %c0_i32 = arith.constant 0 : i32
    %c0_i32_0 = arith.constant 0 : i32
    return %arg0, %c0_i32 : i32, i32
  }
  func.func @transform_19(%arg0: i32) -> (i32, i32) {
    %c0_i32 = arith.constant 0 : i32
    %c0_i32_0 = arith.constant 0 : i32
    return %arg0, %c0_i32 : i32, i32
  }
  func.func @transform_20(%arg0: i32) -> (i32, i32) {
    %c0_i32 = arith.constant 0 : i32
    %c0_i32_0 = arith.constant 0 : i32
    return %arg0, %c0_i32 : i32, i32
  }
  func.func @transform_21(%arg0: i32) -> (i32, i32) {
    %c0_i32 = arith.constant 0 : i32
    %c0_i32_0 = arith.constant 0 : i32
    return %arg0, %c0_i32 : i32, i32
  }
}

</mosaic_0001>

<llo_original>
// kernel: tpu_custom_call.1
$region0: #{tpu_custom_call.1}
  #allocation0 [shape = 'u32[]', space=smem, size = 0x4, offset = 0x4, fixed_abs, tag = 'smem constant byte address 0x4 - core index']
  #allocation1 [shape = 'u32[72,128]{1,0:T(1,128)}', space=vmem, size = 0x9000, scoped, tag = 'internal scratch']
  %s0 = inlined_call_operand.vmem [shape: bf16[256,128], index: 0, kind: input, shape index: {}]
  %s1 = inlined_call_operand.hbm [shape: bf16[128,128], index: 1, kind: input, shape index: {}]
  %s2 = inlined_call_operand.vmem [shape: f32[1,128], index: 2, kind: input, shape index: {}]
  %s3 = inlined_call_operand.hbm [shape: bf16[128,128], index: 3, kind: input, shape index: {}]
  %s4 = inlined_call_operand.hbm [shape: f32[1,128], index: 4, kind: input, shape index: {}]
  %s5 = inlined_call_operand.hbm [shape: bf16[128,256], index: 5, kind: input, shape index: {}]
  %s6 = inlined_call_operand.vmem [shape: f32[1,256], index: 6, kind: input, shape index: {}]
  %s7 = inlined_call_operand.vmem [shape: bf16[256,16], index: 7, kind: input, shape index: {}]
  %s8 = inlined_call_operand.vmem [shape: f32[1,16], index: 8, kind: input, shape index: {}]
  %s9 = inlined_call_operand.vmem [shape: bf16[16,256], index: 9, kind: input, shape index: {}]
  %s10 = inlined_call_operand.vmem [shape: f32[1,256], index: 10, kind: input, shape index: {}]
  %s11 = inlined_call_operand.hbm [shape: bf16[256,128], index: 11, kind: input, shape index: {}]
  %s12 = inlined_call_operand.vmem [shape: f32[1,128], index: 12, kind: input, shape index: {}]
  %s13 = inlined_call_operand.hbm [shape: bf16[128,128], index: 13, kind: input, shape index: {}]
  %s14 = inlined_call_operand.vmem [shape: f32[1,128], index: 14, kind: input, shape index: {}]
  %s15 = inlined_call_operand.hbm [shape: bf16[128,128], index: 15, kind: input, shape index: {}]
  %s16 = inlined_call_operand.vmem [shape: f32[1,128], index: 16, kind: input, shape index: {}]
  %s17 = inlined_call_operand.hbm [shape: f32[256,128], index: 17, kind: output, shape index: {0}]
  %s18 = inlined_call_operand.hbm [shape: f32[256,128], index: 18, kind: output, shape index: {1}]
  %s19 = inlined_call_operand.hbm [shape: f32[256,128], index: 19, kind: output, shape index: {2}]
  %s20 = inlined_call_operand.hbm [shape: f32[256,256], index: 20, kind: output, shape index: {3}]
  %s21 = inlined_call_operand.vmem [shape: f32[256,16], index: 21, kind: output, shape index: {4}]
  %22 = xla_tuple %s17, %s18, %s19, %s20, %s21
  %s23 = sld [smem:[#allocation0]]
  $region138: #{tpu_custom_call.1} parent=0
    _
  %s25 = ssub.s32 1, %s23
  %s26 = scalar_select 0, %s25, %s23
  $region1: #{tpu_custom_call.1} parent=0
    #allocation2 [shape = 'u8[32768]{0}', space=vmem, size = 0x8000, scoped, tag = 'input window, operand 1, single buffered']
    #allocation3 [shape = 's32[1]{0}', space=sflag, size = 0x4, scoped, tag = 'scoped memory for tpu_custom_call.1']
    #allocation4 [shape = 's32[1]{0}', space=sflag, size = 0x4, scoped, tag = 'scoped memory for tpu_custom_call.1']
    #allocation5 [shape = 'u8[32768]{0}', space=vmem, size = 0x8000, scoped, tag = 'input window, operand 3, single buffered']
    #allocation6 [shape = 's32[1]{0}', space=sflag, size = 0x4, scoped, tag = 'scoped memory for tpu_custom_call.1']
    #allocation7 [shape = 'u8[512]{0}', space=vmem, size = 0x400, scoped, tag = 'input window, operand 4, single buffered']
    #allocation8 [shape = 'u8[65536]{0}', space=vmem, size = 0x10000, scoped, tag = 'input window, operand 5, single buffered']
    #allocation9 [shape = 's32[1]{0}', space=sflag, size = 0x4, scoped, tag = 'scoped memory for tpu_custom_call.1']
    #allocation10 [shape = 'u8[65536]{0}', space=vmem, size = 0x10000, scoped, tag = 'input window, operand 11, single buffered']
    #allocation11 [shape = 'u8[32768]{0}', space=vmem, size = 0x8000, scoped, tag = 'input window, operand 13, single buffered']
    #allocation12 [shape = 's32[1]{0}', space=sflag, size = 0x4, scoped, tag = 'scoped memory for tpu_custom_call.1']
    #allocation13 [shape = 'u8[32768]{0}', space=vmem, size = 0x8000, scoped, tag = 'input window, operand 15, single buffered']
    #allocation14 [shape = 'u8[131072]{0}', space=vmem, size = 0x20000, scoped, tag = 'output window, operand 0, single buffered']
    #allocation15 [shape = 'u8[131072]{0}', space=vmem, size = 0x20000, scoped, tag = 'output window, operand 1, single buffered']
    #allocation16 [shape = 's32[1]{0}', space=sflag, size = 0x4, scoped, tag = 'scoped memory for tpu_custom_call.1']
    #allocation17 [shape = 'u8[131072]{0}', space=vmem, size = 0x20000, scoped, tag = 'output window, operand 2, single buffered']
    #allocation18 [shape = 'u8[262144]{0}', space=vmem, size = 0x40000, scoped, tag = 'output window, operand 3, single buffered']
    #allocation19 [shape = 's32[1]{0}', space=sflag, size = 0x4, scoped, tag = 'scoped memory for tpu_custom_call.1']
    %27 = vsyncpa [#allocation3], 0
    %28 = vsyncpa [#allocation6], 0
    %29 = vsyncpa [#allocation9], 0
    %30 = vsyncpa [#allocation12], 0
    %31 = vsyncpa [#allocation4], 0
    %32 = vsyncpa [#allocation16], 0
    %33 = vsyncpa [#allocation19], 0
    // Predicated region
    $region2: #{tpu_custom_call.1} parent=1 // pred_check
      _
    $region3: #{tpu_custom_call.1} parent=1 // pred_check_branch
      %35 = sbr.rel (0) target = $region5
    $region4: #{tpu_custom_call.1} parent=1 // pred_region
      _
    $region5: #{tpu_custom_call.1} parent=1 // pred_fallthru
      _
    // Predicated region
    $region6: #{tpu_custom_call.1} parent=1 // pred_check
      _
    $region7: #{tpu_custom_call.1} parent=1 // pred_check_branch
      %37 = sbr.rel (0) target = $region9
    $region8: #{tpu_custom_call.1} parent=1 // pred_region
      %39 = vsyncadd [#allocation3], 0
      %s40 = sshll.u32 %s1, 4
      %s41 = int_to_ptr.hbm [resolvable:$true] %s40
      %s42 = sshll.u32 [#allocation2], 4
      %s43 = int_to_ptr.vmem [resolvable:$true] %s42
      %48 = dma.hbm_to_vmem [thread:$0]  %s41, 1024, %s43, [#allocation3], 64, 64, 4
    $region9: #{tpu_custom_call.1} parent=1 // pred_fallthru
      _
    // Predicated region
    $region10: #{tpu_custom_call.1} parent=1 // pred_check
      _
    $region11: #{tpu_custom_call.1} parent=1 // pred_check_branch
      %50 = sbr.rel (0) target = $region13
    $region12: #{tpu_custom_call.1} parent=1 // pred_region
      _
    $region13: #{tpu_custom_call.1} parent=1 // pred_fallthru
      _
    // Predicated region
    $region14: #{tpu_custom_call.1} parent=1 // pred_check
      _
    $region15: #{tpu_custom_call.1} parent=1 // pred_check_branch
      %52 = sbr.rel (0) target = $region17
    $region16: #{tpu_custom_call.1} parent=1 // pred_region
      %54 = vsyncadd [#allocation6], 0
      %s55 = sshll.u32 %s3, 4
      %s56 = int_to_ptr.hbm [resolvable:$true] %s55
      %s57 = sshll.u32 [#allocation5], 4
      %s58 = int_to_ptr.vmem [resolvable:$true] %s57
      %63 = dma.hbm_to_vmem [thread:$0]  %s56, 1024, %s58, [#allocation6], 64, 64, 4
    $region17: #{tpu_custom_call.1} parent=1 // pred_fallthru
      _
    // Predicated region
    $region18: #{tpu_custom_call.1} parent=1 // pred_check
      _
    $region19: #{tpu_custom_call.1} parent=1 // pred_check_branch
      %65 = sbr.rel (0) target = $region21
    $region20: #{tpu_custom_call.1} parent=1 // pred_region
      %67 = vsyncadd [#allocation6], 0
      %s69 = sshll.u32 %s4, 4
      %s70 = int_to_ptr.hbm [resolvable:$true] %s69
      %s71 = sshll.u32 [#allocation7], 4
      %s72 = int_to_ptr.vmem [resolvable:$true] %s71
      %74 = dma.hbm_to_vmem [thread:$0]  %s70, 16, %s72, [#allocation6]
    $region21: #{tpu_custom_call.1} parent=1 // pred_fallthru
      _
    // Predicated region
    $region22: #{tpu_custom_call.1} parent=1 // pred_check
      _
    $region23: #{tpu_custom_call.1} parent=1 // pred_check_branch
      %76 = sbr.rel (0) target = $region25
    $region24: #{tpu_custom_call.1} parent=1 // pred_region
      %78 = vsyncadd [#allocation9], 0
      %s79 = sshll.u32 %s5, 4
      %s80 = int_to_ptr.hbm [resolvable:$true] %s79
      %s81 = sshll.u32 [#allocation8], 4
      %s82 = int_to_ptr.vmem [resolvable:$true] %s81
      %87 = dma.hbm_to_vmem [thread:$0]  %s80, 2048, %s82, [#allocation9], 128, 128, 8
    $region25: #{tpu_custom_call.1} parent=1 // pred_fallthru
      _
    // Predicated region
    $region26: #{tpu_custom_call.1} parent=1 // pred_check
      _
    $region27: #{tpu_custom_call.1} parent=1 // pred_check_branch
      %89 = sbr.rel (0) target = $region29
    $region28: #{tpu_custom_call.1} parent=1 // pred_region
      _
    $region29: #{tpu_custom_call.1} parent=1 // pred_fallthru
      _
    // Predicated region
    $region30: #{tpu_custom_call.1} parent=1 // pred_check
      _
    $region31: #{tpu_custom_call.1} parent=1 // pred_check_branch
      %91 = sbr.rel (0) target = $region33
    $region32: #{tpu_custom_call.1} parent=1 // pred_region
      _
    $region33: #{tpu_custom_call.1} parent=1 // pred_fallthru
      _
    // Predicated region
    $region34: #{tpu_custom_call.1} parent=1 // pred_check
      _
    $region35: #{tpu_custom_call.1} parent=1 // pred_check_branch
      %93 = sbr.rel (0) target = $region37
    $region36: #{tpu_custom_call.1} parent=1 // pred_region
      _
    $region37: #{tpu_custom_call.1} parent=1 // pred_fallthru
      _
    // Predicated region
    $region38: #{tpu_custom_call.1} parent=1 // pred_check
      _
    $region39: #{tpu_custom_call.1} parent=1 // pred_check_branch
      %95 = sbr.rel (0) target = $region41
    $region40: #{tpu_custom_call.1} parent=1 // pred_region
      _
    $region41: #{tpu_custom_call.1} parent=1 // pred_fallthru
      _
    // Predicated region
    $region42: #{tpu_custom_call.1} parent=1 // pred_check
      _
    $region43: #{tpu_custom_call.1} parent=1 // pred_check_branch
      %97 = sbr.rel (0) target = $region45
    $region44: #{tpu_custom_call.1} parent=1 // pred_region
      _
    $region45: #{tpu_custom_call.1} parent=1 // pred_fallthru
      _
    // Predicated region
    $region46: #{tpu_custom_call.1} parent=1 // pred_check
      _
    $region47: #{tpu_custom_call.1} parent=1 // pred_check_branch
      %99 = sbr.rel (0) target = $region49
    $region48: #{tpu_custom_call.1} parent=1 // pred_region
      %101 = vsyncadd [#allocation9], 0
      %s102 = sshll.u32 %s11, 4
      %s103 = int_to_ptr.hbm [resolvable:$true] %s102
      %s104 = sshll.u32 [#allocation10], 4
      %s105 = int_to_ptr.vmem [resolvable:$true] %s104
      %110 = dma.hbm_to_vmem [thread:$0]  %s103, 2048, %s105, [#allocation9], 64, 64, 4
    $region49: #{tpu_custom_call.1} parent=1 // pred_fallthru
      _
    // Predicated region
    $region50: #{tpu_custom_call.1} parent=1 // pred_check
      _
    $region51: #{tpu_custom_call.1} parent=1 // pred_check_branch
      %112 = sbr.rel (0) target = $region53
    $region52: #{tpu_custom_call.1} parent=1 // pred_region
      _
    $region53: #{tpu_custom_call.1} parent=1 // pred_fallthru
      _
    // Predicated region
    $region54: #{tpu_custom_call.1} parent=1 // pred_check
      _
    $region55: #{tpu_custom_call.1} parent=1 // pred_check_branch
      %114 = sbr.rel (0) target = $region57
    $region56: #{tpu_custom_call.1} parent=1 // pred_region
      %116 = vsyncadd [#allocation12], 0
      %s117 = sshll.u32 %s13, 4
      %s118 = int_to_ptr.hbm [resolvable:$true] %s117
      %s119 = sshll.u32 [#allocation11], 4
      %s120 = int_to_ptr.vmem [resolvable:$true] %s119
      %125 = dma.hbm_to_vmem [thread:$0]  %s118, 1024, %s120, [#allocation12], 64, 64, 4
    $region57: #{tpu_custom_call.1} parent=1 // pred_fallthru
      _
    // Predicated region
    $region58: #{tpu_custom_call.1} parent=1 // pred_check
      _
    $region59: #{tpu_custom_call.1} parent=1 // pred_check_branch
      %127 = sbr.rel (0) target = $region61
    $region60: #{tpu_custom_call.1} parent=1 // pred_region
      _
    $region61: #{tpu_custom_call.1} parent=1 // pred_fallthru
      _
    // Predicated region
    $region62: #{tpu_custom_call.1} parent=1 // pred_check
      _
    $region63: #{tpu_custom_call.1} parent=1 // pred_check_branch
      %129 = sbr.rel (0) target = $region65
    $region64: #{tpu_custom_call.1} parent=1 // pred_region
      %131 = vsyncadd [#allocation12], 0
      %s132 = sshll.u32 %s15, 4
      %s133 = int_to_ptr.hbm [resolvable:$true] %s132
      %s134 = sshll.u32 [#allocation13], 4
      %s135 = int_to_ptr.vmem [resolvable:$true] %s134
      %140 = dma.hbm_to_vmem [thread:$0]  %s133, 1024, %s135, [#allocation12], 64, 64, 4
    $region65: #{tpu_custom_call.1} parent=1 // pred_fallthru
      _
    // Predicated region
    $region66: #{tpu_custom_call.1} parent=1 // pred_check
      _
    $region67: #{tpu_custom_call.1} parent=1 // pred_check_branch
      %142 = sbr.rel (0) target = $region69
    $region68: #{tpu_custom_call.1} parent=1 // pred_region
      _
    $region69: #{tpu_custom_call.1} parent=1 // pred_fallthru
      _
    // Predicated region
    $region70: #{tpu_custom_call.1} parent=1 // pred_check
      _
    $region71: #{tpu_custom_call.1} parent=1 // pred_check_branch
      %144 = sbr.rel (0) target = $region73
    $region72: #{tpu_custom_call.1} parent=1 // pred_region
      %146 = dma.done [#allocation3], 1024
    $region73: #{tpu_custom_call.1} parent=1 // pred_fallthru
      _
    // Predicated region
    $region74: #{tpu_custom_call.1} parent=1 // pred_check
      _
    $region75: #{tpu_custom_call.1} parent=1 // pred_check_branch
      %148 = sbr.rel (0) target = $region77
    $region76: #{tpu_custom_call.1} parent=1 // pred_region
      %150 = dma.done [#allocation6], 1024
    $region77: #{tpu_custom_call.1} parent=1 // pred_fallthru
      _
    // Predicated region
    $region78: #{tpu_custom_call.1} parent=1 // pred_check
      _
    $region79: #{tpu_custom_call.1} parent=1 // pred_check_branch
      %152 = sbr.rel (0) target = $region81
    $region80: #{tpu_custom_call.1} parent=1 // pred_region
      %154 = dma.done [#allocation6], 16
    $region81: #{tpu_custom_call.1} parent=1 // pred_fallthru
      _
    // Predicated region
    $region82: #{tpu_custom_call.1} parent=1 // pred_check
      _
    $region83: #{tpu_custom_call.1} parent=1 // pred_check_branch
      %156 = sbr.rel (0) target = $region85
    $region84: #{tpu_custom_call.1} parent=1 // pred_region
      %158 = dma.done [#allocation9], 2048
    $region85: #{tpu_custom_call.1} parent=1 // pred_fallthru
      _
    // Predicated region
    $region86: #{tpu_custom_call.1} parent=1 // pred_check
      _
    $region87: #{tpu_custom_call.1} parent=1 // pred_check_branch
      %160 = sbr.rel (0) target = $region89
    $region88: #{tpu_custom_call.1} parent=1 // pred_region
      %162 = dma.done [#allocation9], 2048
    $region89: #{tpu_custom_call.1} parent=1 // pred_fallthru
      _
    // Predicated region
    $region90: #{tpu_custom_call.1} parent=1 // pred_check
      _
    $region91: #{tpu_custom_call.1} parent=1 // pred_check_branch
      %164 = sbr.rel (0) target = $region93
    $region92: #{tpu_custom_call.1} parent=1 // pred_region
      %166 = dma.done [#allocation12], 1024
    $region93: #{tpu_custom_call.1} parent=1 // pred_fallthru
      _
    // Predicated region
    $region94: #{tpu_custom_call.1} parent=1 // pred_check
      _
    $region95: #{tpu_custom_call.1} parent=1 // pred_check_branch
      %168 = sbr.rel (0) target = $region97
    $region96: #{tpu_custom_call.1} parent=1 // pred_region
      %170 = dma.done [#allocation12], 1024
    $region97: #{tpu_custom_call.1} parent=1 // pred_fallthru
      _
    %v172 = vld [vmem:[%s0] sm:$0xf]
    %v173 = vld [vmem:[%s0 + $0x4] sm:$0xf]
    %v174 = vld [vmem:[%s0 + $0x8] sm:$0xf]
    %v175 = vld [vmem:[%s0 + $0xc] sm:$0xf]
    %v176 = vld [vmem:[%s0 + $0x10] sm:$0xf]
    %v177 = vld [vmem:[%s0 + $0x14] sm:$0xf]
    %v178 = vld [vmem:[%s0 + $0x18] sm:$0xf]
    %v179 = vld [vmem:[%s0 + $0x1c] sm:$0xf]
    %v180 = vld [vmem:[%s0 + $0x20] sm:$0xf]
    %v181 = vld [vmem:[%s0 + $0x24] sm:$0xf]
    %v182 = vld [vmem:[%s0 + $0x28] sm:$0xf]
    %v183 = vld [vmem:[%s0 + $0x2c] sm:$0xf]
    %v184 = vld [vmem:[%s0 + $0x30] sm:$0xf]
    %v185 = vld [vmem:[%s0 + $0x34] sm:$0xf]
    %v186 = vld [vmem:[%s0 + $0x38] sm:$0xf]
    %v187 = vld [vmem:[%s0 + $0x3c] sm:$0xf]
    %v188 = vld [vmem:[%s0 + $0x40] sm:$0xf]
    %v189 = vld [vmem:[%s0 + $0x44] sm:$0xf]
    %v190 = vld [vmem:[%s0 + $0x48] sm:$0xf]
    %v191 = vld [vmem:[%s0 + $0x4c] sm:$0xf]
    %v192 = vld [vmem:[%s0 + $0x50] sm:$0xf]
    %v193 = vld [vmem:[%s0 + $0x54] sm:$0xf]
    %v194 = vld [vmem:[%s0 + $0x58] sm:$0xf]
    %v195 = vld [vmem:[%s0 + $0x5c] sm:$0xf]
    %v196 = vld [vmem:[%s0 + $0x60] sm:$0xf]
    %v197 = vld [vmem:[%s0 + $0x64] sm:$0xf]
    %v198 = vld [vmem:[%s0 + $0x68] sm:$0xf]
    %v199 = vld [vmem:[%s0 + $0x6c] sm:$0xf]
    %v200 = vld [vmem:[%s0 + $0x70] sm:$0xf]
    %v201 = vld [vmem:[%s0 + $0x74] sm:$0xf]
    %v202 = vld [vmem:[%s0 + $0x78] sm:$0xf]
    %v203 = vld [vmem:[%s0 + $0x7c] sm:$0xf]
    %v204 = vld [vmem:[#allocation2] sm:$0xf]
    %v205 = vld [vmem:[#allocation2 + $0x4] sm:$0xf]
    %v206 = vld [vmem:[#allocation2 + $0x8] sm:$0xf]
    %v207 = vld [vmem:[#allocation2 + $0xc] sm:$0xf]
    %v208 = vld [vmem:[#allocation2 + $0x10] sm:$0xf]
    %v209 = vld [vmem:[#allocation2 + $0x14] sm:$0xf]
    %v210 = vld [vmem:[#allocation2 + $0x18] sm:$0xf]
    %v211 = vld [vmem:[#allocation2 + $0x1c] sm:$0xf]
    %v212 = vld [vmem:[#allocation2 + $0x20] sm:$0xf]
    %v213 = vld [vmem:[#allocation2 + $0x24] sm:$0xf]
    %v214 = vld [vmem:[#allocation2 + $0x28] sm:$0xf]
    %v215 = vld [vmem:[#allocation2 + $0x2c] sm:$0xf]
    %v216 = vld [vmem:[#allocation2 + $0x30] sm:$0xf]
    %v217 = vld [vmem:[#allocation2 + $0x34] sm:$0xf]
    %v218 = vld [vmem:[#allocation2 + $0x38] sm:$0xf]
    %v219 = vld [vmem:[#allocation2 + $0x3c] sm:$0xf]
    %v220 = vld [vmem:[%s2] sm:$0x1]
    %v222 = vperm.slane %v220, 0
    %v256 = vunpack.c.l.b16 %v172
    %v257 = vunpack.c.l.b16 %v173
    %v258 = vunpack.c.l.b16 %v174
    %v259 = vunpack.c.l.b16 %v175
    %v260 = vunpack.c.l.b16 %v176
    %v261 = vunpack.c.l.b16 %v177
    %v262 = vunpack.c.l.b16 %v178
    %v263 = vunpack.c.l.b16 %v179
    %v264 = vunpack.c.l.b16 %v180
    %v265 = vunpack.c.l.b16 %v181
    %v266 = vunpack.c.l.b16 %v182
    %v267 = vunpack.c.l.b16 %v183
    %v268 = vunpack.c.l.b16 %v184
    %v269 = vunpack.c.l.b16 %v185
    %v270 = vunpack.c.l.b16 %v186
    %v271 = vunpack.c.l.b16 %v187
    %v272 = vunpack.c.l.b16 %v188
    %v273 = vunpack.c.l.b16 %v189
    %v274 = vunpack.c.l.b16 %v190
    %v275 = vunpack.c.l.b16 %v191
    %v276 = vunpack.c.l.b16 %v192
    %v277 = vunpack.c.l.b16 %v193
    %v278 = vunpack.c.l.b16 %v194
    %v279 = vunpack.c.l.b16 %v195
    %v280 = vunpack.c.l.b16 %v196
    %v281 = vunpack.c.l.b16 %v197
    %v282 = vunpack.c.l.b16 %v198
    %v283 = vunpack.c.l.b16 %v199
    %v284 = vunpack.c.l.b16 %v200
    %v285 = vunpack.c.l.b16 %v201
    %v286 = vunpack.c.l.b16 %v202
    %v287 = vunpack.c.l.b16 %v203
    %v288 = vpack.c.b16 %v257, %v256
    %v289 = vpack.c.b16 %v259, %v258
    %v290 = vpack.c.b16 %v261, %v260
    %v291 = vpack.c.b16 %v263, %v262
    %v292 = vpack.c.b16 %v265, %v264
    %v293 = vpack.c.b16 %v267, %v266
    %v294 = vpack.c.b16 %v269, %v268
    %v295 = vpack.c.b16 %v271, %v270
    %v296 = vpack.c.b16 %v273, %v272
    %v297 = vpack.c.b16 %v275, %v274
    %v298 = vpack.c.b16 %v277, %v276
    %v299 = vpack.c.b16 %v279, %v278
    %v300 = vpack.c.b16 %v281, %v280
    %v301 = vpack.c.b16 %v283, %v282
    %v302 = vpack.c.b16 %v285, %v284
    %v303 = vpack.c.b16 %v287, %v286
    %v336 = vunpack.c.l.b16 %v204
    %v337 = vunpack.c.l.b16 %v205
    %v338 = vunpack.c.l.b16 %v206
    %v339 = vunpack.c.l.b16 %v207
    %v340 = vunpack.c.l.b16 %v208
    %v341 = vunpack.c.l.b16 %v209
    %v342 = vunpack.c.l.b16 %v210
    %v343 = vunpack.c.l.b16 %v211
    %v344 = vunpack.c.l.b16 %v212
    %v345 = vunpack.c.l.b16 %v213
    %v346 = vunpack.c.l.b16 %v214
    %v347 = vunpack.c.l.b16 %v215
    %v348 = vunpack.c.l.b16 %v216
    %v349 = vunpack.c.l.b16 %v217
    %v350 = vunpack.c.l.b16 %v218
    %v351 = vunpack.c.l.b16 %v219
    %v352 = vpack.c.b16 %v337, %v336
    %v353 = vpack.c.b16 %v339, %v338
    %v354 = vpack.c.b16 %v341, %v340
    %v355 = vpack.c.b16 %v343, %v342
    %v356 = vpack.c.b16 %v345, %v344
    %v357 = vpack.c.b16 %v347, %v346
    %v358 = vpack.c.b16 %v349, %v348
    %v359 = vpack.c.b16 %v351, %v350
    %368 = vmatpush.bf16.msra.mxu0 %v359
    %369 = vmatpush.bf16.msra.mxu0 %v358
    %370 = vmatpush.bf16.msra.mxu0 %v357
    %371 = vmatpush.bf16.msra.mxu0 %v356
    %372 = vmatpush.bf16.msra.mxu0 %v355
    %373 = vmatpush.bf16.msra.mxu0 %v354
    %374 = vmatpush.bf16.msra.mxu0 %v353
    %375 = vmatpush.bf16.msra.mxu0 %v352
    %376 = vmatmul.bf16.gmra.mxu0 %v288
    %v377 = vpop.f32.mrf.mxu0
    %v378 = vadd.f32 %v222, %v377
    %v379 = vpop.f32.mrf.mxu0
    %v380 = vadd.f32 %v222, %v379
    %381 = vmatmul.bf16.gmra.mxu0 %v289
    %v382 = vpop.f32.mrf.mxu0
    %v383 = vadd.f32 %v222, %v382
    %v384 = vpop.f32.mrf.mxu0
    %v385 = vadd.f32 %v222, %v384
    %386 = vmatmul.bf16.gmra.mxu0 %v290
    %v387 = vpop.f32.mrf.mxu0
    %v388 = vadd.f32 %v222, %v387
    %v389 = vpop.f32.mrf.mxu0
    %v390 = vadd.f32 %v222, %v389
    %391 = vmatmul.bf16.gmra.mxu0 %v291
    %v392 = vpop.f32.mrf.mxu0
    %v393 = vadd.f32 %v222, %v392
    %v394 = vpop.f32.mrf.mxu0
    %v395 = vadd.f32 %v222, %v394
    %396 = vmatmul.bf16.gmra.mxu0 %v292
    %v397 = vpop.f32.mrf.mxu0
    %v398 = vadd.f32 %v222, %v397
    %v399 = vpop.f32.mrf.mxu0
    %v400 = vadd.f32 %v222, %v399
    %401 = vmatmul.bf16.gmra.mxu0 %v293
    %v402 = vpop.f32.mrf.mxu0
    %v403 = vadd.f32 %v222, %v402
    %v404 = vpop.f32.mrf.mxu0
    %v405 = vadd.f32 %v222, %v404
    %406 = vmatmul.bf16.gmra.mxu0 %v294
    %v407 = vpop.f32.mrf.mxu0
    %v408 = vadd.f32 %v222, %v407
    %v409 = vpop.f32.mrf.mxu0
    %v410 = vadd.f32 %v222, %v409
    %411 = vmatmul.bf16.gmra.mxu0 %v295
    %v412 = vpop.f32.mrf.mxu0
    %v413 = vadd.f32 %v222, %v412
    %v414 = vpop.f32.mrf.mxu0
    %v415 = vadd.f32 %v222, %v414
    %416 = vmatmul.bf16.gmra.mxu0 %v296
    %v417 = vpop.f32.mrf.mxu0
    %v418 = vadd.f32 %v222, %v417
    %v419 = vpop.f32.mrf.mxu0
    %v420 = vadd.f32 %v222, %v419
    %421 = vmatmul.bf16.gmra.mxu0 %v297
    %v422 = vpop.f32.mrf.mxu0
    %v423 = vadd.f32 %v222, %v422
    %v424 = vpop.f32.mrf.mxu0
    %v425 = vadd.f32 %v222, %v424
    %426 = vmatmul.bf16.gmra.mxu0 %v298
    %v427 = vpop.f32.mrf.mxu0
    %v428 = vadd.f32 %v222, %v427
    %v429 = vpop.f32.mrf.mxu0
    %v430 = vadd.f32 %v222, %v429
    %431 = vmatmul.bf16.gmra.mxu0 %v299
    %v432 = vpop.f32.mrf.mxu0
    %v433 = vadd.f32 %v222, %v432
    %v434 = vpop.f32.mrf.mxu0
    %v435 = vadd.f32 %v222, %v434
    %436 = vmatmul.bf16.gmra.mxu0 %v300
    %v437 = vpop.f32.mrf.mxu0
    %v438 = vadd.f32 %v222, %v437
    %v439 = vpop.f32.mrf.mxu0
    %v440 = vadd.f32 %v222, %v439
    %441 = vmatmul.bf16.gmra.mxu0 %v301
    %v442 = vpop.f32.mrf.mxu0
    %v443 = vadd.f32 %v222, %v442
    %v444 = vpop.f32.mrf.mxu0
    %v445 = vadd.f32 %v222, %v444
    %446 = vmatmul.bf16.gmra.mxu0 %v302
    %v447 = vpop.f32.mrf.mxu0
    %v448 = vadd.f32 %v222, %v447
    %v449 = vpop.f32.mrf.mxu0
    %v450 = vadd.f32 %v222, %v449
    %451 = vmatmul.bf16.gmra.mxu0 %v303
    %v452 = vpop.f32.mrf.mxu0
    %v453 = vadd.f32 %v222, %v452
    %v454 = vpop.f32.mrf.mxu0
    %v455 = vadd.f32 %v222, %v454
    %456 = vdwg.mxu0
    %v457 = vmax.f32 %v378, 0.0
    %v458 = vmax.f32 %v380, 0.0
    %v459 = vmax.f32 %v383, 0.0
    %v460 = vmax.f32 %v385, 0.0
    %v461 = vmax.f32 %v388, 0.0
    %v462 = vmax.f32 %v390, 0.0
    %v463 = vmax.f32 %v393, 0.0
    %v464 = vmax.f32 %v395, 0.0
    %v465 = vmax.f32 %v398, 0.0
    %v466 = vmax.f32 %v400, 0.0
    %v467 = vmax.f32 %v403, 0.0
    %v468 = vmax.f32 %v405, 0.0
    %v469 = vmax.f32 %v408, 0.0
    %v470 = vmax.f32 %v410, 0.0
    %v471 = vmax.f32 %v413, 0.0
    %v472 = vmax.f32 %v415, 0.0
    %v473 = vmax.f32 %v418, 0.0
    %v474 = vmax.f32 %v420, 0.0
    %v475 = vmax.f32 %v423, 0.0
    %v476 = vmax.f32 %v425, 0.0
    %v477 = vmax.f32 %v428, 0.0
    %v478 = vmax.f32 %v430, 0.0
    %v479 = vmax.f32 %v433, 0.0
    %v480 = vmax.f32 %v435, 0.0
    %v481 = vmax.f32 %v438, 0.0
    %v482 = vmax.f32 %v440, 0.0
    %v483 = vmax.f32 %v443, 0.0
    %v484 = vmax.f32 %v445, 0.0
    %v485 = vmax.f32 %v448, 0.0
    %v486 = vmax.f32 %v450, 0.0
    %v487 = vmax.f32 %v453, 0.0
    %v488 = vmax.f32 %v455, 0.0
    %v489 = vpack.c.bf16 %v458, %v457
    %v490 = vpack.c.bf16 %v460, %v459
    %v491 = vpack.c.bf16 %v462, %v461
    %v492 = vpack.c.bf16 %v464, %v463
    %v493 = vpack.c.bf16 %v466, %v465
    %v494 = vpack.c.bf16 %v468, %v467
    %v495 = vpack.c.bf16 %v470, %v469
    %v496 = vpack.c.bf16 %v472, %v471
    %v497 = vpack.c.bf16 %v474, %v473
    %v498 = vpack.c.bf16 %v476, %v475
    %v499 = vpack.c.bf16 %v478, %v477
    %v500 = vpack.c.bf16 %v480, %v479
    %v501 = vpack.c.bf16 %v482, %v481
    %v502 = vpack.c.bf16 %v484, %v483
    %v503 = vpack.c.bf16 %v486, %v485
    %v504 = vpack.c.bf16 %v488, %v487
    %v505 = vld [vmem:[#allocation5] sm:$0xf]
    %v506 = vld [vmem:[#allocation5 + $0x4] sm:$0xf]
    %v507 = vld [vmem:[#allocation5 + $0x8] sm:$0xf]
    %v508 = vld [vmem:[#allocation5 + $0xc] sm:$0xf]
    %v509 = vld [vmem:[#allocation5 + $0x10] sm:$0xf]
    %v510 = vld [vmem:[#allocation5 + $0x14] sm:$0xf]
    %v511 = vld [vmem:[#allocation5 + $0x18] sm:$0xf]
    %v512 = vld [vmem:[#allocation5 + $0x1c] sm:$0xf]
    %v513 = vld [vmem:[#allocation5 + $0x20] sm:$0xf]
    %v514 = vld [vmem:[#allocation5 + $0x24] sm:$0xf]
    %v515 = vld [vmem:[#allocation5 + $0x28] sm:$0xf]
    %v516 = vld [vmem:[#allocation5 + $0x2c] sm:$0xf]
    %v517 = vld [vmem:[#allocation5 + $0x30] sm:$0xf]
    %v518 = vld [vmem:[#allocation5 + $0x34] sm:$0xf]
    %v519 = vld [vmem:[#allocation5 + $0x38] sm:$0xf]
    %v520 = vld [vmem:[#allocation5 + $0x3c] sm:$0xf]
    %v521 = vld [vmem:[#allocation7] sm:$0x1]
    %v523 = vperm.slane %v521, 0
    %v541 = vunpack.c.l.b16 %v505
    %v542 = vunpack.c.l.b16 %v506
    %v543 = vunpack.c.l.b16 %v507
    %v544 = vunpack.c.l.b16 %v508
    %v545 = vunpack.c.l.b16 %v509
    %v546 = vunpack.c.l.b16 %v510
    %v547 = vunpack.c.l.b16 %v511
    %v548 = vunpack.c.l.b16 %v512
    %v549 = vunpack.c.l.b16 %v513
    %v550 = vunpack.c.l.b16 %v514
    %v551 = vunpack.c.l.b16 %v515
    %v552 = vunpack.c.l.b16 %v516
    %v553 = vunpack.c.l.b16 %v517
    %v554 = vunpack.c.l.b16 %v518
    %v555 = vunpack.c.l.b16 %v519
    %v556 = vunpack.c.l.b16 %v520
    %v557 = vpack.c.b16 %v542, %v541
    %v558 = vpack.c.b16 %v544, %v543
    %v559 = vpack.c.b16 %v546, %v545
    %v560 = vpack.c.b16 %v548, %v547
    %v561 = vpack.c.b16 %v550, %v549
    %v562 = vpack.c.b16 %v552, %v551
    %v563 = vpack.c.b16 %v554, %v553
    %v564 = vpack.c.b16 %v556, %v555
    %573 = vmatpush.bf16.msra.mxu0 %v564
    %574 = vmatpush.bf16.msra.mxu0 %v563
    %575 = vmatpush.bf16.msra.mxu0 %v562
    %576 = vmatpush.bf16.msra.mxu0 %v561
    %577 = vmatpush.bf16.msra.mxu0 %v560
    %578 = vmatpush.bf16.msra.mxu0 %v559
    %579 = vmatpush.bf16.msra.mxu0 %v558
    %580 = vmatpush.bf16.msra.mxu0 %v557
    %581 = vmatmul.bf16.gmra.mxu0 %v489
    %v582 = vpop.f32.mrf.mxu0
    %v583 = vadd.f32 %v523, %v582
    %v584 = vpop.f32.mrf.mxu0
    %v585 = vadd.f32 %v523, %v584
    %586 = vmatmul.bf16.gmra.mxu0 %v490
    %v587 = vpop.f32.mrf.mxu0
    %v588 = vadd.f32 %v523, %v587
    %v589 = vpop.f32.mrf.mxu0
    %v590 = vadd.f32 %v523, %v589
    %591 = vmatmul.bf16.gmra.mxu0 %v491
    %v592 = vpop.f32.mrf.mxu0
    %v593 = vadd.f32 %v523, %v592
    %v594 = vpop.f32.mrf.mxu0
    %v595 = vadd.f32 %v523, %v594
    %596 = vmatmul.bf16.gmra.mxu0 %v492
    %v597 = vpop.f32.mrf.mxu0
    %v598 = vadd.f32 %v523, %v597
    %v599 = vpop.f32.mrf.mxu0
    %v600 = vadd.f32 %v523, %v599
    %601 = vmatmul.bf16.gmra.mxu0 %v493
    %v602 = vpop.f32.mrf.mxu0
    %v603 = vadd.f32 %v523, %v602
    %v604 = vpop.f32.mrf.mxu0
    %v605 = vadd.f32 %v523, %v604
    %606 = vmatmul.bf16.gmra.mxu0 %v494
    %v607 = vpop.f32.mrf.mxu0
    %v608 = vadd.f32 %v523, %v607
    %v609 = vpop.f32.mrf.mxu0
    %v610 = vadd.f32 %v523, %v609
    %611 = vmatmul.bf16.gmra.mxu0 %v495
    %v612 = vpop.f32.mrf.mxu0
    %v613 = vadd.f32 %v523, %v612
    %v614 = vpop.f32.mrf.mxu0
    %v615 = vadd.f32 %v523, %v614
    %616 = vmatmul.bf16.gmra.mxu0 %v496
    %v617 = vpop.f32.mrf.mxu0
    %v618 = vadd.f32 %v523, %v617
    %v619 = vpop.f32.mrf.mxu0
    %v620 = vadd.f32 %v523, %v619
    %621 = vmatmul.bf16.gmra.mxu0 %v497
    %v622 = vpop.f32.mrf.mxu0
    %v623 = vadd.f32 %v523, %v622
    %v624 = vpop.f32.mrf.mxu0
    %v625 = vadd.f32 %v523, %v624
    %626 = vmatmul.bf16.gmra.mxu0 %v498
    %v627 = vpop.f32.mrf.mxu0
    %v628 = vadd.f32 %v523, %v627
    %v629 = vpop.f32.mrf.mxu0
    %v630 = vadd.f32 %v523, %v629
    %631 = vmatmul.bf16.gmra.mxu0 %v499
    %v632 = vpop.f32.mrf.mxu0
    %v633 = vadd.f32 %v523, %v632
    %v634 = vpop.f32.mrf.mxu0
    %v635 = vadd.f32 %v523, %v634
    %636 = vmatmul.bf16.gmra.mxu0 %v500
    %v637 = vpop.f32.mrf.mxu0
    %v638 = vadd.f32 %v523, %v637
    %v639 = vpop.f32.mrf.mxu0
    %v640 = vadd.f32 %v523, %v639
    %641 = vmatmul.bf16.gmra.mxu0 %v501
    %v642 = vpop.f32.mrf.mxu0
    %v643 = vadd.f32 %v523, %v642
    %v644 = vpop.f32.mrf.mxu0
    %v645 = vadd.f32 %v523, %v644
    %646 = vmatmul.bf16.gmra.mxu0 %v502
    %v647 = vpop.f32.mrf.mxu0
    %v648 = vadd.f32 %v523, %v647
    %v649 = vpop.f32.mrf.mxu0
    %v650 = vadd.f32 %v523, %v649
    %651 = vmatmul.bf16.gmra.mxu0 %v503
    %v652 = vpop.f32.mrf.mxu0
    %v653 = vadd.f32 %v523, %v652
    %v654 = vpop.f32.mrf.mxu0
    %v655 = vadd.f32 %v523, %v654
    %656 = vmatmul.bf16.gmra.mxu0 %v504
    %v657 = vpop.f32.mrf.mxu0
    %v658 = vadd.f32 %v523, %v657
    %v659 = vpop.f32.mrf.mxu0
    %v660 = vadd.f32 %v523, %v659
    %661 = vdwg.mxu0
    %v662 = vmax.f32 %v583, 0.0
    %v663 = vmax.f32 %v585, 0.0
    %v664 = vmax.f32 %v588, 0.0
    %v665 = vmax.f32 %v590, 0.0
    %v666 = vmax.f32 %v593, 0.0
    %v667 = vmax.f32 %v595, 0.0
    %v668 = vmax.f32 %v598, 0.0
    %v669 = vmax.f32 %v600, 0.0
    %v670 = vmax.f32 %v603, 0.0
    %v671 = vmax.f32 %v605, 0.0
    %v672 = vmax.f32 %v608, 0.0
    %v673 = vmax.f32 %v610, 0.0
    %v674 = vmax.f32 %v613, 0.0
    %v675 = vmax.f32 %v615, 0.0
    %v676 = vmax.f32 %v618, 0.0
    %v677 = vmax.f32 %v620, 0.0
    %v678 = vmax.f32 %v623, 0.0
    %v679 = vmax.f32 %v625, 0.0
    %v680 = vmax.f32 %v628, 0.0
    %v681 = vmax.f32 %v630, 0.0
    %v682 = vmax.f32 %v633, 0.0
    %v683 = vmax.f32 %v635, 0.0
    %v684 = vmax.f32 %v638, 0.0
    %v685 = vmax.f32 %v640, 0.0
    %v686 = vmax.f32 %v643, 0.0
    %v687 = vmax.f32 %v645, 0.0
    %v688 = vmax.f32 %v648, 0.0
    %v689 = vmax.f32 %v650, 0.0
    %v690 = vmax.f32 %v653, 0.0
    %v691 = vmax.f32 %v655, 0.0
    %v692 = vmax.f32 %v658, 0.0
    %v693 = vmax.f32 %v660, 0.0
    %v694 = vpack.c.bf16 %v663, %v662
    %v695 = vpack.c.bf16 %v665, %v664
    %v696 = vpack.c.bf16 %v667, %v666
    %v697 = vpack.c.bf16 %v669, %v668
    %v698 = vpack.c.bf16 %v671, %v670
    %v699 = vpack.c.bf16 %v673, %v672
    %v700 = vpack.c.bf16 %v675, %v674
    %v701 = vpack.c.bf16 %v677, %v676
    %v702 = vpack.c.bf16 %v679, %v678
    %v703 = vpack.c.bf16 %v681, %v680
    %v704 = vpack.c.bf16 %v683, %v682
    %v705 = vpack.c.bf16 %v685, %v684
    %v706 = vpack.c.bf16 %v687, %v686
    %v707 = vpack.c.bf16 %v689, %v688
    %v708 = vpack.c.bf16 %v691, %v690
    %v709 = vpack.c.bf16 %v693, %v692
    %v710 = vld [vmem:[#allocation8] sm:$0xff]
    %v711 = vld [vmem:[#allocation8 + $0x8] sm:$0xff]
    %v712 = vld [vmem:[#allocation8 + $0x10] sm:$0xff]
    %v713 = vld [vmem:[#allocation8 + $0x18] sm:$0xff]
    %v714 = vld [vmem:[#allocation8 + $0x20] sm:$0xff]
    %v715 = vld [vmem:[#allocation8 + $0x28] sm:$0xff]
    %v716 = vld [vmem:[#allocation8 + $0x30] sm:$0xff]
    %v717 = vld [vmem:[#allocation8 + $0x38] sm:$0xff]
    %v718 = vld [vmem:[#allocation8 + $0x40] sm:$0xff]
    %v719 = vld [vmem:[#allocation8 + $0x48] sm:$0xff]
    %v720 = vld [vmem:[#allocation8 + $0x50] sm:$0xff]
    %v721 = vld [vmem:[#allocation8 + $0x58] sm:$0xff]
    %v722 = vld [vmem:[#allocation8 + $0x60] sm:$0xff]
    %v723 = vld [vmem:[#allocation8 + $0x68] sm:$0xff]
    %v724 = vld [vmem:[#allocation8 + $0x70] sm:$0xff]
    %v725 = vld [vmem:[#allocation8 + $0x78] sm:$0xff]
    %v726 = vld [vmem:[%s6] sm:$0x3]
    %v728 = vperm.slane %v726, 0
    %v729 = vperm.slane %v726, 1
    %v748 = vunpack.c.l.b16 %v710
    %v749 = vunpack.c.h.b16 %v710
    %v750 = vunpack.c.l.b16 %v711
    %v751 = vunpack.c.h.b16 %v711
    %v752 = vunpack.c.l.b16 %v712
    %v753 = vunpack.c.h.b16 %v712
    %v754 = vunpack.c.l.b16 %v713
    %v755 = vunpack.c.h.b16 %v713
    %v756 = vunpack.c.l.b16 %v714
    %v757 = vunpack.c.h.b16 %v714
    %v758 = vunpack.c.l.b16 %v715
    %v759 = vunpack.c.h.b16 %v715
    %v760 = vunpack.c.l.b16 %v716
    %v761 = vunpack.c.h.b16 %v716
    %v762 = vunpack.c.l.b16 %v717
    %v763 = vunpack.c.h.b16 %v717
    %v764 = vunpack.c.l.b16 %v718
    %v765 = vunpack.c.h.b16 %v718
    %v766 = vunpack.c.l.b16 %v719
    %v767 = vunpack.c.h.b16 %v719
    %v768 = vunpack.c.l.b16 %v720
    %v769 = vunpack.c.h.b16 %v720
    %v770 = vunpack.c.l.b16 %v721
    %v771 = vunpack.c.h.b16 %v721
    %v772 = vunpack.c.l.b16 %v722
    %v773 = vunpack.c.h.b16 %v722
    %v774 = vunpack.c.l.b16 %v723
    %v775 = vunpack.c.h.b16 %v723
    %v776 = vunpack.c.l.b16 %v724
    %v777 = vunpack.c.h.b16 %v724
    %v778 = vunpack.c.l.b16 %v725
    %v779 = vunpack.c.h.b16 %v725
    %v780 = vpack.c.b16 %v750, %v748
    %v781 = vpack.c.b16 %v751, %v749
    %v782 = vpack.c.b16 %v754, %v752
    %v783 = vpack.c.b16 %v755, %v753
    %v784 = vpack.c.b16 %v758, %v756
    %v785 = vpack.c.b16 %v759, %v757
    %v786 = vpack.c.b16 %v762, %v760
    %v787 = vpack.c.b16 %v763, %v761
    %v788 = vpack.c.b16 %v766, %v764
    %v789 = vpack.c.b16 %v767, %v765
    %v790 = vpack.c.b16 %v770, %v768
    %v791 = vpack.c.b16 %v771, %v769
    %v792 = vpack.c.b16 %v774, %v772
    %v793 = vpack.c.b16 %v775, %v773
    %v794 = vpack.c.b16 %v778, %v776
    %v795 = vpack.c.b16 %v779, %v777
    %812 = vmatpush.bf16.msra.mxu0 %v794
    %813 = vmatpush.bf16.msra.mxu0 %v792
    %814 = vmatpush.bf16.msra.mxu0 %v790
    %815 = vmatpush.bf16.msra.mxu0 %v788
    %816 = vmatpush.bf16.msra.mxu0 %v786
    %817 = vmatpush.bf16.msra.mxu0 %v784
    %818 = vmatpush.bf16.msra.mxu0 %v782
    %819 = vmatpush.bf16.msra.mxu0 %v780
    %820 = vmatmul.bf16.gmra.mxu0 %v694
    %v821 = vpop.f32.mrf.mxu0
    %v822 = vadd.f32 %v728, %v821
    %v823 = vpop.f32.mrf.mxu0
    %v824 = vadd.f32 %v728, %v823
    %825 = vmatmul.bf16.gmra.mxu0 %v695
    %v826 = vpop.f32.mrf.mxu0
    %v827 = vadd.f32 %v728, %v826
    %v828 = vpop.f32.mrf.mxu0
    %v829 = vadd.f32 %v728, %v828
    %830 = vmatmul.bf16.gmra.mxu0 %v696
    %v831 = vpop.f32.mrf.mxu0
    %v832 = vadd.f32 %v728, %v831
    %v833 = vpop.f32.mrf.mxu0
    %v834 = vadd.f32 %v728, %v833
    %835 = vmatmul.bf16.gmra.mxu0 %v697
    %v836 = vpop.f32.mrf.mxu0
    %v837 = vadd.f32 %v728, %v836
    %v838 = vpop.f32.mrf.mxu0
    %v839 = vadd.f32 %v728, %v838
    %840 = vmatmul.bf16.gmra.mxu0 %v698
    %v841 = vpop.f32.mrf.mxu0
    %v842 = vadd.f32 %v728, %v841
    %v843 = vpop.f32.mrf.mxu0
    %v844 = vadd.f32 %v728, %v843
    %845 = vmatmul.bf16.gmra.mxu0 %v699
    %v846 = vpop.f32.mrf.mxu0
    %v847 = vadd.f32 %v728, %v846
    %v848 = vpop.f32.mrf.mxu0
    %v849 = vadd.f32 %v728, %v848
    %850 = vmatmul.bf16.gmra.mxu0 %v700
    %v851 = vpop.f32.mrf.mxu0
    %v852 = vadd.f32 %v728, %v851
    %v853 = vpop.f32.mrf.mxu0
    %v854 = vadd.f32 %v728, %v853
    %855 = vmatmul.bf16.gmra.mxu0 %v701
    %v856 = vpop.f32.mrf.mxu0
    %v857 = vadd.f32 %v728, %v856
    %v858 = vpop.f32.mrf.mxu0
    %v859 = vadd.f32 %v728, %v858
    %860 = vmatmul.bf16.gmra.mxu0 %v702
    %v861 = vpop.f32.mrf.mxu0
    %v862 = vadd.f32 %v728, %v861
    %v863 = vpop.f32.mrf.mxu0
    %v864 = vadd.f32 %v728, %v863
    %865 = vmatmul.bf16.gmra.mxu0 %v703
    %v866 = vpop.f32.mrf.mxu0
    %v867 = vadd.f32 %v728, %v866
    %v868 = vpop.f32.mrf.mxu0
    %v869 = vadd.f32 %v728, %v868
    %870 = vmatmul.bf16.gmra.mxu0 %v704
    %v871 = vpop.f32.mrf.mxu0
    %v872 = vadd.f32 %v728, %v871
    %v873 = vpop.f32.mrf.mxu0
    %v874 = vadd.f32 %v728, %v873
    %875 = vmatmul.bf16.gmra.mxu0 %v705
    %v876 = vpop.f32.mrf.mxu0
    %v877 = vadd.f32 %v728, %v876
    %v878 = vpop.f32.mrf.mxu0
    %v879 = vadd.f32 %v728, %v878
    %880 = vmatmul.bf16.gmra.mxu0 %v706
    %v881 = vpop.f32.mrf.mxu0
    %v882 = vadd.f32 %v728, %v881
    %v883 = vpop.f32.mrf.mxu0
    %v884 = vadd.f32 %v728, %v883
    %885 = vmatmul.bf16.gmra.mxu0 %v707
    %v886 = vpop.f32.mrf.mxu0
    %v887 = vadd.f32 %v728, %v886
    %v888 = vpop.f32.mrf.mxu0
    %v889 = vadd.f32 %v728, %v888
    %890 = vmatmul.bf16.gmra.mxu0 %v708
    %v891 = vpop.f32.mrf.mxu0
    %v892 = vadd.f32 %v728, %v891
    %v893 = vpop.f32.mrf.mxu0
    %v894 = vadd.f32 %v728, %v893
    %895 = vmatmul.bf16.gmra.mxu0 %v709
    %v896 = vpop.f32.mrf.mxu0
    %v897 = vadd.f32 %v728, %v896
    %v898 = vpop.f32.mrf.mxu0
    %v899 = vadd.f32 %v728, %v898
    %900 = vdwg.mxu0
    %901 = vmatpush.bf16.msra.mxu0 %v795
    %902 = vmatpush.bf16.msra.mxu0 %v793
    %903 = vmatpush.bf16.msra.mxu0 %v791
    %904 = vmatpush.bf16.msra.mxu0 %v789
    %905 = vmatpush.bf16.msra.mxu0 %v787
    %906 = vmatpush.bf16.msra.mxu0 %v785
    %907 = vmatpush.bf16.msra.mxu0 %v783
    %908 = vmatpush.bf16.msra.mxu0 %v781
    %909 = vmatmul.bf16.gmra.mxu0 %v694
    %v910 = vpop.f32.mrf.mxu0
    %v911 = vadd.f32 %v729, %v910
    %v912 = vpop.f32.mrf.mxu0
    %v913 = vadd.f32 %v729, %v912
    %914 = vmatmul.bf16.gmra.mxu0 %v695
    %v915 = vpop.f32.mrf.mxu0
    %v916 = vadd.f32 %v729, %v915
    %v917 = vpop.f32.mrf.mxu0
    %v918 = vadd.f32 %v729, %v917
    %919 = vmatmul.bf16.gmra.mxu0 %v696
    %v920 = vpop.f32.mrf.mxu0
    %v921 = vadd.f32 %v729, %v920
    %v922 = vpop.f32.mrf.mxu0
    %v923 = vadd.f32 %v729, %v922
    %924 = vmatmul.bf16.gmra.mxu0 %v697
    %v925 = vpop.f32.mrf.mxu0
    %v926 = vadd.f32 %v729, %v925
    %v927 = vpop.f32.mrf.mxu0
    %v928 = vadd.f32 %v729, %v927
    %929 = vmatmul.bf16.gmra.mxu0 %v698
    %v930 = vpop.f32.mrf.mxu0
    %v931 = vadd.f32 %v729, %v930
    %v932 = vpop.f32.mrf.mxu0
    %v933 = vadd.f32 %v729, %v932
    %934 = vmatmul.bf16.gmra.mxu0 %v699
    %v935 = vpop.f32.mrf.mxu0
    %v936 = vadd.f32 %v729, %v935
    %v937 = vpop.f32.mrf.mxu0
    %v938 = vadd.f32 %v729, %v937
    %939 = vmatmul.bf16.gmra.mxu0 %v700
    %v940 = vpop.f32.mrf.mxu0
    %v941 = vadd.f32 %v729, %v940
    %v942 = vpop.f32.mrf.mxu0
    %v943 = vadd.f32 %v729, %v942
    %944 = vmatmul.bf16.gmra.mxu0 %v701
    %v945 = vpop.f32.mrf.mxu0
    %v946 = vadd.f32 %v729, %v945
    %v947 = vpop.f32.mrf.mxu0
    %v948 = vadd.f32 %v729, %v947
    %949 = vmatmul.bf16.gmra.mxu0 %v702
    %v950 = vpop.f32.mrf.mxu0
    %v951 = vadd.f32 %v729, %v950
    %v952 = vpop.f32.mrf.mxu0
    %v953 = vadd.f32 %v729, %v952
    %954 = vmatmul.bf16.gmra.mxu0 %v703
    %v955 = vpop.f32.mrf.mxu0
    %v956 = vadd.f32 %v729, %v955
    %v957 = vpop.f32.mrf.mxu0
    %v958 = vadd.f32 %v729, %v957
    %959 = vmatmul.bf16.gmra.mxu0 %v704
    %v960 = vpop.f32.mrf.mxu0
    %v961 = vadd.f32 %v729, %v960
    %v962 = vpop.f32.mrf.mxu0
    %v963 = vadd.f32 %v729, %v962
    %964 = vmatmul.bf16.gmra.mxu0 %v705
    %v965 = vpop.f32.mrf.mxu0
    %v966 = vadd.f32 %v729, %v965
    %v967 = vpop.f32.mrf.mxu0
    %v968 = vadd.f32 %v729, %v967
    %969 = vmatmul.bf16.gmra.mxu0 %v706
    %v970 = vpop.f32.mrf.mxu0
    %v971 = vadd.f32 %v729, %v970
    %v972 = vpop.f32.mrf.mxu0
    %v973 = vadd.f32 %v729, %v972
    %974 = vmatmul.bf16.gmra.mxu0 %v707
    %v975 = vpop.f32.mrf.mxu0
    %v976 = vadd.f32 %v729, %v975
    %v977 = vpop.f32.mrf.mxu0
    %v978 = vadd.f32 %v729, %v977
    %979 = vmatmul.bf16.gmra.mxu0 %v708
    %v980 = vpop.f32.mrf.mxu0
    %v981 = vadd.f32 %v729, %v980
    %v982 = vpop.f32.mrf.mxu0
    %v983 = vadd.f32 %v729, %v982
    %984 = vmatmul.bf16.gmra.mxu0 %v709
    %v985 = vpop.f32.mrf.mxu0
    %v986 = vadd.f32 %v729, %v985
    %v987 = vpop.f32.mrf.mxu0
    %v988 = vadd.f32 %v729, %v987
    %989 = vdwg.mxu0
    %v990 = vmax.f32 %v822, 0.0
    %v991 = vmax.f32 %v911, 0.0
    %v992 = vmax.f32 %v824, 0.0
    %v993 = vmax.f32 %v913, 0.0
    %v994 = vmax.f32 %v827, 0.0
    %v995 = vmax.f32 %v916, 0.0
    %v996 = vmax.f32 %v829, 0.0
    %v997 = vmax.f32 %v918, 0.0
    %v998 = vmax.f32 %v832, 0.0
    %v999 = vmax.f32 %v921, 0.0
    %v1000 = vmax.f32 %v834, 0.0
    %v1001 = vmax.f32 %v923, 0.0
    %v1002 = vmax.f32 %v837, 0.0
    %v1003 = vmax.f32 %v926, 0.0
    %v1004 = vmax.f32 %v839, 0.0
    %v1005 = vmax.f32 %v928, 0.0
    %v1006 = vmax.f32 %v842, 0.0
    %v1007 = vmax.f32 %v931, 0.0
    %v1008 = vmax.f32 %v844, 0.0
    %v1009 = vmax.f32 %v933, 0.0
    %v1010 = vmax.f32 %v847, 0.0
    %v1011 = vmax.f32 %v936, 0.0
    %v1012 = vmax.f32 %v849, 0.0
    %v1013 = vmax.f32 %v938, 0.0
    %v1014 = vmax.f32 %v852, 0.0
    %v1015 = vmax.f32 %v941, 0.0
    %v1016 = vmax.f32 %v854, 0.0
    %v1017 = vmax.f32 %v943, 0.0
    %v1018 = vmax.f32 %v857, 0.0
    %v1019 = vmax.f32 %v946, 0.0
    %v1020 = vmax.f32 %v859, 0.0
    %v1021 = vmax.f32 %v948, 0.0
    %v1022 = vmax.f32 %v862, 0.0
    %v1023 = vmax.f32 %v951, 0.0
    %v1024 = vmax.f32 %v864, 0.0
    %v1025 = vmax.f32 %v953, 0.0
    %v1026 = vmax.f32 %v867, 0.0
    %v1027 = vmax.f32 %v956, 0.0
    %v1028 = vmax.f32 %v869, 0.0
    %v1029 = vmax.f32 %v958, 0.0
    %v1030 = vmax.f32 %v872, 0.0
    %v1031 = vmax.f32 %v961, 0.0
    %v1032 = vmax.f32 %v874, 0.0
    %v1033 = vmax.f32 %v963, 0.0
    %v1034 = vmax.f32 %v877, 0.0
    %v1035 = vmax.f32 %v966, 0.0
    %v1036 = vmax.f32 %v879, 0.0
    %v1037 = vmax.f32 %v968, 0.0
    %v1038 = vmax.f32 %v882, 0.0
    %v1039 = vmax.f32 %v971, 0.0
    %v1040 = vmax.f32 %v884, 0.0
    %v1041 = vmax.f32 %v973, 0.0
    %v1042 = vmax.f32 %v887, 0.0
    %v1043 = vmax.f32 %v976, 0.0
    %v1044 = vmax.f32 %v889, 0.0
    %v1045 = vmax.f32 %v978, 0.0
    %v1046 = vmax.f32 %v892, 0.0
    %v1047 = vmax.f32 %v981, 0.0
    %v1048 = vmax.f32 %v894, 0.0
    %v1049 = vmax.f32 %v983, 0.0
    %v1050 = vmax.f32 %v897, 0.0
    %v1051 = vmax.f32 %v986, 0.0
    %v1052 = vmax.f32 %v899, 0.0
    %v1053 = vmax.f32 %v988, 0.0
    %v1054 = vpack.c.bf16 %v992, %v990
    %v1055 = vpack.c.bf16 %v993, %v991
    %v1056 = vpack.c.bf16 %v996, %v994
    %v1057 = vpack.c.bf16 %v997, %v995
    %v1058 = vpack.c.bf16 %v1000, %v998
    %v1059 = vpack.c.bf16 %v1001, %v999
    %v1060 = vpack.c.bf16 %v1004, %v1002
    %v1061 = vpack.c.bf16 %v1005, %v1003
    %v1062 = vpack.c.bf16 %v1008, %v1006
    %v1063 = vpack.c.bf16 %v1009, %v1007
    %v1064 = vpack.c.bf16 %v1012, %v1010
    %v1065 = vpack.c.bf16 %v1013, %v1011
    %v1066 = vpack.c.bf16 %v1016, %v1014
    %v1067 = vpack.c.bf16 %v1017, %v1015
    %v1068 = vpack.c.bf16 %v1020, %v1018
    %v1069 = vpack.c.bf16 %v1021, %v1019
    %v1070 = vpack.c.bf16 %v1024, %v1022
    %v1071 = vpack.c.bf16 %v1025, %v1023
    %v1072 = vpack.c.bf16 %v1028, %v1026
    %v1073 = vpack.c.bf16 %v1029, %v1027
    %v1074 = vpack.c.bf16 %v1032, %v1030
    %v1075 = vpack.c.bf16 %v1033, %v1031
    %v1076 = vpack.c.bf16 %v1036, %v1034
    %v1077 = vpack.c.bf16 %v1037, %v1035
    %v1078 = vpack.c.bf16 %v1040, %v1038
    %v1079 = vpack.c.bf16 %v1041, %v1039
    %v1080 = vpack.c.bf16 %v1044, %v1042
    %v1081 = vpack.c.bf16 %v1045, %v1043
    %v1082 = vpack.c.bf16 %v1048, %v1046
    %v1083 = vpack.c.bf16 %v1049, %v1047
    %v1084 = vpack.c.bf16 %v1052, %v1050
    %v1085 = vpack.c.bf16 %v1053, %v1051
    %v1086 = vld [vmem:[%s7] sm:$0xf]
    %v1087 = vld [vmem:[%s7 + $0x4] sm:$0xf]
    %v1088 = vld [vmem:[%s7 + $0x8] sm:$0xf]
    %v1089 = vld [vmem:[%s7 + $0xc] sm:$0xf]
    %v1090 = vld [vmem:[%s7 + $0x10] sm:$0xf]
    %v1091 = vld [vmem:[%s7 + $0x14] sm:$0xf]
    %v1092 = vld [vmem:[%s7 + $0x18] sm:$0xf]
    %v1093 = vld [vmem:[%s7 + $0x1c] sm:$0xf]
    %v1094 = vld [vmem:[%s7 + $0x20] sm:$0xf]
    %v1095 = vld [vmem:[%s7 + $0x24] sm:$0xf]
    %v1096 = vld [vmem:[%s7 + $0x28] sm:$0xf]
    %v1097 = vld [vmem:[%s7 + $0x2c] sm:$0xf]
    %v1098 = vld [vmem:[%s7 + $0x30] sm:$0xf]
    %v1099 = vld [vmem:[%s7 + $0x34] sm:$0xf]
    %v1100 = vld [vmem:[%s7 + $0x38] sm:$0xf]
    %v1101 = vld [vmem:[%s7 + $0x3c] sm:$0xf]
    %v1102 = vld [vmem:[%s7 + $0x40] sm:$0xf]
    %v1103 = vld [vmem:[%s7 + $0x44] sm:$0xf]
    %v1104 = vld [vmem:[%s7 + $0x48] sm:$0xf]
    %v1105 = vld [vmem:[%s7 + $0x4c] sm:$0xf]
    %v1106 = vld [vmem:[%s7 + $0x50] sm:$0xf]
    %v1107 = vld [vmem:[%s7 + $0x54] sm:$0xf]
    %v1108 = vld [vmem:[%s7 + $0x58] sm:$0xf]
    %v1109 = vld [vmem:[%s7 + $0x5c] sm:$0xf]
    %v1110 = vld [vmem:[%s7 + $0x60] sm:$0xf]
    %v1111 = vld [vmem:[%s7 + $0x64] sm:$0xf]
    %v1112 = vld [vmem:[%s7 + $0x68] sm:$0xf]
    %v1113 = vld [vmem:[%s7 + $0x6c] sm:$0xf]
    %v1114 = vld [vmem:[%s7 + $0x70] sm:$0xf]
    %v1115 = vld [vmem:[%s7 + $0x74] sm:$0xf]
    %v1116 = vld [vmem:[%s7 + $0x78] sm:$0xf]
    %v1117 = vld [vmem:[%s7 + $0x7c] sm:$0xf]
    %v1118 = vld [vmem:[%s8] sm:$0x1]
    %v1120 = vperm.slane %v1118, 0
    %v1154 = vunpack.c.l.b16 %v1086
    %v1155 = vunpack.c.l.b16 %v1087
    %v1156 = vunpack.c.l.b16 %v1088
    %v1157 = vunpack.c.l.b16 %v1089
    %v1158 = vunpack.c.l.b16 %v1090
    %v1159 = vunpack.c.l.b16 %v1091
    %v1160 = vunpack.c.l.b16 %v1092
    %v1161 = vunpack.c.l.b16 %v1093
    %v1162 = vunpack.c.l.b16 %v1094
    %v1163 = vunpack.c.l.b16 %v1095
    %v1164 = vunpack.c.l.b16 %v1096
    %v1165 = vunpack.c.l.b16 %v1097
    %v1166 = vunpack.c.l.b16 %v1098
    %v1167 = vunpack.c.l.b16 %v1099
    %v1168 = vunpack.c.l.b16 %v1100
    %v1169 = vunpack.c.l.b16 %v1101
    %v1170 = vunpack.c.l.b16 %v1102
    %v1171 = vunpack.c.l.b16 %v1103
    %v1172 = vunpack.c.l.b16 %v1104
    %v1173 = vunpack.c.l.b16 %v1105
    %v1174 = vunpack.c.l.b16 %v1106
    %v1175 = vunpack.c.l.b16 %v1107
    %v1176 = vunpack.c.l.b16 %v1108
    %v1177 = vunpack.c.l.b16 %v1109
    %v1178 = vunpack.c.l.b16 %v1110
    %v1179 = vunpack.c.l.b16 %v1111
    %v1180 = vunpack.c.l.b16 %v1112
    %v1181 = vunpack.c.l.b16 %v1113
    %v1182 = vunpack.c.l.b16 %v1114
    %v1183 = vunpack.c.l.b16 %v1115
    %v1184 = vunpack.c.l.b16 %v1116
    %v1185 = vunpack.c.l.b16 %v1117
    %v1186 = vpack.c.b16 %v1155, %v1154
    %v1187 = vpack.c.b16 %v1157, %v1156
    %v1188 = vpack.c.b16 %v1159, %v1158
    %v1189 = vpack.c.b16 %v1161, %v1160
    %v1190 = vpack.c.b16 %v1163, %v1162
    %v1191 = vpack.c.b16 %v1165, %v1164
    %v1192 = vpack.c.b16 %v1167, %v1166
    %v1193 = vpack.c.b16 %v1169, %v1168
    %v1194 = vpack.c.b16 %v1171, %v1170
    %v1195 = vpack.c.b16 %v1173, %v1172
    %v1196 = vpack.c.b16 %v1175, %v1174
    %v1197 = vpack.c.b16 %v1177, %v1176
    %v1198 = vpack.c.b16 %v1179, %v1178
    %v1199 = vpack.c.b16 %v1181, %v1180
    %v1200 = vpack.c.b16 %v1183, %v1182
    %v1201 = vpack.c.b16 %v1185, %v1184
    %1218 = vmatpush.bf16.msra.mxu0 %v1193
    %1219 = vmatpush.bf16.msra.mxu0 %v1192
    %1220 = vmatpush.bf16.msra.mxu0 %v1191
    %1221 = vmatpush.bf16.msra.mxu0 %v1190
    %1222 = vmatpush.bf16.msra.mxu0 %v1189
    %1223 = vmatpush.bf16.msra.mxu0 %v1188
    %1224 = vmatpush.bf16.msra.mxu0 %v1187
    %1225 = vmatpush.bf16.msra.mxu0 %v1186
    %1226 = vmatmul.bf16.gmra.mxu0 %v1054
    %v1227 = vpop.f32.mrf.mxu0
    %v1228 = vadd.f32 %v1120, %v1227
    %v1229 = vpop.f32.mrf.mxu0
    %v1230 = vadd.f32 %v1120, %v1229
    %1231 = vmatmul.bf16.gmra.mxu0 %v1056
    %v1232 = vpop.f32.mrf.mxu0
    %v1233 = vadd.f32 %v1120, %v1232
    %v1234 = vpop.f32.mrf.mxu0
    %v1235 = vadd.f32 %v1120, %v1234
    %1236 = vmatmul.bf16.gmra.mxu0 %v1058
    %v1237 = vpop.f32.mrf.mxu0
    %v1238 = vadd.f32 %v1120, %v1237
    %v1239 = vpop.f32.mrf.mxu0
    %v1240 = vadd.f32 %v1120, %v1239
    %1241 = vmatmul.bf16.gmra.mxu0 %v1060
    %v1242 = vpop.f32.mrf.mxu0
    %v1243 = vadd.f32 %v1120, %v1242
    %v1244 = vpop.f32.mrf.mxu0
    %v1245 = vadd.f32 %v1120, %v1244
    %1246 = vmatmul.bf16.gmra.mxu0 %v1062
    %v1247 = vpop.f32.mrf.mxu0
    %v1248 = vadd.f32 %v1120, %v1247
    %v1249 = vpop.f32.mrf.mxu0
    %v1250 = vadd.f32 %v1120, %v1249
    %1251 = vmatmul.bf16.gmra.mxu0 %v1064
    %v1252 = vpop.f32.mrf.mxu0
    %v1253 = vadd.f32 %v1120, %v1252
    %v1254 = vpop.f32.mrf.mxu0
    %v1255 = vadd.f32 %v1120, %v1254
    %1256 = vmatmul.bf16.gmra.mxu0 %v1066
    %v1257 = vpop.f32.mrf.mxu0
    %v1258 = vadd.f32 %v1120, %v1257
    %v1259 = vpop.f32.mrf.mxu0
    %v1260 = vadd.f32 %v1120, %v1259
    %1261 = vmatmul.bf16.gmra.mxu0 %v1068
    %v1262 = vpop.f32.mrf.mxu0
    %v1263 = vadd.f32 %v1120, %v1262
    %v1264 = vpop.f32.mrf.mxu0
    %v1265 = vadd.f32 %v1120, %v1264
    %1266 = vmatmul.bf16.gmra.mxu0 %v1070
    %v1267 = vpop.f32.mrf.mxu0
    %v1268 = vadd.f32 %v1120, %v1267
    %v1269 = vpop.f32.mrf.mxu0
    %v1270 = vadd.f32 %v1120, %v1269
    %1271 = vmatmul.bf16.gmra.mxu0 %v1072
    %v1272 = vpop.f32.mrf.mxu0
    %v1273 = vadd.f32 %v1120, %v1272
    %v1274 = vpop.f32.mrf.mxu0
    %v1275 = vadd.f32 %v1120, %v1274
    %1276 = vmatmul.bf16.gmra.mxu0 %v1074
    %v1277 = vpop.f32.mrf.mxu0
    %v1278 = vadd.f32 %v1120, %v1277
    %v1279 = vpop.f32.mrf.mxu0
    %v1280 = vadd.f32 %v1120, %v1279
    %1281 = vmatmul.bf16.gmra.mxu0 %v1076
    %v1282 = vpop.f32.mrf.mxu0
    %v1283 = vadd.f32 %v1120, %v1282
    %v1284 = vpop.f32.mrf.mxu0
    %v1285 = vadd.f32 %v1120, %v1284
    %1286 = vmatmul.bf16.gmra.mxu0 %v1078
    %v1287 = vpop.f32.mrf.mxu0
    %v1288 = vadd.f32 %v1120, %v1287
    %v1289 = vpop.f32.mrf.mxu0
    %v1290 = vadd.f32 %v1120, %v1289
    %1291 = vmatmul.bf16.gmra.mxu0 %v1080
    %v1292 = vpop.f32.mrf.mxu0
    %v1293 = vadd.f32 %v1120, %v1292
    %v1294 = vpop.f32.mrf.mxu0
    %v1295 = vadd.f32 %v1120, %v1294
    %1296 = vmatmul.bf16.gmra.mxu0 %v1082
    %v1297 = vpop.f32.mrf.mxu0
    %v1298 = vadd.f32 %v1120, %v1297
    %v1299 = vpop.f32.mrf.mxu0
    %v1300 = vadd.f32 %v1120, %v1299
    %1301 = vmatmul.bf16.gmra.mxu0 %v1084
    %v1302 = vpop.f32.mrf.mxu0
    %v1303 = vadd.f32 %v1120, %v1302
    %v1304 = vpop.f32.mrf.mxu0
    %v1305 = vadd.f32 %v1120, %v1304
    %1306 = vdwg.mxu0
    %1307 = vmatpush.bf16.msra.mxu0 %v1201
    %1308 = vmatpush.bf16.msra.mxu0 %v1200
    %1309 = vmatpush.bf16.msra.mxu0 %v1199
    %1310 = vmatpush.bf16.msra.mxu0 %v1198
    %1311 = vmatpush.bf16.msra.mxu0 %v1197
    %1312 = vmatpush.bf16.msra.mxu0 %v1196
    %1313 = vmatpush.bf16.msra.mxu0 %v1195
    %1314 = vmatpush.bf16.msra.mxu0 %v1194
    %1315 = vmatmul.bf16.gmra.mxu0 %v1055
    %v1316 = vpop.f32.mrf.mxu0
    %v1317 = vadd.f32 %v1228, %v1316
    %v1318 = vpop.f32.mrf.mxu0
    %v1319 = vadd.f32 %v1230, %v1318
    %1320 = vmatmul.bf16.gmra.mxu0 %v1057
    %v1321 = vpop.f32.mrf.mxu0
    %v1322 = vadd.f32 %v1233, %v1321
    %v1323 = vpop.f32.mrf.mxu0
    %v1324 = vadd.f32 %v1235, %v1323
    %1325 = vmatmul.bf16.gmra.mxu0 %v1059
    %v1326 = vpop.f32.mrf.mxu0
    %v1327 = vadd.f32 %v1238, %v1326
    %v1328 = vpop.f32.mrf.mxu0
    %v1329 = vadd.f32 %v1240, %v1328
    %1330 = vmatmul.bf16.gmra.mxu0 %v1061
    %v1331 = vpop.f32.mrf.mxu0
    %v1332 = vadd.f32 %v1243, %v1331
    %v1333 = vpop.f32.mrf.mxu0
    %v1334 = vadd.f32 %v1245, %v1333
    %1335 = vmatmul.bf16.gmra.mxu0 %v1063
    %v1336 = vpop.f32.mrf.mxu0
    %v1337 = vadd.f32 %v1248, %v1336
    %v1338 = vpop.f32.mrf.mxu0
    %v1339 = vadd.f32 %v1250, %v1338
    %1340 = vmatmul.bf16.gmra.mxu0 %v1065
    %v1341 = vpop.f32.mrf.mxu0
    %v1342 = vadd.f32 %v1253, %v1341
    %v1343 = vpop.f32.mrf.mxu0
    %v1344 = vadd.f32 %v1255, %v1343
    %1345 = vmatmul.bf16.gmra.mxu0 %v1067
    %v1346 = vpop.f32.mrf.mxu0
    %v1347 = vadd.f32 %v1258, %v1346
    %v1348 = vpop.f32.mrf.mxu0
    %v1349 = vadd.f32 %v1260, %v1348
    %1350 = vmatmul.bf16.gmra.mxu0 %v1069
    %v1351 = vpop.f32.mrf.mxu0
    %v1352 = vadd.f32 %v1263, %v1351
    %v1353 = vpop.f32.mrf.mxu0
    %v1354 = vadd.f32 %v1265, %v1353
    %1355 = vmatmul.bf16.gmra.mxu0 %v1071
    %v1356 = vpop.f32.mrf.mxu0
    %v1357 = vadd.f32 %v1268, %v1356
    %v1358 = vpop.f32.mrf.mxu0
    %v1359 = vadd.f32 %v1270, %v1358
    %1360 = vmatmul.bf16.gmra.mxu0 %v1073
    %v1361 = vpop.f32.mrf.mxu0
    %v1362 = vadd.f32 %v1273, %v1361
    %v1363 = vpop.f32.mrf.mxu0
    %v1364 = vadd.f32 %v1275, %v1363
    %1365 = vmatmul.bf16.gmra.mxu0 %v1075
    %v1366 = vpop.f32.mrf.mxu0
    %v1367 = vadd.f32 %v1278, %v1366
    %v1368 = vpop.f32.mrf.mxu0
    %v1369 = vadd.f32 %v1280, %v1368
    %1370 = vmatmul.bf16.gmra.mxu0 %v1077
    %v1371 = vpop.f32.mrf.mxu0
    %v1372 = vadd.f32 %v1283, %v1371
    %v1373 = vpop.f32.mrf.mxu0
    %v1374 = vadd.f32 %v1285, %v1373
    %1375 = vmatmul.bf16.gmra.mxu0 %v1079
    %v1376 = vpop.f32.mrf.mxu0
    %v1377 = vadd.f32 %v1288, %v1376
    %v1378 = vpop.f32.mrf.mxu0
    %v1379 = vadd.f32 %v1290, %v1378
    %1380 = vmatmul.bf16.gmra.mxu0 %v1081
    %v1381 = vpop.f32.mrf.mxu0
    %v1382 = vadd.f32 %v1293, %v1381
    %v1383 = vpop.f32.mrf.mxu0
    %v1384 = vadd.f32 %v1295, %v1383
    %1385 = vmatmul.bf16.gmra.mxu0 %v1083
    %v1386 = vpop.f32.mrf.mxu0
    %v1387 = vadd.f32 %v1298, %v1386
    %v1388 = vpop.f32.mrf.mxu0
    %v1389 = vadd.f32 %v1300, %v1388
    %1390 = vmatmul.bf16.gmra.mxu0 %v1085
    %v1391 = vpop.f32.mrf.mxu0
    %v1392 = vadd.f32 %v1303, %v1391
    %v1393 = vpop.f32.mrf.mxu0
    %v1394 = vadd.f32 %v1305, %v1393
    %1395 = vdwg.mxu0
    %v1396 = vpack.c.bf16 %v1319, %v1317
    %v1397 = vpack.c.bf16 %v1324, %v1322
    %v1398 = vpack.c.bf16 %v1329, %v1327
    %v1399 = vpack.c.bf16 %v1334, %v1332
    %v1400 = vpack.c.bf16 %v1339, %v1337
    %v1401 = vpack.c.bf16 %v1344, %v1342
    %v1402 = vpack.c.bf16 %v1349, %v1347
    %v1403 = vpack.c.bf16 %v1354, %v1352
    %v1404 = vpack.c.bf16 %v1359, %v1357
    %v1405 = vpack.c.bf16 %v1364, %v1362
    %v1406 = vpack.c.bf16 %v1369, %v1367
    %v1407 = vpack.c.bf16 %v1374, %v1372
    %v1408 = vpack.c.bf16 %v1379, %v1377
    %v1409 = vpack.c.bf16 %v1384, %v1382
    %v1410 = vpack.c.bf16 %v1389, %v1387
    %v1411 = vpack.c.bf16 %v1394, %v1392
    %v1412 = vld [vmem:[%s9] sm:$0xff]
    %v1413 = vld [vmem:[%s9 + $0x8] sm:$0xff]
    %v1414 = vld [vmem:[%s10] sm:$0x3]
    %v1416 = vperm.slane %v1414, 0
    %v1417 = vperm.slane %v1414, 1
    %v1422 = vunpack.c.l.b16 %v1412
    %v1423 = vunpack.c.h.b16 %v1412
    %v1424 = vunpack.c.l.b16 %v1413
    %v1425 = vunpack.c.h.b16 %v1413
    %v1426 = vpack.c.b16 %v1424, %v1422
    %v1427 = vpack.c.b16 %v1425, %v1423
    %vm1430 = vcmask 130048
    %v1432 = vsel %vm1430, %v1396, 0
    %v1435 = vsel %vm1430, %v1397, 0
    %v1438 = vsel %vm1430, %v1398, 0
    %v1441 = vsel %vm1430, %v1399, 0
    %v1444 = vsel %vm1430, %v1400, 0
    %v1447 = vsel %vm1430, %v1401, 0
    %v1450 = vsel %vm1430, %v1402, 0
    %v1453 = vsel %vm1430, %v1403, 0
    %v1456 = vsel %vm1430, %v1404, 0
    %v1459 = vsel %vm1430, %v1405, 0
    %v1462 = vsel %vm1430, %v1406, 0
    %v1465 = vsel %vm1430, %v1407, 0
    %v1468 = vsel %vm1430, %v1408, 0
    %v1471 = vsel %vm1430, %v1409, 0
    %v1474 = vsel %vm1430, %v1410, 0
    %v1477 = vsel %vm1430, %v1411, 0
    %1479 = vmatpush.bf16.msra.mxu0 0
    %1480 = vmatpush.bf16.msra.mxu0 0
    %1481 = vmatpush.bf16.msra.mxu0 0
    %1482 = vmatpush.bf16.msra.mxu0 0
    %1483 = vmatpush.bf16.msra.mxu0 0
    %1484 = vmatpush.bf16.msra.mxu0 0
    %1485 = vmatpush.bf16.msra.mxu0 0
    %1486 = vmatpush.bf16.msra.mxu0 %v1426
    %1487 = vmatmul.bf16.gmra.mxu0 %v1432
    %v1488 = vpop.f32.mrf.mxu0
    %v1489 = vadd.f32 %v1416, %v1488
    %v1490 = vpop.f32.mrf.mxu0
    %v1491 = vadd.f32 %v1416, %v1490
    %1492 = vmatmul.bf16.gmra.mxu0 %v1435
    %v1493 = vpop.f32.mrf.mxu0
    %v1494 = vadd.f32 %v1416, %v1493
    %v1495 = vpop.f32.mrf.mxu0
    %v1496 = vadd.f32 %v1416, %v1495
    %1497 = vmatmul.bf16.gmra.mxu0 %v1438
    %v1498 = vpop.f32.mrf.mxu0
    %v1499 = vadd.f32 %v1416, %v1498
    %v1500 = vpop.f32.mrf.mxu0
    %v1501 = vadd.f32 %v1416, %v1500
    %1502 = vmatmul.bf16.gmra.mxu0 %v1441
    %v1503 = vpop.f32.mrf.mxu0
    %v1504 = vadd.f32 %v1416, %v1503
    %v1505 = vpop.f32.mrf.mxu0
    %v1506 = vadd.f32 %v1416, %v1505
    %1507 = vmatmul.bf16.gmra.mxu0 %v1444
    %v1508 = vpop.f32.mrf.mxu0
    %v1509 = vadd.f32 %v1416, %v1508
    %v1510 = vpop.f32.mrf.mxu0
    %v1511 = vadd.f32 %v1416, %v1510
    %1512 = vmatmul.bf16.gmra.mxu0 %v1447
    %v1513 = vpop.f32.mrf.mxu0
    %v1514 = vadd.f32 %v1416, %v1513
    %v1515 = vpop.f32.mrf.mxu0
    %v1516 = vadd.f32 %v1416, %v1515
    %1517 = vmatmul.bf16.gmra.mxu0 %v1450
    %v1518 = vpop.f32.mrf.mxu0
    %v1519 = vadd.f32 %v1416, %v1518
    %v1520 = vpop.f32.mrf.mxu0
    %v1521 = vadd.f32 %v1416, %v1520
    %1522 = vmatmul.bf16.gmra.mxu0 %v1453
    %v1523 = vpop.f32.mrf.mxu0
    %v1524 = vadd.f32 %v1416, %v1523
    %v1525 = vpop.f32.mrf.mxu0
    %v1526 = vadd.f32 %v1416, %v1525
    %1527 = vmatmul.bf16.gmra.mxu0 %v1456
    %v1528 = vpop.f32.mrf.mxu0
    %v1529 = vadd.f32 %v1416, %v1528
    %v1530 = vpop.f32.mrf.mxu0
    %v1531 = vadd.f32 %v1416, %v1530
    %1532 = vmatmul.bf16.gmra.mxu0 %v1459
    %v1533 = vpop.f32.mrf.mxu0
    %v1534 = vadd.f32 %v1416, %v1533
    %v1535 = vpop.f32.mrf.mxu0
    %v1536 = vadd.f32 %v1416, %v1535
    %1537 = vmatmul.bf16.gmra.mxu0 %v1462
    %v1538 = vpop.f32.mrf.mxu0
    %v1539 = vadd.f32 %v1416, %v1538
    %v1540 = vpop.f32.mrf.mxu0
    %v1541 = vadd.f32 %v1416, %v1540
    %1542 = vmatmul.bf16.gmra.mxu0 %v1465
    %v1543 = vpop.f32.mrf.mxu0
    %v1544 = vadd.f32 %v1416, %v1543
    %v1545 = vpop.f32.mrf.mxu0
    %v1546 = vadd.f32 %v1416, %v1545
    %1547 = vmatmul.bf16.gmra.mxu0 %v1468
    %v1548 = vpop.f32.mrf.mxu0
    %v1549 = vadd.f32 %v1416, %v1548
    %v1550 = vpop.f32.mrf.mxu0
    %v1551 = vadd.f32 %v1416, %v1550
    %1552 = vmatmul.bf16.gmra.mxu0 %v1471
    %v1553 = vpop.f32.mrf.mxu0
    %v1554 = vadd.f32 %v1416, %v1553
    %v1555 = vpop.f32.mrf.mxu0
    %v1556 = vadd.f32 %v1416, %v1555
    %1557 = vmatmul.bf16.gmra.mxu0 %v1474
    %v1558 = vpop.f32.mrf.mxu0
    %v1559 = vadd.f32 %v1416, %v1558
    %v1560 = vpop.f32.mrf.mxu0
    %v1561 = vadd.f32 %v1416, %v1560
    %1562 = vmatmul.bf16.gmra.mxu0 %v1477
    %v1563 = vpop.f32.mrf.mxu0
    %v1564 = vadd.f32 %v1416, %v1563
    %v1565 = vpop.f32.mrf.mxu0
    %v1566 = vadd.f32 %v1416, %v1565
    %1567 = vdwg.mxu0
    %1568 = vmatpush.bf16.msra.mxu0 0
    %1569 = vmatpush.bf16.msra.mxu0 0
    %1570 = vmatpush.bf16.msra.mxu0 0
    %1571 = vmatpush.bf16.msra.mxu0 0
    %1572 = vmatpush.bf16.msra.mxu0 0
    %1573 = vmatpush.bf16.msra.mxu0 0
    %1574 = vmatpush.bf16.msra.mxu0 0
    %1575 = vmatpush.bf16.msra.mxu0 %v1427
    %1576 = vmatmul.bf16.gmra.mxu0 %v1432
    %v1577 = vpop.f32.mrf.mxu0
    %v1578 = vadd.f32 %v1417, %v1577
    %v1579 = vpop.f32.mrf.mxu0
    %v1580 = vadd.f32 %v1417, %v1579
    %1581 = vmatmul.bf16.gmra.mxu0 %v1435
    %v1582 = vpop.f32.mrf.mxu0
    %v1583 = vadd.f32 %v1417, %v1582
    %v1584 = vpop.f32.mrf.mxu0
    %v1585 = vadd.f32 %v1417, %v1584
    %1586 = vmatmul.bf16.gmra.mxu0 %v1438
    %v1587 = vpop.f32.mrf.mxu0
    %v1588 = vadd.f32 %v1417, %v1587
    %v1589 = vpop.f32.mrf.mxu0
    %v1590 = vadd.f32 %v1417, %v1589
    %1591 = vmatmul.bf16.gmra.mxu0 %v1441
    %v1592 = vpop.f32.mrf.mxu0
    %v1593 = vadd.f32 %v1417, %v1592
    %v1594 = vpop.f32.mrf.mxu0
    %v1595 = vadd.f32 %v1417, %v1594
    %1596 = vmatmul.bf16.gmra.mxu0 %v1444
    %v1597 = vpop.f32.mrf.mxu0
    %v1598 = vadd.f32 %v1417, %v1597
    %v1599 = vpop.f32.mrf.mxu0
    %v1600 = vadd.f32 %v1417, %v1599
    %1601 = vmatmul.bf16.gmra.mxu0 %v1447
    %v1602 = vpop.f32.mrf.mxu0
    %v1603 = vadd.f32 %v1417, %v1602
    %v1604 = vpop.f32.mrf.mxu0
    %v1605 = vadd.f32 %v1417, %v1604
    %1606 = vmatmul.bf16.gmra.mxu0 %v1450
    %v1607 = vpop.f32.mrf.mxu0
    %v1608 = vadd.f32 %v1417, %v1607
    %v1609 = vpop.f32.mrf.mxu0
    %v1610 = vadd.f32 %v1417, %v1609
    %1611 = vmatmul.bf16.gmra.mxu0 %v1453
    %v1612 = vpop.f32.mrf.mxu0
    %v1613 = vadd.f32 %v1417, %v1612
    %v1614 = vpop.f32.mrf.mxu0
    %v1615 = vadd.f32 %v1417, %v1614
    %1616 = vmatmul.bf16.gmra.mxu0 %v1456
    %v1617 = vpop.f32.mrf.mxu0
    %v1618 = vadd.f32 %v1417, %v1617
    %v1619 = vpop.f32.mrf.mxu0
    %v1620 = vadd.f32 %v1417, %v1619
    %1621 = vmatmul.bf16.gmra.mxu0 %v1459
    %v1622 = vpop.f32.mrf.mxu0
    %v1623 = vadd.f32 %v1417, %v1622
    %v1624 = vpop.f32.mrf.mxu0
    %v1625 = vadd.f32 %v1417, %v1624
    %1626 = vmatmul.bf16.gmra.mxu0 %v1462
    %v1627 = vpop.f32.mrf.mxu0
    %v1628 = vadd.f32 %v1417, %v1627
    %v1629 = vpop.f32.mrf.mxu0
    %v1630 = vadd.f32 %v1417, %v1629
    %1631 = vmatmul.bf16.gmra.mxu0 %v1465
    %v1632 = vpop.f32.mrf.mxu0
    %v1633 = vadd.f32 %v1417, %v1632
    %v1634 = vpop.f32.mrf.mxu0
    %v1635 = vadd.f32 %v1417, %v1634
    %1636 = vmatmul.bf16.gmra.mxu0 %v1468
    %v1637 = vpop.f32.mrf.mxu0
    %v1638 = vadd.f32 %v1417, %v1637
    %v1639 = vpop.f32.mrf.mxu0
    %v1640 = vadd.f32 %v1417, %v1639
    %1641 = vmatmul.bf16.gmra.mxu0 %v1471
    %v1642 = vpop.f32.mrf.mxu0
    %v1643 = vadd.f32 %v1417, %v1642
    %v1644 = vpop.f32.mrf.mxu0
    %v1645 = vadd.f32 %v1417, %v1644
    %1646 = vmatmul.bf16.gmra.mxu0 %v1474
    %v1647 = vpop.f32.mrf.mxu0
    %v1648 = vadd.f32 %v1417, %v1647
    %v1649 = vpop.f32.mrf.mxu0
    %v1650 = vadd.f32 %v1417, %v1649
    %1651 = vmatmul.bf16.gmra.mxu0 %v1477
    %v1652 = vpop.f32.mrf.mxu0
    %v1653 = vadd.f32 %v1417, %v1652
    %v1654 = vpop.f32.mrf.mxu0
    %v1655 = vadd.f32 %v1417, %v1654
    %1656 = vdwg.mxu0
    %v1657 = vmax.f32 %v1489, 0.0
    %v1658 = vmax.f32 %v1578, 0.0
    %v1659 = vmax.f32 %v1491, 0.0
    %v1660 = vmax.f32 %v1580, 0.0
    %v1661 = vmax.f32 %v1494, 0.0
    %v1662 = vmax.f32 %v1583, 0.0
    %v1663 = vmax.f32 %v1496, 0.0
    %v1664 = vmax.f32 %v1585, 0.0
    %v1665 = vmax.f32 %v1499, 0.0
    %v1666 = vmax.f32 %v1588, 0.0
    %v1667 = vmax.f32 %v1501, 0.0
    %v1668 = vmax.f32 %v1590, 0.0
    %v1669 = vmax.f32 %v1504, 0.0
    %v1670 = vmax.f32 %v1593, 0.0
    %v1671 = vmax.f32 %v1506, 0.0
    %v1672 = vmax.f32 %v1595, 0.0
    %v1673 = vmax.f32 %v1509, 0.0
    %v1674 = vmax.f32 %v1598, 0.0
    %v1675 = vmax.f32 %v1511, 0.0
    %v1676 = vmax.f32 %v1600, 0.0
    %v1677 = vmax.f32 %v1514, 0.0
    %v1678 = vmax.f32 %v1603, 0.0
    %v1679 = vmax.f32 %v1516, 0.0
    %v1680 = vmax.f32 %v1605, 0.0
    %v1681 = vmax.f32 %v1519, 0.0
    %v1682 = vmax.f32 %v1608, 0.0
    %v1683 = vmax.f32 %v1521, 0.0
    %v1684 = vmax.f32 %v1610, 0.0
    %v1685 = vmax.f32 %v1524, 0.0
    %v1686 = vmax.f32 %v1613, 0.0
    %v1687 = vmax.f32 %v1526, 0.0
    %v1688 = vmax.f32 %v1615, 0.0
    %v1689 = vmax.f32 %v1529, 0.0
    %v1690 = vmax.f32 %v1618, 0.0
    %v1691 = vmax.f32 %v1531, 0.0
    %v1692 = vmax.f32 %v1620, 0.0
    %v1693 = vmax.f32 %v1534, 0.0
    %v1694 = vmax.f32 %v1623, 0.0
    %v1695 = vmax.f32 %v1536, 0.0
    %v1696 = vmax.f32 %v1625, 0.0
    %v1697 = vmax.f32 %v1539, 0.0
    %v1698 = vmax.f32 %v1628, 0.0
    %v1699 = vmax.f32 %v1541, 0.0
    %v1700 = vmax.f32 %v1630, 0.0
    %v1701 = vmax.f32 %v1544, 0.0
    %v1702 = vmax.f32 %v1633, 0.0
    %v1703 = vmax.f32 %v1546, 0.0
    %v1704 = vmax.f32 %v1635, 0.0
    %v1705 = vmax.f32 %v1549, 0.0
    %v1706 = vmax.f32 %v1638, 0.0
    %v1707 = vmax.f32 %v1551, 0.0
    %v1708 = vmax.f32 %v1640, 0.0
    %v1709 = vmax.f32 %v1554, 0.0
    %v1710 = vmax.f32 %v1643, 0.0
    %v1711 = vmax.f32 %v1556, 0.0
    %v1712 = vmax.f32 %v1645, 0.0
    %v1713 = vmax.f32 %v1559, 0.0
    %v1714 = vmax.f32 %v1648, 0.0
    %v1715 = vmax.f32 %v1561, 0.0
    %v1716 = vmax.f32 %v1650, 0.0
    %v1717 = vmax.f32 %v1564, 0.0
    %v1718 = vmax.f32 %v1653, 0.0
    %v1719 = vmax.f32 %v1566, 0.0
    %v1720 = vmax.f32 %v1655, 0.0
    %v1721 = vpack.c.bf16 %v1659, %v1657
    %v1722 = vpack.c.bf16 %v1660, %v1658
    %v1723 = vpack.c.bf16 %v1663, %v1661
    %v1724 = vpack.c.bf16 %v1664, %v1662
    %v1725 = vpack.c.bf16 %v1667, %v1665
    %v1726 = vpack.c.bf16 %v1668, %v1666
    %v1727 = vpack.c.bf16 %v1671, %v1669
    %v1728 = vpack.c.bf16 %v1672, %v1670
    %v1729 = vpack.c.bf16 %v1675, %v1673
    %v1730 = vpack.c.bf16 %v1676, %v1674
    %v1731 = vpack.c.bf16 %v1679, %v1677
    %v1732 = vpack.c.bf16 %v1680, %v1678
    %v1733 = vpack.c.bf16 %v1683, %v1681
    %v1734 = vpack.c.bf16 %v1684, %v1682
    %v1735 = vpack.c.bf16 %v1687, %v1685
    %v1736 = vpack.c.bf16 %v1688, %v1686
    %v1737 = vpack.c.bf16 %v1691, %v1689
    %v1738 = vpack.c.bf16 %v1692, %v1690
    %v1739 = vpack.c.bf16 %v1695, %v1693
    %v1740 = vpack.c.bf16 %v1696, %v1694
    %v1741 = vpack.c.bf16 %v1699, %v1697
    %v1742 = vpack.c.bf16 %v1700, %v1698
    %v1743 = vpack.c.bf16 %v1703, %v1701
    %v1744 = vpack.c.bf16 %v1704, %v1702
    %v1745 = vpack.c.bf16 %v1707, %v1705
    %v1746 = vpack.c.bf16 %v1708, %v1706
    %v1747 = vpack.c.bf16 %v1711, %v1709
    %v1748 = vpack.c.bf16 %v1712, %v1710
    %v1749 = vpack.c.bf16 %v1715, %v1713
    %v1750 = vpack.c.bf16 %v1716, %v1714
    %v1751 = vpack.c.bf16 %v1719, %v1717
    %v1752 = vpack.c.bf16 %v1720, %v1718
    %v1753 = vld [vmem:[#allocation10] sm:$0xf]
    %v1754 = vld [vmem:[#allocation10 + $0x4] sm:$0xf]
    %v1755 = vld [vmem:[#allocation10 + $0x8] sm:$0xf]
    %v1756 = vld [vmem:[#allocation10 + $0xc] sm:$0xf]
    %v1757 = vld [vmem:[#allocation10 + $0x10] sm:$0xf]
    %v1758 = vld [vmem:[#allocation10 + $0x14] sm:$0xf]
    %v1759 = vld [vmem:[#allocation10 + $0x18] sm:$0xf]
    %v1760 = vld [vmem:[#allocation10 + $0x1c] sm:$0xf]
    %v1761 = vld [vmem:[#allocation10 + $0x20] sm:$0xf]
    %v1762 = vld [vmem:[#allocation10 + $0x24] sm:$0xf]
    %v1763 = vld [vmem:[#allocation10 + $0x28] sm:$0xf]
    %v1764 = vld [vmem:[#allocation10 + $0x2c] sm:$0xf]
    %v1765 = vld [vmem:[#allocation10 + $0x30] sm:$0xf]
    %v1766 = vld [vmem:[#allocation10 + $0x34] sm:$0xf]
    %v1767 = vld [vmem:[#allocation10 + $0x38] sm:$0xf]
    %v1768 = vld [vmem:[#allocation10 + $0x3c] sm:$0xf]
    %v1769 = vld [vmem:[#allocation10 + $0x40] sm:$0xf]
    %v1770 = vld [vmem:[#allocation10 + $0x44] sm:$0xf]
    %v1771 = vld [vmem:[#allocation10 + $0x48] sm:$0xf]
    %v1772 = vld [vmem:[#allocation10 + $0x4c] sm:$0xf]
    %v1773 = vld [vmem:[#allocation10 + $0x50] sm:$0xf]
    %v1774 = vld [vmem:[#allocation10 + $0x54] sm:$0xf]
    %v1775 = vld [vmem:[#allocation10 + $0x58] sm:$0xf]
    %v1776 = vld [vmem:[#allocation10 + $0x5c] sm:$0xf]
    %v1777 = vld [vmem:[#allocation10 + $0x60] sm:$0xf]
    %v1778 = vld [vmem:[#allocation10 + $0x64] sm:$0xf]
    %v1779 = vld [vmem:[#allocation10 + $0x68] sm:$0xf]
    %v1780 = vld [vmem:[#allocation10 + $0x6c] sm:$0xf]
    %v1781 = vld [vmem:[#allocation10 + $0x70] sm:$0xf]
    %v1782 = vld [vmem:[#allocation10 + $0x74] sm:$0xf]
    %v1783 = vld [vmem:[#allocation10 + $0x78] sm:$0xf]
    %v1784 = vld [vmem:[#allocation10 + $0x7c] sm:$0xf]
    %v1785 = vld [vmem:[%s12] sm:$0x1]
    %v1787 = vperm.slane %v1785, 0
    %v1821 = vunpack.c.l.b16 %v1753
    %v1822 = vunpack.c.l.b16 %v1754
    %v1823 = vunpack.c.l.b16 %v1755
    %v1824 = vunpack.c.l.b16 %v1756
    %v1825 = vunpack.c.l.b16 %v1757
    %v1826 = vunpack.c.l.b16 %v1758
    %v1827 = vunpack.c.l.b16 %v1759
    %v1828 = vunpack.c.l.b16 %v1760
    %v1829 = vunpack.c.l.b16 %v1761
    %v1830 = vunpack.c.l.b16 %v1762
    %v1831 = vunpack.c.l.b16 %v1763
    %v1832 = vunpack.c.l.b16 %v1764
    %v1833 = vunpack.c.l.b16 %v1765
    %v1834 = vunpack.c.l.b16 %v1766
    %v1835 = vunpack.c.l.b16 %v1767
    %v1836 = vunpack.c.l.b16 %v1768
    %v1837 = vunpack.c.l.b16 %v1769
    %v1838 = vunpack.c.l.b16 %v1770
    %v1839 = vunpack.c.l.b16 %v1771
    %v1840 = vunpack.c.l.b16 %v1772
    %v1841 = vunpack.c.l.b16 %v1773
    %v1842 = vunpack.c.l.b16 %v1774
    %v1843 = vunpack.c.l.b16 %v1775
    %v1844 = vunpack.c.l.b16 %v1776
    %v1845 = vunpack.c.l.b16 %v1777
    %v1846 = vunpack.c.l.b16 %v1778
    %v1847 = vunpack.c.l.b16 %v1779
    %v1848 = vunpack.c.l.b16 %v1780
    %v1849 = vunpack.c.l.b16 %v1781
    %v1850 = vunpack.c.l.b16 %v1782
    %v1851 = vunpack.c.l.b16 %v1783
    %v1852 = vunpack.c.l.b16 %v1784
    %v1853 = vpack.c.b16 %v1822, %v1821
    %v1854 = vpack.c.b16 %v1824, %v1823
    %v1855 = vpack.c.b16 %v1826, %v1825
    %v1856 = vpack.c.b16 %v1828, %v1827
    %v1857 = vpack.c.b16 %v1830, %v1829
    %v1858 = vpack.c.b16 %v1832, %v1831
    %v1859 = vpack.c.b16 %v1834, %v1833
    %v1860 = vpack.c.b16 %v1836, %v1835
    %v1861 = vpack.c.b16 %v1838, %v1837
    %v1862 = vpack.c.b16 %v1840, %v1839
    %v1863 = vpack.c.b16 %v1842, %v1841
    %v1864 = vpack.c.b16 %v1844, %v1843
    %v1865 = vpack.c.b16 %v1846, %v1845
    %v1866 = vpack.c.b16 %v1848, %v1847
    %v1867 = vpack.c.b16 %v1850, %v1849
    %v1868 = vpack.c.b16 %v1852, %v1851
    %1885 = vmatpush.bf16.msra.mxu0 %v1860
    %1886 = vmatpush.bf16.msra.mxu0 %v1859
    %1887 = vmatpush.bf16.msra.mxu0 %v1858
    %1888 = vmatpush.bf16.msra.mxu0 %v1857
    %1889 = vmatpush.bf16.msra.mxu0 %v1856
    %1890 = vmatpush.bf16.msra.mxu0 %v1855
    %1891 = vmatpush.bf16.msra.mxu0 %v1854
    %1892 = vmatpush.bf16.msra.mxu0 %v1853
    %1893 = vmatmul.bf16.gmra.mxu0 %v1721
    %v1894 = vpop.f32.mrf.mxu0
    %v1895 = vadd.f32 %v1787, %v1894
    %v1896 = vpop.f32.mrf.mxu0
    %v1897 = vadd.f32 %v1787, %v1896
    %1898 = vmatmul.bf16.gmra.mxu0 %v1723
    %v1899 = vpop.f32.mrf.mxu0
    %v1900 = vadd.f32 %v1787, %v1899
    %v1901 = vpop.f32.mrf.mxu0
    %v1902 = vadd.f32 %v1787, %v1901
    %1903 = vmatmul.bf16.gmra.mxu0 %v1725
    %v1904 = vpop.f32.mrf.mxu0
    %v1905 = vadd.f32 %v1787, %v1904
    %v1906 = vpop.f32.mrf.mxu0
    %v1907 = vadd.f32 %v1787, %v1906
    %1908 = vmatmul.bf16.gmra.mxu0 %v1727
    %v1909 = vpop.f32.mrf.mxu0
    %v1910 = vadd.f32 %v1787, %v1909
    %v1911 = vpop.f32.mrf.mxu0
    %v1912 = vadd.f32 %v1787, %v1911
    %1913 = vmatmul.bf16.gmra.mxu0 %v1729
    %v1914 = vpop.f32.mrf.mxu0
    %v1915 = vadd.f32 %v1787, %v1914
    %v1916 = vpop.f32.mrf.mxu0
    %v1917 = vadd.f32 %v1787, %v1916
    %1918 = vmatmul.bf16.gmra.mxu0 %v1731
    %v1919 = vpop.f32.mrf.mxu0
    %v1920 = vadd.f32 %v1787, %v1919
    %v1921 = vpop.f32.mrf.mxu0
    %v1922 = vadd.f32 %v1787, %v1921
    %1923 = vmatmul.bf16.gmra.mxu0 %v1733
    %v1924 = vpop.f32.mrf.mxu0
    %v1925 = vadd.f32 %v1787, %v1924
    %v1926 = vpop.f32.mrf.mxu0
    %v1927 = vadd.f32 %v1787, %v1926
    %1928 = vmatmul.bf16.gmra.mxu0 %v1735
    %v1929 = vpop.f32.mrf.mxu0
    %v1930 = vadd.f32 %v1787, %v1929
    %v1931 = vpop.f32.mrf.mxu0
    %v1932 = vadd.f32 %v1787, %v1931
    %1933 = vmatmul.bf16.gmra.mxu0 %v1737
    %v1934 = vpop.f32.mrf.mxu0
    %v1935 = vadd.f32 %v1787, %v1934
    %v1936 = vpop.f32.mrf.mxu0
    %v1937 = vadd.f32 %v1787, %v1936
    %1938 = vmatmul.bf16.gmra.mxu0 %v1739
    %v1939 = vpop.f32.mrf.mxu0
    %v1940 = vadd.f32 %v1787, %v1939
    %v1941 = vpop.f32.mrf.mxu0
    %v1942 = vadd.f32 %v1787, %v1941
    %1943 = vmatmul.bf16.gmra.mxu0 %v1741
    %v1944 = vpop.f32.mrf.mxu0
    %v1945 = vadd.f32 %v1787, %v1944
    %v1946 = vpop.f32.mrf.mxu0
    %v1947 = vadd.f32 %v1787, %v1946
    %1948 = vmatmul.bf16.gmra.mxu0 %v1743
    %v1949 = vpop.f32.mrf.mxu0
    %v1950 = vadd.f32 %v1787, %v1949
    %v1951 = vpop.f32.mrf.mxu0
    %v1952 = vadd.f32 %v1787, %v1951
    %1953 = vmatmul.bf16.gmra.mxu0 %v1745
    %v1954 = vpop.f32.mrf.mxu0
    %v1955 = vadd.f32 %v1787, %v1954
    %v1956 = vpop.f32.mrf.mxu0
    %v1957 = vadd.f32 %v1787, %v1956
    %1958 = vmatmul.bf16.gmra.mxu0 %v1747
    %v1959 = vpop.f32.mrf.mxu0
    %v1960 = vadd.f32 %v1787, %v1959
    %v1961 = vpop.f32.mrf.mxu0
    %v1962 = vadd.f32 %v1787, %v1961
    %1963 = vmatmul.bf16.gmra.mxu0 %v1749
    %v1964 = vpop.f32.mrf.mxu0
    %v1965 = vadd.f32 %v1787, %v1964
    %v1966 = vpop.f32.mrf.mxu0
    %v1967 = vadd.f32 %v1787, %v1966
    %1968 = vmatmul.bf16.gmra.mxu0 %v1751
    %v1969 = vpop.f32.mrf.mxu0
    %v1970 = vadd.f32 %v1787, %v1969
    %v1971 = vpop.f32.mrf.mxu0
    %v1972 = vadd.f32 %v1787, %v1971
    %1973 = vdwg.mxu0
    %1974 = vmatpush.bf16.msra.mxu0 %v1868
    %1975 = vmatpush.bf16.msra.mxu0 %v1867
    %1976 = vmatpush.bf16.msra.mxu0 %v1866
    %1977 = vmatpush.bf16.msra.mxu0 %v1865
    %1978 = vmatpush.bf16.msra.mxu0 %v1864
    %1979 = vmatpush.bf16.msra.mxu0 %v1863
    %1980 = vmatpush.bf16.msra.mxu0 %v1862
    %1981 = vmatpush.bf16.msra.mxu0 %v1861
    %1982 = vmatmul.bf16.gmra.mxu0 %v1722
    %v1983 = vpop.f32.mrf.mxu0
    %v1984 = vadd.f32 %v1895, %v1983
    %v1985 = vpop.f32.mrf.mxu0
    %v1986 = vadd.f32 %v1897, %v1985
    %1987 = vmatmul.bf16.gmra.mxu0 %v1724
    %v1988 = vpop.f32.mrf.mxu0
    %v1989 = vadd.f32 %v1900, %v1988
    %v1990 = vpop.f32.mrf.mxu0
    %v1991 = vadd.f32 %v1902, %v1990
    %1992 = vmatmul.bf16.gmra.mxu0 %v1726
    %v1993 = vpop.f32.mrf.mxu0
    %v1994 = vadd.f32 %v1905, %v1993
    %v1995 = vpop.f32.mrf.mxu0
    %v1996 = vadd.f32 %v1907, %v1995
    %1997 = vmatmul.bf16.gmra.mxu0 %v1728
    %v1998 = vpop.f32.mrf.mxu0
    %v1999 = vadd.f32 %v1910, %v1998
    %v2000 = vpop.f32.mrf.mxu0
    %v2001 = vadd.f32 %v1912, %v2000
    %2002 = vmatmul.bf16.gmra.mxu0 %v1730
    %v2003 = vpop.f32.mrf.mxu0
    %v2004 = vadd.f32 %v1915, %v2003
    %v2005 = vpop.f32.mrf.mxu0
    %v2006 = vadd.f32 %v1917, %v2005
    %2007 = vmatmul.bf16.gmra.mxu0 %v1732
    %v2008 = vpop.f32.mrf.mxu0
    %v2009 = vadd.f32 %v1920, %v2008
    %v2010 = vpop.f32.mrf.mxu0
    %v2011 = vadd.f32 %v1922, %v2010
    %2012 = vmatmul.bf16.gmra.mxu0 %v1734
    %v2013 = vpop.f32.mrf.mxu0
    %v2014 = vadd.f32 %v1925, %v2013
    %v2015 = vpop.f32.mrf.mxu0
    %v2016 = vadd.f32 %v1927, %v2015
    %2017 = vmatmul.bf16.gmra.mxu0 %v1736
    %v2018 = vpop.f32.mrf.mxu0
    %v2019 = vadd.f32 %v1930, %v2018
    %v2020 = vpop.f32.mrf.mxu0
    %v2021 = vadd.f32 %v1932, %v2020
    %2022 = vmatmul.bf16.gmra.mxu0 %v1738
    %v2023 = vpop.f32.mrf.mxu0
    %v2024 = vadd.f32 %v1935, %v2023
    %v2025 = vpop.f32.mrf.mxu0
    %v2026 = vadd.f32 %v1937, %v2025
    %2027 = vmatmul.bf16.gmra.mxu0 %v1740
    %v2028 = vpop.f32.mrf.mxu0
    %v2029 = vadd.f32 %v1940, %v2028
    %v2030 = vpop.f32.mrf.mxu0
    %v2031 = vadd.f32 %v1942, %v2030
    %2032 = vmatmul.bf16.gmra.mxu0 %v1742
    %v2033 = vpop.f32.mrf.mxu0
    %v2034 = vadd.f32 %v1945, %v2033
    %v2035 = vpop.f32.mrf.mxu0
    %v2036 = vadd.f32 %v1947, %v2035
    %2037 = vmatmul.bf16.gmra.mxu0 %v1744
    %v2038 = vpop.f32.mrf.mxu0
    %v2039 = vadd.f32 %v1950, %v2038
    %v2040 = vpop.f32.mrf.mxu0
    %v2041 = vadd.f32 %v1952, %v2040
    %2042 = vmatmul.bf16.gmra.mxu0 %v1746
    %v2043 = vpop.f32.mrf.mxu0
    %v2044 = vadd.f32 %v1955, %v2043
    %v2045 = vpop.f32.mrf.mxu0
    %v2046 = vadd.f32 %v1957, %v2045
    %2047 = vmatmul.bf16.gmra.mxu0 %v1748
    %v2048 = vpop.f32.mrf.mxu0
    %v2049 = vadd.f32 %v1960, %v2048
    %v2050 = vpop.f32.mrf.mxu0
    %v2051 = vadd.f32 %v1962, %v2050
    %2052 = vmatmul.bf16.gmra.mxu0 %v1750
    %v2053 = vpop.f32.mrf.mxu0
    %v2054 = vadd.f32 %v1965, %v2053
    %v2055 = vpop.f32.mrf.mxu0
    %v2056 = vadd.f32 %v1967, %v2055
    %2057 = vmatmul.bf16.gmra.mxu0 %v1752
    %v2058 = vpop.f32.mrf.mxu0
    %v2059 = vadd.f32 %v1970, %v2058
    %v2060 = vpop.f32.mrf.mxu0
    %v2061 = vadd.f32 %v1972, %v2060
    %2062 = vdwg.mxu0
    %v2063 = vmax.f32 %v1984, 0.0
    %v2064 = vmax.f32 %v1986, 0.0
    %v2065 = vmax.f32 %v1989, 0.0
    %v2066 = vmax.f32 %v1991, 0.0
    %v2067 = vmax.f32 %v1994, 0.0
    %v2068 = vmax.f32 %v1996, 0.0
    %v2069 = vmax.f32 %v1999, 0.0
    %v2070 = vmax.f32 %v2001, 0.0
    %v2071 = vmax.f32 %v2004, 0.0
    %v2072 = vmax.f32 %v2006, 0.0
    %v2073 = vmax.f32 %v2009, 0.0
    %v2074 = vmax.f32 %v2011, 0.0
    %v2075 = vmax.f32 %v2014, 0.0
    %v2076 = vmax.f32 %v2016, 0.0
    %v2077 = vmax.f32 %v2019, 0.0
    %v2078 = vmax.f32 %v2021, 0.0
    %v2079 = vmax.f32 %v2024, 0.0
    %v2080 = vmax.f32 %v2026, 0.0
    %v2081 = vmax.f32 %v2029, 0.0
    %v2082 = vmax.f32 %v2031, 0.0
    %v2083 = vmax.f32 %v2034, 0.0
    %v2084 = vmax.f32 %v2036, 0.0
    %v2085 = vmax.f32 %v2039, 0.0
    %v2086 = vmax.f32 %v2041, 0.0
    %v2087 = vmax.f32 %v2044, 0.0
    %v2088 = vmax.f32 %v2046, 0.0
    %v2089 = vmax.f32 %v2049, 0.0
    %v2090 = vmax.f32 %v2051, 0.0
    %v2091 = vmax.f32 %v2054, 0.0
    %v2092 = vmax.f32 %v2056, 0.0
    %v2093 = vmax.f32 %v2059, 0.0
    %v2094 = vmax.f32 %v2061, 0.0
    %v2095 = vpack.c.bf16 %v2064, %v2063
    %v2096 = vpack.c.bf16 %v2066, %v2065
    %v2097 = vpack.c.bf16 %v2068, %v2067
    %v2098 = vpack.c.bf16 %v2070, %v2069
    %v2099 = vpack.c.bf16 %v2072, %v2071
    %v2100 = vpack.c.bf16 %v2074, %v2073
    %v2101 = vpack.c.bf16 %v2076, %v2075
    %v2102 = vpack.c.bf16 %v2078, %v2077
    %v2103 = vpack.c.bf16 %v2080, %v2079
    %v2104 = vpack.c.bf16 %v2082, %v2081
    %v2105 = vpack.c.bf16 %v2084, %v2083
    %v2106 = vpack.c.bf16 %v2086, %v2085
    %v2107 = vpack.c.bf16 %v2088, %v2087
    %v2108 = vpack.c.bf16 %v2090, %v2089
    %v2109 = vpack.c.bf16 %v2092, %v2091
    %v2110 = vpack.c.bf16 %v2094, %v2093
    %v2111 = vld [vmem:[#allocation11] sm:$0xf]
    %v2112 = vld [vmem:[#allocation11 + $0x4] sm:$0xf]
    %v2113 = vld [vmem:[#allocation11 + $0x8] sm:$0xf]
    %v2114 = vld [vmem:[#allocation11 + $0xc] sm:$0xf]
    %v2115 = vld [vmem:[#allocation11 + $0x10] sm:$0xf]
    %v2116 = vld [vmem:[#allocation11 + $0x14] sm:$0xf]
    %v2117 = vld [vmem:[#allocation11 + $0x18] sm:$0xf]
    %v2118 = vld [vmem:[#allocation11 + $0x1c] sm:$0xf]
    %v2119 = vld [vmem:[#allocation11 + $0x20] sm:$0xf]
    %v2120 = vld [vmem:[#allocation11 + $0x24] sm:$0xf]
    %v2121 = vld [vmem:[#allocation11 + $0x28] sm:$0xf]
    %v2122 = vld [vmem:[#allocation11 + $0x2c] sm:$0xf]
    %v2123 = vld [vmem:[#allocation11 + $0x30] sm:$0xf]
    %v2124 = vld [vmem:[#allocation11 + $0x34] sm:$0xf]
    %v2125 = vld [vmem:[#allocation11 + $0x38] sm:$0xf]
    %v2126 = vld [vmem:[#allocation11 + $0x3c] sm:$0xf]
    %v2127 = vld [vmem:[%s14] sm:$0x1]
    %v2129 = vperm.slane %v2127, 0
    %v2147 = vunpack.c.l.b16 %v2111
    %v2148 = vunpack.c.l.b16 %v2112
    %v2149 = vunpack.c.l.b16 %v2113
    %v2150 = vunpack.c.l.b16 %v2114
    %v2151 = vunpack.c.l.b16 %v2115
    %v2152 = vunpack.c.l.b16 %v2116
    %v2153 = vunpack.c.l.b16 %v2117
    %v2154 = vunpack.c.l.b16 %v2118
    %v2155 = vunpack.c.l.b16 %v2119
    %v2156 = vunpack.c.l.b16 %v2120
    %v2157 = vunpack.c.l.b16 %v2121
    %v2158 = vunpack.c.l.b16 %v2122
    %v2159 = vunpack.c.l.b16 %v2123
    %v2160 = vunpack.c.l.b16 %v2124
    %v2161 = vunpack.c.l.b16 %v2125
    %v2162 = vunpack.c.l.b16 %v2126
    %v2163 = vpack.c.b16 %v2148, %v2147
    %v2164 = vpack.c.b16 %v2150, %v2149
    %v2165 = vpack.c.b16 %v2152, %v2151
    %v2166 = vpack.c.b16 %v2154, %v2153
    %v2167 = vpack.c.b16 %v2156, %v2155
    %v2168 = vpack.c.b16 %v2158, %v2157
    %v2169 = vpack.c.b16 %v2160, %v2159
    %v2170 = vpack.c.b16 %v2162, %v2161
    %2179 = vmatpush.bf16.msra.mxu0 %v2170
    %2180 = vmatpush.bf16.msra.mxu0 %v2169
    %2181 = vmatpush.bf16.msra.mxu0 %v2168
    %2182 = vmatpush.bf16.msra.mxu0 %v2167
    %2183 = vmatpush.bf16.msra.mxu0 %v2166
    %2184 = vmatpush.bf16.msra.mxu0 %v2165
    %2185 = vmatpush.bf16.msra.mxu0 %v2164
    %2186 = vmatpush.bf16.msra.mxu0 %v2163
    %2187 = vmatmul.bf16.gmra.mxu0 %v2095
    %v2188 = vpop.f32.mrf.mxu0
    %v2189 = vadd.f32 %v2129, %v2188
    %v2190 = vpop.f32.mrf.mxu0
    %v2191 = vadd.f32 %v2129, %v2190
    %2192 = vmatmul.bf16.gmra.mxu0 %v2096
    %v2193 = vpop.f32.mrf.mxu0
    %v2194 = vadd.f32 %v2129, %v2193
    %v2195 = vpop.f32.mrf.mxu0
    %v2196 = vadd.f32 %v2129, %v2195
    %2197 = vmatmul.bf16.gmra.mxu0 %v2097
    %v2198 = vpop.f32.mrf.mxu0
    %v2199 = vadd.f32 %v2129, %v2198
    %v2200 = vpop.f32.mrf.mxu0
    %v2201 = vadd.f32 %v2129, %v2200
    %2202 = vmatmul.bf16.gmra.mxu0 %v2098
    %v2203 = vpop.f32.mrf.mxu0
    %v2204 = vadd.f32 %v2129, %v2203
    %v2205 = vpop.f32.mrf.mxu0
    %v2206 = vadd.f32 %v2129, %v2205
    %2207 = vmatmul.bf16.gmra.mxu0 %v2099
    %v2208 = vpop.f32.mrf.mxu0
    %v2209 = vadd.f32 %v2129, %v2208
    %v2210 = vpop.f32.mrf.mxu0
    %v2211 = vadd.f32 %v2129, %v2210
    %2212 = vmatmul.bf16.gmra.mxu0 %v2100
    %v2213 = vpop.f32.mrf.mxu0
    %v2214 = vadd.f32 %v2129, %v2213
    %v2215 = vpop.f32.mrf.mxu0
    %v2216 = vadd.f32 %v2129, %v2215
    %2217 = vmatmul.bf16.gmra.mxu0 %v2101
    %v2218 = vpop.f32.mrf.mxu0
    %v2219 = vadd.f32 %v2129, %v2218
    %v2220 = vpop.f32.mrf.mxu0
    %v2221 = vadd.f32 %v2129, %v2220
    %2222 = vmatmul.bf16.gmra.mxu0 %v2102
    %v2223 = vpop.f32.mrf.mxu0
    %v2224 = vadd.f32 %v2129, %v2223
    %v2225 = vpop.f32.mrf.mxu0
    %v2226 = vadd.f32 %v2129, %v2225
    %2227 = vmatmul.bf16.gmra.mxu0 %v2103
    %v2228 = vpop.f32.mrf.mxu0
    %v2229 = vadd.f32 %v2129, %v2228
    %v2230 = vpop.f32.mrf.mxu0
    %v2231 = vadd.f32 %v2129, %v2230
    %2232 = vmatmul.bf16.gmra.mxu0 %v2104
    %v2233 = vpop.f32.mrf.mxu0
    %v2234 = vadd.f32 %v2129, %v2233
    %v2235 = vpop.f32.mrf.mxu0
    %v2236 = vadd.f32 %v2129, %v2235
    %2237 = vmatmul.bf16.gmra.mxu0 %v2105
    %v2238 = vpop.f32.mrf.mxu0
    %v2239 = vadd.f32 %v2129, %v2238
    %v2240 = vpop.f32.mrf.mxu0
    %v2241 = vadd.f32 %v2129, %v2240
    %2242 = vmatmul.bf16.gmra.mxu0 %v2106
    %v2243 = vpop.f32.mrf.mxu0
    %v2244 = vadd.f32 %v2129, %v2243
    %v2245 = vpop.f32.mrf.mxu0
    %v2246 = vadd.f32 %v2129, %v2245
    %2247 = vmatmul.bf16.gmra.mxu0 %v2107
    %v2248 = vpop.f32.mrf.mxu0
    %v2249 = vadd.f32 %v2129, %v2248
    %v2250 = vpop.f32.mrf.mxu0
    %v2251 = vadd.f32 %v2129, %v2250
    %2252 = vmatmul.bf16.gmra.mxu0 %v2108
    %v2253 = vpop.f32.mrf.mxu0
    %v2254 = vadd.f32 %v2129, %v2253
    %v2255 = vpop.f32.mrf.mxu0
    %v2256 = vadd.f32 %v2129, %v2255
    %2257 = vmatmul.bf16.gmra.mxu0 %v2109
    %v2258 = vpop.f32.mrf.mxu0
    %v2259 = vadd.f32 %v2129, %v2258
    %v2260 = vpop.f32.mrf.mxu0
    %v2261 = vadd.f32 %v2129, %v2260
    %2262 = vmatmul.bf16.gmra.mxu0 %v2110
    %v2263 = vpop.f32.mrf.mxu0
    %v2264 = vadd.f32 %v2129, %v2263
    %v2265 = vpop.f32.mrf.mxu0
    %v2266 = vadd.f32 %v2129, %v2265
    %2267 = vdwg.mxu0
    %v2268 = vmax.f32 %v2189, 0.0
    %v2269 = vmax.f32 %v2191, 0.0
    %v2270 = vmax.f32 %v2194, 0.0
    %v2271 = vmax.f32 %v2196, 0.0
    %v2272 = vmax.f32 %v2199, 0.0
    %v2273 = vmax.f32 %v2201, 0.0
    %v2274 = vmax.f32 %v2204, 0.0
    %v2275 = vmax.f32 %v2206, 0.0
    %v2276 = vmax.f32 %v2209, 0.0
    %v2277 = vmax.f32 %v2211, 0.0
    %v2278 = vmax.f32 %v2214, 0.0
    %v2279 = vmax.f32 %v2216, 0.0
    %v2280 = vmax.f32 %v2219, 0.0
    %v2281 = vmax.f32 %v2221, 0.0
    %v2282 = vmax.f32 %v2224, 0.0
    %v2283 = vmax.f32 %v2226, 0.0
    %v2284 = vmax.f32 %v2229, 0.0
    %v2285 = vmax.f32 %v2231, 0.0
    %v2286 = vmax.f32 %v2234, 0.0
    %v2287 = vmax.f32 %v2236, 0.0
    %v2288 = vmax.f32 %v2239, 0.0
    %v2289 = vmax.f32 %v2241, 0.0
    %v2290 = vmax.f32 %v2244, 0.0
    %v2291 = vmax.f32 %v2246, 0.0
    %v2292 = vmax.f32 %v2249, 0.0
    %v2293 = vmax.f32 %v2251, 0.0
    %v2294 = vmax.f32 %v2254, 0.0
    %v2295 = vmax.f32 %v2256, 0.0
    %v2296 = vmax.f32 %v2259, 0.0
    %v2297 = vmax.f32 %v2261, 0.0
    %v2298 = vmax.f32 %v2264, 0.0
    %v2299 = vmax.f32 %v2266, 0.0
    %v2300 = vpack.c.bf16 %v2269, %v2268
    %v2301 = vpack.c.bf16 %v2271, %v2270
    %v2302 = vpack.c.bf16 %v2273, %v2272
    %v2303 = vpack.c.bf16 %v2275, %v2274
    %v2304 = vpack.c.bf16 %v2277, %v2276
    %v2305 = vpack.c.bf16 %v2279, %v2278
    %v2306 = vpack.c.bf16 %v2281, %v2280
    %v2307 = vpack.c.bf16 %v2283, %v2282
    %v2308 = vpack.c.bf16 %v2285, %v2284
    %v2309 = vpack.c.bf16 %v2287, %v2286
    %v2310 = vpack.c.bf16 %v2289, %v2288
    %v2311 = vpack.c.bf16 %v2291, %v2290
    %v2312 = vpack.c.bf16 %v2293, %v2292
    %v2313 = vpack.c.bf16 %v2295, %v2294
    %v2314 = vpack.c.bf16 %v2297, %v2296
    %v2315 = vpack.c.bf16 %v2299, %v2298
    %v2316 = vld [vmem:[#allocation13] sm:$0xf]
    %v2317 = vld [vmem:[#allocation13 + $0x4] sm:$0xf]
    %v2318 = vld [vmem:[#allocation13 + $0x8] sm:$0xf]
    %v2319 = vld [vmem:[#allocation13 + $0xc] sm:$0xf]
    %v2320 = vld [vmem:[#allocation13 + $0x10] sm:$0xf]
    %v2321 = vld [vmem:[#allocation13 + $0x14] sm:$0xf]
    %v2322 = vld [vmem:[#allocation13 + $0x18] sm:$0xf]
    %v2323 = vld [vmem:[#allocation13 + $0x1c] sm:$0xf]
    %v2324 = vld [vmem:[#allocation13 + $0x20] sm:$0xf]
    %v2325 = vld [vmem:[#allocation13 + $0x24] sm:$0xf]
    %v2326 = vld [vmem:[#allocation13 + $0x28] sm:$0xf]
    %v2327 = vld [vmem:[#allocation13 + $0x2c] sm:$0xf]
    %v2328 = vld [vmem:[#allocation13 + $0x30] sm:$0xf]
    %v2329 = vld [vmem:[#allocation13 + $0x34] sm:$0xf]
    %v2330 = vld [vmem:[#allocation13 + $0x38] sm:$0xf]
    %v2331 = vld [vmem:[#allocation13 + $0x3c] sm:$0xf]
    %v2332 = vld [vmem:[%s16] sm:$0x1]
    %v2334 = vperm.slane %v2332, 0
    %v2352 = vunpack.c.l.b16 %v2316
    %v2353 = vunpack.c.l.b16 %v2317
    %v2354 = vunpack.c.l.b16 %v2318
    %v2355 = vunpack.c.l.b16 %v2319
    %v2356 = vunpack.c.l.b16 %v2320
    %v2357 = vunpack.c.l.b16 %v2321
    %v2358 = vunpack.c.l.b16 %v2322
    %v2359 = vunpack.c.l.b16 %v2323
    %v2360 = vunpack.c.l.b16 %v2324
    %v2361 = vunpack.c.l.b16 %v2325
    %v2362 = vunpack.c.l.b16 %v2326
    %v2363 = vunpack.c.l.b16 %v2327
    %v2364 = vunpack.c.l.b16 %v2328
    %v2365 = vunpack.c.l.b16 %v2329
    %v2366 = vunpack.c.l.b16 %v2330
    %v2367 = vunpack.c.l.b16 %v2331
    %v2368 = vpack.c.b16 %v2353, %v2352
    %v2369 = vpack.c.b16 %v2355, %v2354
    %v2370 = vpack.c.b16 %v2357, %v2356
    %v2371 = vpack.c.b16 %v2359, %v2358
    %v2372 = vpack.c.b16 %v2361, %v2360
    %v2373 = vpack.c.b16 %v2363, %v2362
    %v2374 = vpack.c.b16 %v2365, %v2364
    %v2375 = vpack.c.b16 %v2367, %v2366
    %2384 = vmatpush.bf16.msra.mxu0 %v2375
    %2385 = vmatpush.bf16.msra.mxu0 %v2374
    %2386 = vmatpush.bf16.msra.mxu0 %v2373
    %2387 = vmatpush.bf16.msra.mxu0 %v2372
    %2388 = vmatpush.bf16.msra.mxu0 %v2371
    %2389 = vmatpush.bf16.msra.mxu0 %v2370
    %2390 = vmatpush.bf16.msra.mxu0 %v2369
    %2391 = vmatpush.bf16.msra.mxu0 %v2368
    %2392 = vmatmul.bf16.gmra.mxu0 %v2300
    %v2393 = vpop.f32.mrf.mxu0
    %v2394 = vadd.f32 %v2334, %v2393
    %v2395 = vpop.f32.mrf.mxu0
    %v2396 = vadd.f32 %v2334, %v2395
    %2397 = vmatmul.bf16.gmra.mxu0 %v2301
    %v2398 = vpop.f32.mrf.mxu0
    %v2399 = vadd.f32 %v2334, %v2398
    %v2400 = vpop.f32.mrf.mxu0
    %v2401 = vadd.f32 %v2334, %v2400
    %2402 = vmatmul.bf16.gmra.mxu0 %v2302
    %v2403 = vpop.f32.mrf.mxu0
    %v2404 = vadd.f32 %v2334, %v2403
    %v2405 = vpop.f32.mrf.mxu0
    %v2406 = vadd.f32 %v2334, %v2405
    %2407 = vmatmul.bf16.gmra.mxu0 %v2303
    %v2408 = vpop.f32.mrf.mxu0
    %v2409 = vadd.f32 %v2334, %v2408
    %v2410 = vpop.f32.mrf.mxu0
    %v2411 = vadd.f32 %v2334, %v2410
    %2412 = vmatmul.bf16.gmra.mxu0 %v2304
    %v2413 = vpop.f32.mrf.mxu0
    %v2414 = vadd.f32 %v2334, %v2413
    %v2415 = vpop.f32.mrf.mxu0
    %v2416 = vadd.f32 %v2334, %v2415
    %2417 = vmatmul.bf16.gmra.mxu0 %v2305
    %v2418 = vpop.f32.mrf.mxu0
    %v2419 = vadd.f32 %v2334, %v2418
    %v2420 = vpop.f32.mrf.mxu0
    %v2421 = vadd.f32 %v2334, %v2420
    %2422 = vmatmul.bf16.gmra.mxu0 %v2306
    %v2423 = vpop.f32.mrf.mxu0
    %v2424 = vadd.f32 %v2334, %v2423
    %v2425 = vpop.f32.mrf.mxu0
    %v2426 = vadd.f32 %v2334, %v2425
    %2427 = vmatmul.bf16.gmra.mxu0 %v2307
    %v2428 = vpop.f32.mrf.mxu0
    %v2429 = vadd.f32 %v2334, %v2428
    %v2430 = vpop.f32.mrf.mxu0
    %v2431 = vadd.f32 %v2334, %v2430
    %2432 = vmatmul.bf16.gmra.mxu0 %v2308
    %v2433 = vpop.f32.mrf.mxu0
    %v2434 = vadd.f32 %v2334, %v2433
    %v2435 = vpop.f32.mrf.mxu0
    %v2436 = vadd.f32 %v2334, %v2435
    %2437 = vmatmul.bf16.gmra.mxu0 %v2309
    %v2438 = vpop.f32.mrf.mxu0
    %v2439 = vadd.f32 %v2334, %v2438
    %v2440 = vpop.f32.mrf.mxu0
    %v2441 = vadd.f32 %v2334, %v2440
    %2442 = vmatmul.bf16.gmra.mxu0 %v2310
    %v2443 = vpop.f32.mrf.mxu0
    %v2444 = vadd.f32 %v2334, %v2443
    %v2445 = vpop.f32.mrf.mxu0
    %v2446 = vadd.f32 %v2334, %v2445
    %2447 = vmatmul.bf16.gmra.mxu0 %v2311
    %v2448 = vpop.f32.mrf.mxu0
    %v2449 = vadd.f32 %v2334, %v2448
    %v2450 = vpop.f32.mrf.mxu0
    %v2451 = vadd.f32 %v2334, %v2450
    %2452 = vmatmul.bf16.gmra.mxu0 %v2312
    %v2453 = vpop.f32.mrf.mxu0
    %v2454 = vadd.f32 %v2334, %v2453
    %v2455 = vpop.f32.mrf.mxu0
    %v2456 = vadd.f32 %v2334, %v2455
    %2457 = vmatmul.bf16.gmra.mxu0 %v2313
    %v2458 = vpop.f32.mrf.mxu0
    %v2459 = vadd.f32 %v2334, %v2458
    %v2460 = vpop.f32.mrf.mxu0
    %v2461 = vadd.f32 %v2334, %v2460
    %2462 = vmatmul.bf16.gmra.mxu0 %v2314
    %v2463 = vpop.f32.mrf.mxu0
    %v2464 = vadd.f32 %v2334, %v2463
    %v2465 = vpop.f32.mrf.mxu0
    %v2466 = vadd.f32 %v2334, %v2465
    %2467 = vmatmul.bf16.gmra.mxu0 %v2315
    %v2468 = vpop.f32.mrf.mxu0
    %v2469 = vadd.f32 %v2334, %v2468
    %v2470 = vpop.f32.mrf.mxu0
    %v2471 = vadd.f32 %v2334, %v2470
    %2472 = vdwg.mxu0
    %2473 = vst [vmem:[#allocation14] sm:$0xff] %v2394
    %2474 = vst [vmem:[#allocation14 + $0x8] sm:$0xff] %v2396
    %2475 = vst [vmem:[#allocation14 + $0x10] sm:$0xff] %v2399
    %2476 = vst [vmem:[#allocation14 + $0x18] sm:$0xff] %v2401
    %2477 = vst [vmem:[#allocation14 + $0x20] sm:$0xff] %v2404
    %2478 = vst [vmem:[#allocation14 + $0x28] sm:$0xff] %v2406
    %2479 = vst [vmem:[#allocation14 + $0x30] sm:$0xff] %v2409
    %2480 = vst [vmem:[#allocation14 + $0x38] sm:$0xff] %v2411
    %2481 = vst [vmem:[#allocation14 + $0x40] sm:$0xff] %v2414
    %2482 = vst [vmem:[#allocation14 + $0x48] sm:$0xff] %v2416
    %2483 = vst [vmem:[#allocation14 + $0x50] sm:$0xff] %v2419
    %2484 = vst [vmem:[#allocation14 + $0x58] sm:$0xff] %v2421
    %2485 = vst [vmem:[#allocation14 + $0x60] sm:$0xff] %v2424
    %2486 = vst [vmem:[#allocation14 + $0x68] sm:$0xff] %v2426
    %2487 = vst [vmem:[#allocation14 + $0x70] sm:$0xff] %v2429
    %2488 = vst [vmem:[#allocation14 + $0x78] sm:$0xff] %v2431
    %2489 = vst [vmem:[#allocation14 + $0x80] sm:$0xff] %v2434
    %2490 = vst [vmem:[#allocation14 + $0x88] sm:$0xff] %v2436
    %2491 = vst [vmem:[#allocation14 + $0x90] sm:$0xff] %v2439
    %2492 = vst [vmem:[#allocation14 + $0x98] sm:$0xff] %v2441
    %2493 = vst [vmem:[#allocation14 + $0xa0] sm:$0xff] %v2444
    %2494 = vst [vmem:[#allocation14 + $0xa8] sm:$0xff] %v2446
    %2495 = vst [vmem:[#allocation14 + $0xb0] sm:$0xff] %v2449
    %2496 = vst [vmem:[#allocation14 + $0xb8] sm:$0xff] %v2451
    %2497 = vst [vmem:[#allocation14 + $0xc0] sm:$0xff] %v2454
    %2498 = vst [vmem:[#allocation14 + $0xc8] sm:$0xff] %v2456
    %2499 = vst [vmem:[#allocation14 + $0xd0] sm:$0xff] %v2459
    %2500 = vst [vmem:[#allocation14 + $0xd8] sm:$0xff] %v2461
    %2501 = vst [vmem:[#allocation14 + $0xe0] sm:$0xff] %v2464
    %2502 = vst [vmem:[#allocation14 + $0xe8] sm:$0xff] %v2466
    %2503 = vst [vmem:[#allocation14 + $0xf0] sm:$0xff] %v2469
    %2504 = vst [vmem:[#allocation14 + $0xf8] sm:$0xff] %v2471
    %2505 = vst [vmem:[#allocation15] sm:$0xff] %v457
    %2506 = vst [vmem:[#allocation15 + $0x8] sm:$0xff] %v458
    %2507 = vst [vmem:[#allocation15 + $0x10] sm:$0xff] %v459
    %2508 = vst [vmem:[#allocation15 + $0x18] sm:$0xff] %v460
    %2509 = vst [vmem:[#allocation15 + $0x20] sm:$0xff] %v461
    %2510 = vst [vmem:[#allocation15 + $0x28] sm:$0xff] %v462
    %2511 = vst [vmem:[#allocation15 + $0x30] sm:$0xff] %v463
    %2512 = vst [vmem:[#allocation15 + $0x38] sm:$0xff] %v464
    %2513 = vst [vmem:[#allocation15 + $0x40] sm:$0xff] %v465
    %2514 = vst [vmem:[#allocation15 + $0x48] sm:$0xff] %v466
    %2515 = vst [vmem:[#allocation15 + $0x50] sm:$0xff] %v467
    %2516 = vst [vmem:[#allocation15 + $0x58] sm:$0xff] %v468
    %2517 = vst [vmem:[#allocation15 + $0x60] sm:$0xff] %v469
    %2518 = vst [vmem:[#allocation15 + $0x68] sm:$0xff] %v470
    %2519 = vst [vmem:[#allocation15 + $0x70] sm:$0xff] %v471
    %2520 = vst [vmem:[#allocation15 + $0x78] sm:$0xff] %v472
    %2521 = vst [vmem:[#allocation15 + $0x80] sm:$0xff] %v473
    %2522 = vst [vmem:[#allocation15 + $0x88] sm:$0xff] %v474
    %2523 = vst [vmem:[#allocation15 + $0x90] sm:$0xff] %v475
    %2524 = vst [vmem:[#allocation15 + $0x98] sm:$0xff] %v476
    %2525 = vst [vmem:[#allocation15 + $0xa0] sm:$0xff] %v477
    %2526 = vst [vmem:[#allocation15 + $0xa8] sm:$0xff] %v478
    %2527 = vst [vmem:[#allocation15 + $0xb0] sm:$0xff] %v479
    %2528 = vst [vmem:[#allocation15 + $0xb8] sm:$0xff] %v480
    %2529 = vst [vmem:[#allocation15 + $0xc0] sm:$0xff] %v481
    %2530 = vst [vmem:[#allocation15 + $0xc8] sm:$0xff] %v482
    %2531 = vst [vmem:[#allocation15 + $0xd0] sm:$0xff] %v483
    %2532 = vst [vmem:[#allocation15 + $0xd8] sm:$0xff] %v484
    %2533 = vst [vmem:[#allocation15 + $0xe0] sm:$0xff] %v485
    %2534 = vst [vmem:[#allocation15 + $0xe8] sm:$0xff] %v486
    %2535 = vst [vmem:[#allocation15 + $0xf0] sm:$0xff] %v487
    %2536 = vst [vmem:[#allocation15 + $0xf8] sm:$0xff] %v488
    %2537 = vst [vmem:[#allocation17] sm:$0xff] %v662
    %2538 = vst [vmem:[#allocation17 + $0x8] sm:$0xff] %v663
    %2539 = vst [vmem:[#allocation17 + $0x10] sm:$0xff] %v664
    %2540 = vst [vmem:[#allocation17 + $0x18] sm:$0xff] %v665
    %2541 = vst [vmem:[#allocation17 + $0x20] sm:$0xff] %v666
    %2542 = vst [vmem:[#allocation17 + $0x28] sm:$0xff] %v667
    %2543 = vst [vmem:[#allocation17 + $0x30] sm:$0xff] %v668
    %2544 = vst [vmem:[#allocation17 + $0x38] sm:$0xff] %v669
    %2545 = vst [vmem:[#allocation17 + $0x40] sm:$0xff] %v670
    %2546 = vst [vmem:[#allocation17 + $0x48] sm:$0xff] %v671
    %2547 = vst [vmem:[#allocation17 + $0x50] sm:$0xff] %v672
    %2548 = vst [vmem:[#allocation17 + $0x58] sm:$0xff] %v673
    %2549 = vst [vmem:[#allocation17 + $0x60] sm:$0xff] %v674
    %2550 = vst [vmem:[#allocation17 + $0x68] sm:$0xff] %v675
    %2551 = vst [vmem:[#allocation17 + $0x70] sm:$0xff] %v676
    %2552 = vst [vmem:[#allocation17 + $0x78] sm:$0xff] %v677
    %2553 = vst [vmem:[#allocation17 + $0x80] sm:$0xff] %v678
    %2554 = vst [vmem:[#allocation17 + $0x88] sm:$0xff] %v679
    %2555 = vst [vmem:[#allocation17 + $0x90] sm:$0xff] %v680
    %2556 = vst [vmem:[#allocation17 + $0x98] sm:$0xff] %v681
    %2557 = vst [vmem:[#allocation17 + $0xa0] sm:$0xff] %v682
    %2558 = vst [vmem:[#allocation17 + $0xa8] sm:$0xff] %v683
    %2559 = vst [vmem:[#allocation17 + $0xb0] sm:$0xff] %v684
    %2560 = vst [vmem:[#allocation17 + $0xb8] sm:$0xff] %v685
    %2561 = vst [vmem:[#allocation17 + $0xc0] sm:$0xff] %v686
    %2562 = vst [vmem:[#allocation17 + $0xc8] sm:$0xff] %v687
    %2563 = vst [vmem:[#allocation17 + $0xd0] sm:$0xff] %v688
    %2564 = vst [vmem:[#allocation17 + $0xd8] sm:$0xff] %v689
    %2565 = vst [vmem:[#allocation17 + $0xe0] sm:$0xff] %v690
    %2566 = vst [vmem:[#allocation17 + $0xe8] sm:$0xff] %v691
    %2567 = vst [vmem:[#allocation17 + $0xf0] sm:$0xff] %v692
    %2568 = vst [vmem:[#allocation17 + $0xf8] sm:$0xff] %v693
    %2569 = vst [vmem:[#allocation18] sm:$0xff] %v990
    %2570 = vst [vmem:[#allocation18 + $0x8] sm:$0xff] %v991
    %2571 = vst [vmem:[#allocation18 + $0x10] sm:$0xff] %v992
    %2572 = vst [vmem:[#allocation18 + $0x18] sm:$0xff] %v993
    %2573 = vst [vmem:[#allocation18 + $0x20] sm:$0xff] %v994
    %2574 = vst [vmem:[#allocation18 + $0x28] sm:$0xff] %v995
    %2575 = vst [vmem:[#allocation18 + $0x30] sm:$0xff] %v996
    %2576 = vst [vmem:[#allocation18 + $0x38] sm:$0xff] %v997
    %2577 = vst [vmem:[#allocation18 + $0x40] sm:$0xff] %v998
    %2578 = vst [vmem:[#allocation18 + $0x48] sm:$0xff] %v999
    %2579 = vst [vmem:[#allocation18 + $0x50] sm:$0xff] %v1000
    %2580 = vst [vmem:[#allocation18 + $0x58] sm:$0xff] %v1001
    %2581 = vst [vmem:[#allocation18 + $0x60] sm:$0xff] %v1002
    %2582 = vst [vmem:[#allocation18 + $0x68] sm:$0xff] %v1003
    %2583 = vst [vmem:[#allocation18 + $0x70] sm:$0xff] %v1004
    %2584 = vst [vmem:[#allocation18 + $0x78] sm:$0xff] %v1005
    %2585 = vst [vmem:[#allocation18 + $0x80] sm:$0xff] %v1006
    %2586 = vst [vmem:[#allocation18 + $0x88] sm:$0xff] %v1007
    %2587 = vst [vmem:[#allocation18 + $0x90] sm:$0xff] %v1008
    %2588 = vst [vmem:[#allocation18 + $0x98] sm:$0xff] %v1009
    %2589 = vst [vmem:[#allocation18 + $0xa0] sm:$0xff] %v1010
    %2590 = vst [vmem:[#allocation18 + $0xa8] sm:$0xff] %v1011
    %2591 = vst [vmem:[#allocation18 + $0xb0] sm:$0xff] %v1012
    %2592 = vst [vmem:[#allocation18 + $0xb8] sm:$0xff] %v1013
    %2593 = vst [vmem:[#allocation18 + $0xc0] sm:$0xff] %v1014
    %2594 = vst [vmem:[#allocation18 + $0xc8] sm:$0xff] %v1015
    %2595 = vst [vmem:[#allocation18 + $0xd0] sm:$0xff] %v1016
    %2596 = vst [vmem:[#allocation18 + $0xd8] sm:$0xff] %v1017
    %2597 = vst [vmem:[#allocation18 + $0xe0] sm:$0xff] %v1018
    %2598 = vst [vmem:[#allocation18 + $0xe8] sm:$0xff] %v1019
    %2599 = vst [vmem:[#allocation18 + $0xf0] sm:$0xff] %v1020
    %2600 = vst [vmem:[#allocation18 + $0xf8] sm:$0xff] %v1021
    %2601 = vst [vmem:[#allocation18 + $0x100] sm:$0xff] %v1022
    %2602 = vst [vmem:[#allocation18 + $0x108] sm:$0xff] %v1023
    %2603 = vst [vmem:[#allocation18 + $0x110] sm:$0xff] %v1024
    %2604 = vst [vmem:[#allocation18 + $0x118] sm:$0xff] %v1025
    %2605 = vst [vmem:[#allocation18 + $0x120] sm:$0xff] %v1026
    %2606 = vst [vmem:[#allocation18 + $0x128] sm:$0xff] %v1027
    %2607 = vst [vmem:[#allocation18 + $0x130] sm:$0xff] %v1028
    %2608 = vst [vmem:[#allocation18 + $0x138] sm:$0xff] %v1029
    %2609 = vst [vmem:[#allocation18 + $0x140] sm:$0xff] %v1030
    %2610 = vst [vmem:[#allocation18 + $0x148] sm:$0xff] %v1031
    %2611 = vst [vmem:[#allocation18 + $0x150] sm:$0xff] %v1032
    %2612 = vst [vmem:[#allocation18 + $0x158] sm:$0xff] %v1033
    %2613 = vst [vmem:[#allocation18 + $0x160] sm:$0xff] %v1034
    %2614 = vst [vmem:[#allocation18 + $0x168] sm:$0xff] %v1035
    %2615 = vst [vmem:[#allocation18 + $0x170] sm:$0xff] %v1036
    %2616 = vst [vmem:[#allocation18 + $0x178] sm:$0xff] %v1037
    %2617 = vst [vmem:[#allocation18 + $0x180] sm:$0xff] %v1038
    %2618 = vst [vmem:[#allocation18 + $0x188] sm:$0xff] %v1039
    %2619 = vst [vmem:[#allocation18 + $0x190] sm:$0xff] %v1040
    %2620 = vst [vmem:[#allocation18 + $0x198] sm:$0xff] %v1041
    %2621 = vst [vmem:[#allocation18 + $0x1a0] sm:$0xff] %v1042
    %2622 = vst [vmem:[#allocation18 + $0x1a8] sm:$0xff] %v1043
    %2623 = vst [vmem:[#allocation18 + $0x1b0] sm:$0xff] %v1044
    %2624 = vst [vmem:[#allocation18 + $0x1b8] sm:$0xff] %v1045
    %2625 = vst [vmem:[#allocation18 + $0x1c0] sm:$0xff] %v1046
    %2626 = vst [vmem:[#allocation18 + $0x1c8] sm:$0xff] %v1047
    %2627 = vst [vmem:[#allocation18 + $0x1d0] sm:$0xff] %v1048
    %2628 = vst [vmem:[#allocation18 + $0x1d8] sm:$0xff] %v1049
    %2629 = vst [vmem:[#allocation18 + $0x1e0] sm:$0xff] %v1050
    %2630 = vst [vmem:[#allocation18 + $0x1e8] sm:$0xff] %v1051
    %2631 = vst [vmem:[#allocation18 + $0x1f0] sm:$0xff] %v1052
    %2632 = vst [vmem:[#allocation18 + $0x1f8] sm:$0xff] %v1053
    %2633 = vst.msk [vmem:[%s21] sm:$0xff] %vm1430, %v1317
    %2634 = vst.msk [vmem:[%s21 + $0x8] sm:$0xff] %vm1430, %v1319
    %2635 = vst.msk [vmem:[%s21 + $0x10] sm:$0xff] %vm1430, %v1322
    %2636 = vst.msk [vmem:[%s21 + $0x18] sm:$0xff] %vm1430, %v1324
    %2637 = vst.msk [vmem:[%s21 + $0x20] sm:$0xff] %vm1430, %v1327
    %2638 = vst.msk [vmem:[%s21 + $0x28] sm:$0xff] %vm1430, %v1329
    %2639 = vst.msk [vmem:[%s21 + $0x30] sm:$0xff] %vm1430, %v1332
    %2640 = vst.msk [vmem:[%s21 + $0x38] sm:$0xff] %vm1430, %v1334
    %2641 = vst.msk [vmem:[%s21 + $0x40] sm:$0xff] %vm1430, %v1337
    %2642 = vst.msk [vmem:[%s21 + $0x48] sm:$0xff] %vm1430, %v1339
    %2643 = vst.msk [vmem:[%s21 + $0x50] sm:$0xff] %vm1430, %v1342
    %2644 = vst.msk [vmem:[%s21 + $0x58] sm:$0xff] %vm1430, %v1344
    %2645 = vst.msk [vmem:[%s21 + $0x60] sm:$0xff] %vm1430, %v1347
    %2646 = vst.msk [vmem:[%s21 + $0x68] sm:$0xff] %vm1430, %v1349
    %2647 = vst.msk [vmem:[%s21 + $0x70] sm:$0xff] %vm1430, %v1352
    %2648 = vst.msk [vmem:[%s21 + $0x78] sm:$0xff] %vm1430, %v1354
    %2649 = vst.msk [vmem:[%s21 + $0x80] sm:$0xff] %vm1430, %v1357
    %2650 = vst.msk [vmem:[%s21 + $0x88] sm:$0xff] %vm1430, %v1359
    %2651 = vst.msk [vmem:[%s21 + $0x90] sm:$0xff] %vm1430, %v1362
    %2652 = vst.msk [vmem:[%s21 + $0x98] sm:$0xff] %vm1430, %v1364
    %2653 = vst.msk [vmem:[%s21 + $0xa0] sm:$0xff] %vm1430, %v1367
    %2654 = vst.msk [vmem:[%s21 + $0xa8] sm:$0xff] %vm1430, %v1369
    %2655 = vst.msk [vmem:[%s21 + $0xb0] sm:$0xff] %vm1430, %v1372
    %2656 = vst.msk [vmem:[%s21 + $0xb8] sm:$0xff] %vm1430, %v1374
    %2657 = vst.msk [vmem:[%s21 + $0xc0] sm:$0xff] %vm1430, %v1377
    %2658 = vst.msk [vmem:[%s21 + $0xc8] sm:$0xff] %vm1430, %v1379
    %2659 = vst.msk [vmem:[%s21 + $0xd0] sm:$0xff] %vm1430, %v1382
    %2660 = vst.msk [vmem:[%s21 + $0xd8] sm:$0xff] %vm1430, %v1384
    %2661 = vst.msk [vmem:[%s21 + $0xe0] sm:$0xff] %vm1430, %v1387
    %2662 = vst.msk [vmem:[%s21 + $0xe8] sm:$0xff] %vm1430, %v1389
    %2663 = vst.msk [vmem:[%s21 + $0xf0] sm:$0xff] %vm1430, %v1392
    %2664 = vst.msk [vmem:[%s21 + $0xf8] sm:$0xff] %vm1430, %v1394
    // Predicated region
    $region98: #{tpu_custom_call.1} parent=1 // pred_check
      _
    $region99: #{tpu_custom_call.1} parent=1 // pred_check_branch
      %2666 = sbr.rel (0) target = $region101
    $region100: #{tpu_custom_call.1} parent=1 // pred_region
      %2668 = vsyncadd [#allocation4], 0
      %s2669 = sshll.u32 [#allocation14], 4
      %s2670 = int_to_ptr.vmem [resolvable:$true] %s2669
      %s2671 = sshll.u32 %s17, 4
      %s2672 = int_to_ptr.hbm [resolvable:$true] %s2671
      %2677 = dma.vmem_to_hbm [thread:$0]  %s2670, 4096, %s2672, [#allocation4], 128, 128, 8
    $region101: #{tpu_custom_call.1} parent=1 // pred_fallthru
      _
    // Predicated region
    $region102: #{tpu_custom_call.1} parent=1 // pred_check
      _
    $region103: #{tpu_custom_call.1} parent=1 // pred_check_branch
      %2679 = sbr.rel (0) target = $region105
    $region104: #{tpu_custom_call.1} parent=1 // pred_region
      %2681 = vsyncadd [#allocation16], 0
      %s2682 = sshll.u32 [#allocation15], 4
      %s2683 = int_to_ptr.vmem [resolvable:$true] %s2682
      %s2684 = sshll.u32 %s18, 4
      %s2685 = int_to_ptr.hbm [resolvable:$true] %s2684
      %2690 = dma.vmem_to_hbm [thread:$0]  %s2683, 4096, %s2685, [#allocation16], 128, 128, 8
    $region105: #{tpu_custom_call.1} parent=1 // pred_fallthru
      _
    // Predicated region
    $region106: #{tpu_custom_call.1} parent=1 // pred_check
      _
    $region107: #{tpu_custom_call.1} parent=1 // pred_check_branch
      %2692 = sbr.rel (0) target = $region109
    $region108: #{tpu_custom_call.1} parent=1 // pred_region
      %2694 = vsyncadd [#allocation16], 0
      %s2695 = sshll.u32 [#allocation17], 4
      %s2696 = int_to_ptr.vmem [resolvable:$true] %s2695
      %s2697 = sshll.u32 %s19, 4
      %s2698 = int_to_ptr.hbm [resolvable:$true] %s2697
      %2703 = dma.vmem_to_hbm [thread:$0]  %s2696, 4096, %s2698, [#allocation16], 128, 128, 8
    $region109: #{tpu_custom_call.1} parent=1 // pred_fallthru
      _
    // Predicated region
    $region110: #{tpu_custom_call.1} parent=1 // pred_check
      _
    $region111: #{tpu_custom_call.1} parent=1 // pred_check_branch
      %2705 = sbr.rel (0) target = $region113
    $region112: #{tpu_custom_call.1} parent=1 // pred_region
      %2707 = vsyncadd [#allocation19], 0
      %s2708 = sshll.u32 [#allocation18], 4
      %s2709 = int_to_ptr.vmem [resolvable:$true] %s2708
      %s2710 = sshll.u32 %s20, 4
      %s2711 = int_to_ptr.hbm [resolvable:$true] %s2710
      %2716 = dma.vmem_to_hbm [thread:$0]  %s2709, 8192, %s2711, [#allocation19], 256, 256, 16
    $region113: #{tpu_custom_call.1} parent=1 // pred_fallthru
      _
    // Predicated region
    $region114: #{tpu_custom_call.1} parent=1 // pred_check
      _
    $region115: #{tpu_custom_call.1} parent=1 // pred_check_branch
      %2718 = sbr.rel (0) target = $region117
    $region116: #{tpu_custom_call.1} parent=1 // pred_region
      _
    $region117: #{tpu_custom_call.1} parent=1 // pred_fallthru
      _
    // Predicated region
    $region118: #{tpu_custom_call.1} parent=1 // pred_check
      _
    $region119: #{tpu_custom_call.1} parent=1 // pred_check_branch
      %2720 = sbr.rel (0) target = $region121
    $region120: #{tpu_custom_call.1} parent=1 // pred_region
      %2722 = dma.done [#allocation4], 4096
    $region121: #{tpu_custom_call.1} parent=1 // pred_fallthru
      _
    // Predicated region
    $region122: #{tpu_custom_call.1} parent=1 // pred_check
      _
    $region123: #{tpu_custom_call.1} parent=1 // pred_check_branch
      %2724 = sbr.rel (0) target = $region125
    $region124: #{tpu_custom_call.1} parent=1 // pred_region
      %2726 = dma.done [#allocation16], 4096
    $region125: #{tpu_custom_call.1} parent=1 // pred_fallthru
      _
    // Predicated region
    $region126: #{tpu_custom_call.1} parent=1 // pred_check
      _
    $region127: #{tpu_custom_call.1} parent=1 // pred_check_branch
      %2728 = sbr.rel (0) target = $region129
    $region128: #{tpu_custom_call.1} parent=1 // pred_region
      %2730 = dma.done [#allocation16], 4096
    $region129: #{tpu_custom_call.1} parent=1 // pred_fallthru
      _
    // Predicated region
    $region130: #{tpu_custom_call.1} parent=1 // pred_check
      _
    $region131: #{tpu_custom_call.1} parent=1 // pred_check_branch
      %2732 = sbr.rel (0) target = $region133
    $region132: #{tpu_custom_call.1} parent=1 // pred_region
      %2734 = dma.done [#allocation19], 8192
    $region133: #{tpu_custom_call.1} parent=1 // pred_fallthru
      _
    // Predicated region
    $region134: #{tpu_custom_call.1} parent=1 // pred_check
      _
    $region135: #{tpu_custom_call.1} parent=1 // pred_check_branch
      %2736 = sbr.rel (0) target = $region137
    $region136: #{tpu_custom_call.1} parent=1 // pred_region
      _
    $region137: #{tpu_custom_call.1} parent=1 // pred_fallthru
      _
    %2737 = vsyncpa [#allocation3], 1
    %2738 = vsyncpa [#allocation6], 1
    %2739 = vsyncpa [#allocation9], 1
    %2740 = vsyncpa [#allocation12], 1
    %2741 = vsyncpa [#allocation4], 1
    %2742 = vsyncpa [#allocation16], 1
    %2743 = vsyncpa [#allocation19], 1

</llo_original>
